<compile_context>
chip_gen: v6e
topology: v6e:2x2x1
jax: 0.10.0
libtpu: 0.0.40
codegen_flags: <defaults>
</compile_context>

<pallas_src>
import jax
import jax.numpy as jnp
from jax import lax
from jax.experimental import pallas as pl
from jax.experimental.pallas import tpu as pltpu

NEG_INF = -1e30  # fill value for padded logit lanes (vanishes under log-softmax)


def rnn_seq_kernel(
    x_ref,      # (T, B, I)     full input sequence (resident)
    h0_ref,     # (B, H)        initial hidden
    w_xh_ref,   # (I, H)        i2h weight, x part
    w_hh_ref,   # (H, H)        i2h weight, h part
    b_h_ref,    # (1, H)        i2h bias
    a_x_ref,    # (I, O_pad)    fused logits weight (x part), zero-padded lanes
    a_h_ref,    # (H, O_pad)    fused logits weight (h part), zero-padded lanes
    b_o_ref,    # (1, O_pad)    fused logits bias, padded lanes = NEG_INF
    out_ref,    # (T, B, O_pad) per-step log-softmax (lane-dense)
    h_out_ref,  # (B, H)        final hidden state
    hs_ref,     # (T+1, B, H)   VMEM scratch: h_0 .. h_T
    xhb_ref,    # (T, B, H)     VMEM scratch: x_t @ W_xh + b_h
):
    T, B, I = x_ref.shape
    H = h0_ref.shape[-1]
    O_pad = out_ref.shape[-1]

    # ---- Off the serial path: input contribution for every step, one matmul.
    x_flat = x_ref[...].reshape(T * B, I)                      # layout-free reshape (B == 8)
    xhb = (
        jnp.dot(x_flat, w_xh_ref[...], preferred_element_type=jnp.float32)
        + b_h_ref[...]
    )
    xhb_ref[...] = xhb.reshape(T, B, H)

    # ---- Serial recurrence: only h_{t-1} @ W_hh (+ add) per step.
    # Static Python unroll is safe here: no SSA values carry across iterations
    # (all state flows through VMEM refs), and indices are compile-time constants.
    hs_ref[0] = h0_ref[...]
    for t in range(T):
        hs_ref[t + 1] = xhb_ref[t] + jnp.dot(
            hs_ref[t], w_hh_ref[...], preferred_element_type=jnp.float32
        )

    h_out_ref[...] = hs_ref[T]

    # ---- Batched logits for all T*B rows at once (off the serial path):
    #      logits_t = x_t @ A_x + h_{t-1} @ A_h + b_o
    h_prev_flat = hs_ref[pl.ds(0, T)].reshape(T * B, H)
    logits = (
        jnp.dot(x_flat, a_x_ref[...], preferred_element_type=jnp.float32)
        + jnp.dot(h_prev_flat, a_h_ref[...], preferred_element_type=jnp.float32)
        + b_o_ref[...]
    )

    # Batched LogSoftmax(dim=1); padded lanes carry -1e30 bias -> exp() == 0.
    m = jnp.max(logits, axis=1, keepdims=True)
    shifted = logits - m
    lse = jnp.log(jnp.sum(jnp.exp(shifted), axis=1, keepdims=True))
    out_ref[...] = (shifted - lse).reshape(T, B, O_pad)


def rnn_sequence(x_seq, h0, kp, output_size):
    """Run the RNN over a whole sequence in one un-gridded pallas_call.

    x_seq: (T, B, I) f32, h0: (B, H) f32.
    Returns (log_probs (T, B, output_size), h_final (B, H)).
    """
    T, B, I = x_seq.shape
    H = h0.shape[1]
    O_pad = kp["a_x"].shape[1]

    def vmem():
        return pl.BlockSpec(memory_space=pltpu.MemorySpace.VMEM)

    out_shape = (
        jax.ShapeDtypeStruct((T, B, O_pad), jnp.float32),
        jax.ShapeDtypeStruct((B, H), jnp.float32),
    )

    log_probs_pad, h_final = pl.pallas_call(
        rnn_seq_kernel,
        out_shape=out_shape,
        in_specs=[vmem() for _ in range(8)],
        out_specs=(vmem(), vmem()),
        scratch_shapes=[
            pltpu.VMEM((T + 1, B, H), jnp.float32),  # hidden states h_0 .. h_T
            pltpu.VMEM((T, B, H), jnp.float32),      # x_t @ W_xh + b_h
        ],
    )(
        x_seq, h0,
        kp["w_xh"], kp["w_hh"], kp["b_h"],
        kp["a_x"], kp["a_h"], kp["b_o"],
    )

    return log_probs_pad[:, :, :output_size], h_final


def init_params(key, input_size, hidden_size, output_size):
    """nn.Linear-style init (U(-1/sqrt(fan_in), +1/sqrt(fan_in))).
    Weights stored pre-transposed: y = x @ W + b."""
    ks = jax.random.split(key, 6)

    def uni(k, shape, fan_in):
        bound = 1.0 / jnp.sqrt(float(fan_in))
        return jax.random.uniform(k, shape, jnp.float32, -bound, bound)

    ih_fan = input_size + hidden_size
    oo_fan = hidden_size + output_size

    return {
        "w_i2h": uni(ks[0], (ih_fan, hidden_size), ih_fan),
        "b_i2h": uni(ks[1], (1, hidden_size), ih_fan),
        "w_i2o": uni(ks[2], (ih_fan, output_size), ih_fan),
        "b_i2o": uni(ks[3], (1, output_size), ih_fan),
        "w_o2o": uni(ks[4], (oo_fan, output_size), oo_fan),
        "b_o2o": uni(ks[5], (1, output_size), oo_fan),
    }


def fuse_params(p, input_size, hidden_size, output_size):
    """Repack torch-layout weights into the fused / lane-padded kernel layout.

    Since there is no nonlinearity between i2h/i2o and o2o:
      logits_t = [x_t | h_{t-1}] @ (W1 @ W_o2o) + ([b_i2h|b_i2o] @ W_o2o + b_o2o)
    with W1 = [W_i2h | W_i2o].
    """
    I, H, O = input_size, hidden_size, output_size
    o_pad = pl.cdiv(O, 128) * 128

    w1 = jnp.concatenate([p["w_i2h"], p["w_i2o"]], axis=1)    # (I+H, H+O)
    b1 = jnp.concatenate([p["b_i2h"], p["b_i2o"]], axis=1)    # (1, H+O)
    w_big = w1 @ p["w_o2o"]                                   # (I+H, O)
    b_big = b1 @ p["w_o2o"] + p["b_o2o"]                      # (1, O)

    a_x = jnp.zeros((I, o_pad), jnp.float32).at[:, :O].set(w_big[:I])
    a_h = jnp.zeros((H, o_pad), jnp.float32).at[:, :O].set(w_big[I:])
    b_o = jnp.full((1, o_pad), NEG_INF, jnp.float32).at[:, :O].set(b_big)

    return {
        "w_xh": p["w_i2h"][:I],   # (I, H)
        "w_hh": p["w_i2h"][I:],   # (H, H)
        "b_h": p["b_i2h"],        # (1, H)
        "a_x": a_x,               # (I, O_pad)
        "a_h": a_h,               # (H, O_pad)
        "b_o": b_o,               # (1, O_pad)
    }


def reference_step(x, h, p):
    """Exact mirror of the PyTorch forward()."""
    ic = jnp.concatenate([x, h], axis=1)
    hidden = ic @ p["w_i2h"] + p["b_i2h"]
    output = ic @ p["w_i2o"] + p["b_i2o"]
    oc = jnp.concatenate([hidden, output], axis=1)
    output = oc @ p["w_o2o"] + p["b_o2o"]
    return jax.nn.log_softmax(output, axis=1), hidden


def reference_sequence(x_seq, h0, p):
    def step(h, x):
        lp, h_new = reference_step(x, h, p)
        return h_new, lp

    h_final, lps = lax.scan(step, h0, x_seq)
    return lps, h_final


if __name__ == "__main__":
    T, B = 20, 8
    INPUT, HIDDEN, OUTPUT = 16, 32, 16

    key = jax.random.PRNGKey(0)
    k_x, k_p = jax.random.split(key)

    x_seq = jax.random.normal(k_x, (T, B, INPUT), jnp.float32)
    h0 = jnp.zeros((B, HIDDEN), jnp.float32)  # initHidden()

    params = init_params(k_p, INPUT, HIDDEN, OUTPUT)
    kparams = fuse_params(params, INPUT, HIDDEN, OUTPUT)

    log_probs, h_final = rnn_sequence(x_seq, h0, kparams, OUTPUT)
    jax.block_until_ready((log_probs, h_final))

    ref_lp, ref_h = reference_sequence(x_seq, h0, params)
    assert jnp.allclose(log_probs, ref_lp, atol=1e-4, rtol=1e-4), "log-probs mismatch"
    assert jnp.allclose(h_final, ref_h, atol=1e-4, rtol=1e-4), "hidden mismatch"

    print("KERNEL_OK")
</pallas_src>

<mosaic_0001>
module attributes {stable_mosaic.version = 11 : i64} {
  func.func @rnn_seq_kernel(%arg0: memref<20x8x16xf32, #tpu.memory_space<vmem>>, %arg1: memref<8x32xf32, #tpu.memory_space<vmem>>, %arg2: memref<16x32xf32, #tpu.memory_space<vmem>>, %arg3: memref<32x32xf32, #tpu.memory_space<vmem>>, %arg4: memref<1x32xf32, #tpu.memory_space<vmem>>, %arg5: memref<16x128xf32, #tpu.memory_space<vmem>>, %arg6: memref<32x128xf32, #tpu.memory_space<vmem>>, %arg7: memref<1x128xf32, #tpu.memory_space<vmem>>, %arg8: memref<20x8x128xf32, #tpu.memory_space<vmem>>, %arg9: memref<8x32xf32, #tpu.memory_space<vmem>>, %arg10: memref<21x8x32xf32, #tpu.memory_space<vmem>>, %arg11: memref<20x8x32xf32, #tpu.memory_space<vmem>>) attributes {dimension_semantics = [], scalar_prefetch = 0 : i64, scratch_operands = 2 : i64, tpu.core_type = #tpu.core_type<tc>} {
    %c0 = arith.constant 0 : index
    %c0_0 = arith.constant 0 : index
    %c0_1 = arith.constant 0 : index
    %0 = vector.load %arg0[%c0, %c0_0, %c0_1] : memref<20x8x16xf32, #tpu.memory_space<vmem>>, vector<20x8x16xf32>
    %1 = vector.shape_cast %0 : vector<20x8x16xf32> to vector<160x16xf32>
    %c0_2 = arith.constant 0 : index
    %c0_3 = arith.constant 0 : index
    %2 = vector.load %arg2[%c0_2, %c0_3] : memref<16x32xf32, #tpu.memory_space<vmem>>, vector<16x32xf32>
    %cst = arith.constant dense<0.000000e+00> : vector<160x32xf32>
    %3 = tpu.matmul %1, %2, %cst {dimension_numbers = #tpu.dot_dimension_numbers<[1], [0], [0], [1], [0, 0, 1, 1], [], []>} : vector<160x16xf32>, vector<16x32xf32>, vector<160x32xf32> -> vector<160x32xf32>
    %c0_4 = arith.constant 0 : index
    %c0_5 = arith.constant 0 : index
    %4 = vector.load %arg4[%c0_4, %c0_5] : memref<1x32xf32, #tpu.memory_space<vmem>>, vector<1x32xf32>
    %5 = vector.broadcast %4 : vector<1x32xf32> to vector<160x32xf32>
    %6 = arith.addf %3, %5 : vector<160x32xf32>
    %7 = vector.shape_cast %6 : vector<160x32xf32> to vector<20x8x32xf32>
    %c0_6 = arith.constant 0 : index
    %c0_7 = arith.constant 0 : index
    %c0_8 = arith.constant 0 : index
    %8 = vector.load %arg11[%c0_6, %c0_7, %c0_8] : memref<20x8x32xf32, #tpu.memory_space<vmem>>, vector<20x8x32xf32>
    tpu.vector_store %arg11[%c0_6, %c0_7, %c0_8], %7 {strides = array<i32>} : memref<20x8x32xf32, #tpu.memory_space<vmem>>, vector<20x8x32xf32>,
    %c0_9 = arith.constant 0 : index
    %c0_10 = arith.constant 0 : index
    %9 = vector.load %arg1[%c0_9, %c0_10] : memref<8x32xf32, #tpu.memory_space<vmem>>, vector<8x32xf32>
    %c0_11 = arith.constant 0 : index
    %c0_12 = arith.constant 0 : index
    %c0_13 = arith.constant 0 : index
    %10 = vector.load %arg10[%c0_11, %c0_12, %c0_13] : memref<21x8x32xf32, #tpu.memory_space<vmem>>, vector<1x8x32xf32>
    %11 = vector.shape_cast %10 : vector<1x8x32xf32> to vector<8x32xf32>
    %12 = vector.shape_cast %9 : vector<8x32xf32> to vector<1x8x32xf32>
    tpu.vector_store %arg10[%c0_11, %c0_12, %c0_13], %12 {strides = array<i32>} : memref<21x8x32xf32, #tpu.memory_space<vmem>>, vector<1x8x32xf32>,
    %c0_14 = arith.constant 0 : index
    %c0_15 = arith.constant 0 : index
    %c0_16 = arith.constant 0 : index
    %13 = vector.load %arg11[%c0_14, %c0_15, %c0_16] : memref<20x8x32xf32, #tpu.memory_space<vmem>>, vector<1x8x32xf32>
    %14 = vector.shape_cast %13 : vector<1x8x32xf32> to vector<8x32xf32>
    %c0_17 = arith.constant 0 : index
    %c0_18 = arith.constant 0 : index
    %c0_19 = arith.constant 0 : index
    %15 = vector.load %arg10[%c0_17, %c0_18, %c0_19] : memref<21x8x32xf32, #tpu.memory_space<vmem>>, vector<1x8x32xf32>
    %16 = vector.shape_cast %15 : vector<1x8x32xf32> to vector<8x32xf32>
    %c0_20 = arith.constant 0 : index
    %c0_21 = arith.constant 0 : index
    %17 = vector.load %arg3[%c0_20, %c0_21] : memref<32x32xf32, #tpu.memory_space<vmem>>, vector<32x32xf32>
    %cst_22 = arith.constant dense<0.000000e+00> : vector<8x32xf32>
    %18 = tpu.matmul %16, %17, %cst_22 {dimension_numbers = #tpu.dot_dimension_numbers<[1], [0], [0], [1], [0, 0, 1, 1], [], []>} : vector<8x32xf32>, vector<32x32xf32>, vector<8x32xf32> -> vector<8x32xf32>
    %19 = arith.addf %14, %18 : vector<8x32xf32>
    %c1 = arith.constant 1 : index
    %c0_23 = arith.constant 0 : index
    %c0_24 = arith.constant 0 : index
    %20 = vector.load %arg10[%c1, %c0_23, %c0_24] : memref<21x8x32xf32, #tpu.memory_space<vmem>>, vector<1x8x32xf32>
    %21 = vector.shape_cast %20 : vector<1x8x32xf32> to vector<8x32xf32>
    %22 = vector.shape_cast %19 : vector<8x32xf32> to vector<1x8x32xf32>
    tpu.vector_store %arg10[%c1, %c0_23, %c0_24], %22 {strides = array<i32>} : memref<21x8x32xf32, #tpu.memory_space<vmem>>, vector<1x8x32xf32>,
    %c1_25 = arith.constant 1 : index
    %c0_26 = arith.constant 0 : index
    %c0_27 = arith.constant 0 : index
    %23 = vector.load %arg11[%c1_25, %c0_26, %c0_27] : memref<20x8x32xf32, #tpu.memory_space<vmem>>, vector<1x8x32xf32>
    %24 = vector.shape_cast %23 : vector<1x8x32xf32> to vector<8x32xf32>
    %c1_28 = arith.constant 1 : index
    %c0_29 = arith.constant 0 : index
    %c0_30 = arith.constant 0 : index
    %25 = vector.load %arg10[%c1_28, %c0_29, %c0_30] : memref<21x8x32xf32, #tpu.memory_space<vmem>>, vector<1x8x32xf32>
    %26 = vector.shape_cast %25 : vector<1x8x32xf32> to vector<8x32xf32>
    %c0_31 = arith.constant 0 : index
    %c0_32 = arith.constant 0 : index
    %27 = vector.load %arg3[%c0_31, %c0_32] : memref<32x32xf32, #tpu.memory_space<vmem>>, vector<32x32xf32>
    %cst_33 = arith.constant dense<0.000000e+00> : vector<8x32xf32>
    %28 = tpu.matmul %26, %27, %cst_33 {dimension_numbers = #tpu.dot_dimension_numbers<[1], [0], [0], [1], [0, 0, 1, 1], [], []>} : vector<8x32xf32>, vector<32x32xf32>, vector<8x32xf32> -> vector<8x32xf32>
    %29 = arith.addf %24, %28 : vector<8x32xf32>
    %c2 = arith.constant 2 : index
    %c0_34 = arith.constant 0 : index
    %c0_35 = arith.constant 0 : index
    %30 = vector.load %arg10[%c2, %c0_34, %c0_35] : memref<21x8x32xf32, #tpu.memory_space<vmem>>, vector<1x8x32xf32>
    %31 = vector.shape_cast %30 : vector<1x8x32xf32> to vector<8x32xf32>
    %32 = vector.shape_cast %29 : vector<8x32xf32> to vector<1x8x32xf32>
    tpu.vector_store %arg10[%c2, %c0_34, %c0_35], %32 {strides = array<i32>} : memref<21x8x32xf32, #tpu.memory_space<vmem>>, vector<1x8x32xf32>,
    %c2_36 = arith.constant 2 : index
    %c0_37 = arith.constant 0 : index
    %c0_38 = arith.constant 0 : index
    %33 = vector.load %arg11[%c2_36, %c0_37, %c0_38] : memref<20x8x32xf32, #tpu.memory_space<vmem>>, vector<1x8x32xf32>
    %34 = vector.shape_cast %33 : vector<1x8x32xf32> to vector<8x32xf32>
    %c2_39 = arith.constant 2 : index
    %c0_40 = arith.constant 0 : index
    %c0_41 = arith.constant 0 : index
    %35 = vector.load %arg10[%c2_39, %c0_40, %c0_41] : memref<21x8x32xf32, #tpu.memory_space<vmem>>, vector<1x8x32xf32>
    %36 = vector.shape_cast %35 : vector<1x8x32xf32> to vector<8x32xf32>
    %c0_42 = arith.constant 0 : index
    %c0_43 = arith.constant 0 : index
    %37 = vector.load %arg3[%c0_42, %c0_43] : memref<32x32xf32, #tpu.memory_space<vmem>>, vector<32x32xf32>
    %cst_44 = arith.constant dense<0.000000e+00> : vector<8x32xf32>
    %38 = tpu.matmul %36, %37, %cst_44 {dimension_numbers = #tpu.dot_dimension_numbers<[1], [0], [0], [1], [0, 0, 1, 1], [], []>} : vector<8x32xf32>, vector<32x32xf32>, vector<8x32xf32> -> vector<8x32xf32>
    %39 = arith.addf %34, %38 : vector<8x32xf32>
    %c3 = arith.constant 3 : index
    %c0_45 = arith.constant 0 : index
    %c0_46 = arith.constant 0 : index
    %40 = vector.load %arg10[%c3, %c0_45, %c0_46] : memref<21x8x32xf32, #tpu.memory_space<vmem>>, vector<1x8x32xf32>
    %41 = vector.shape_cast %40 : vector<1x8x32xf32> to vector<8x32xf32>
    %42 = vector.shape_cast %39 : vector<8x32xf32> to vector<1x8x32xf32>
    tpu.vector_store %arg10[%c3, %c0_45, %c0_46], %42 {strides = array<i32>} : memref<21x8x32xf32, #tpu.memory_space<vmem>>, vector<1x8x32xf32>,
    %c3_47 = arith.constant 3 : index
    %c0_48 = arith.constant 0 : index
    %c0_49 = arith.constant 0 : index
    %43 = vector.load %arg11[%c3_47, %c0_48, %c0_49] : memref<20x8x32xf32, #tpu.memory_space<vmem>>, vector<1x8x32xf32>
    %44 = vector.shape_cast %43 : vector<1x8x32xf32> to vector<8x32xf32>
    %c3_50 = arith.constant 3 : index
    %c0_51 = arith.constant 0 : index
    %c0_52 = arith.constant 0 : index
    %45 = vector.load %arg10[%c3_50, %c0_51, %c0_52] : memref<21x8x32xf32, #tpu.memory_space<vmem>>, vector<1x8x32xf32>
    %46 = vector.shape_cast %45 : vector<1x8x32xf32> to vector<8x32xf32>
    %c0_53 = arith.constant 0 : index
    %c0_54 = arith.constant 0 : index
    %47 = vector.load %arg3[%c0_53, %c0_54] : memref<32x32xf32, #tpu.memory_space<vmem>>, vector<32x32xf32>
    %cst_55 = arith.constant dense<0.000000e+00> : vector<8x32xf32>
    %48 = tpu.matmul %46, %47, %cst_55 {dimension_numbers = #tpu.dot_dimension_numbers<[1], [0], [0], [1], [0, 0, 1, 1], [], []>} : vector<8x32xf32>, vector<32x32xf32>, vector<8x32xf32> -> vector<8x32xf32>
    %49 = arith.addf %44, %48 : vector<8x32xf32>
    %c4 = arith.constant 4 : index
    %c0_56 = arith.constant 0 : index
    %c0_57 = arith.constant 0 : index
    %50 = vector.load %arg10[%c4, %c0_56, %c0_57] : memref<21x8x32xf32, #tpu.memory_space<vmem>>, vector<1x8x32xf32>
    %51 = vector.shape_cast %50 : vector<1x8x32xf32> to vector<8x32xf32>
    %52 = vector.shape_cast %49 : vector<8x32xf32> to vector<1x8x32xf32>
    tpu.vector_store %arg10[%c4, %c0_56, %c0_57], %52 {strides = array<i32>} : memref<21x8x32xf32, #tpu.memory_space<vmem>>, vector<1x8x32xf32>,
    %c4_58 = arith.constant 4 : index
    %c0_59 = arith.constant 0 : index
    %c0_60 = arith.constant 0 : index
    %53 = vector.load %arg11[%c4_58, %c0_59, %c0_60] : memref<20x8x32xf32, #tpu.memory_space<vmem>>, vector<1x8x32xf32>
    %54 = vector.shape_cast %53 : vector<1x8x32xf32> to vector<8x32xf32>
    %c4_61 = arith.constant 4 : index
    %c0_62 = arith.constant 0 : index
    %c0_63 = arith.constant 0 : index
    %55 = vector.load %arg10[%c4_61, %c0_62, %c0_63] : memref<21x8x32xf32, #tpu.memory_space<vmem>>, vector<1x8x32xf32>
    %56 = vector.shape_cast %55 : vector<1x8x32xf32> to vector<8x32xf32>
    %c0_64 = arith.constant 0 : index
    %c0_65 = arith.constant 0 : index
    %57 = vector.load %arg3[%c0_64, %c0_65] : memref<32x32xf32, #tpu.memory_space<vmem>>, vector<32x32xf32>
    %cst_66 = arith.constant dense<0.000000e+00> : vector<8x32xf32>
    %58 = tpu.matmul %56, %57, %cst_66 {dimension_numbers = #tpu.dot_dimension_numbers<[1], [0], [0], [1], [0, 0, 1, 1], [], []>} : vector<8x32xf32>, vector<32x32xf32>, vector<8x32xf32> -> vector<8x32xf32>
    %59 = arith.addf %54, %58 : vector<8x32xf32>
    %c5 = arith.constant 5 : index
    %c0_67 = arith.constant 0 : index
    %c0_68 = arith.constant 0 : index
    %60 = vector.load %arg10[%c5, %c0_67, %c0_68] : memref<21x8x32xf32, #tpu.memory_space<vmem>>, vector<1x8x32xf32>
    %61 = vector.shape_cast %60 : vector<1x8x32xf32> to vector<8x32xf32>
    %62 = vector.shape_cast %59 : vector<8x32xf32> to vector<1x8x32xf32>
    tpu.vector_store %arg10[%c5, %c0_67, %c0_68], %62 {strides = array<i32>} : memref<21x8x32xf32, #tpu.memory_space<vmem>>, vector<1x8x32xf32>,
    %c5_69 = arith.constant 5 : index
    %c0_70 = arith.constant 0 : index
    %c0_71 = arith.constant 0 : index
    %63 = vector.load %arg11[%c5_69, %c0_70, %c0_71] : memref<20x8x32xf32, #tpu.memory_space<vmem>>, vector<1x8x32xf32>
    %64 = vector.shape_cast %63 : vector<1x8x32xf32> to vector<8x32xf32>
    %c5_72 = arith.constant 5 : index
    %c0_73 = arith.constant 0 : index
    %c0_74 = arith.constant 0 : index
    %65 = vector.load %arg10[%c5_72, %c0_73, %c0_74] : memref<21x8x32xf32, #tpu.memory_space<vmem>>, vector<1x8x32xf32>
    %66 = vector.shape_cast %65 : vector<1x8x32xf32> to vector<8x32xf32>
    %c0_75 = arith.constant 0 : index
    %c0_76 = arith.constant 0 : index
    %67 = vector.load %arg3[%c0_75, %c0_76] : memref<32x32xf32, #tpu.memory_space<vmem>>, vector<32x32xf32>
    %cst_77 = arith.constant dense<0.000000e+00> : vector<8x32xf32>
    %68 = tpu.matmul %66, %67, %cst_77 {dimension_numbers = #tpu.dot_dimension_numbers<[1], [0], [0], [1], [0, 0, 1, 1], [], []>} : vector<8x32xf32>, vector<32x32xf32>, vector<8x32xf32> -> vector<8x32xf32>
    %69 = arith.addf %64, %68 : vector<8x32xf32>
    %c6 = arith.constant 6 : index
    %c0_78 = arith.constant 0 : index
    %c0_79 = arith.constant 0 : index
    %70 = vector.load %arg10[%c6, %c0_78, %c0_79] : memref<21x8x32xf32, #tpu.memory_space<vmem>>, vector<1x8x32xf32>
    %71 = vector.shape_cast %70 : vector<1x8x32xf32> to vector<8x32xf32>
    %72 = vector.shape_cast %69 : vector<8x32xf32> to vector<1x8x32xf32>
    tpu.vector_store %arg10[%c6, %c0_78, %c0_79], %72 {strides = array<i32>} : memref<21x8x32xf32, #tpu.memory_space<vmem>>, vector<1x8x32xf32>,
    %c6_80 = arith.constant 6 : index
    %c0_81 = arith.constant 0 : index
    %c0_82 = arith.constant 0 : index
    %73 = vector.load %arg11[%c6_80, %c0_81, %c0_82] : memref<20x8x32xf32, #tpu.memory_space<vmem>>, vector<1x8x32xf32>
    %74 = vector.shape_cast %73 : vector<1x8x32xf32> to vector<8x32xf32>
    %c6_83 = arith.constant 6 : index
    %c0_84 = arith.constant 0 : index
    %c0_85 = arith.constant 0 : index
    %75 = vector.load %arg10[%c6_83, %c0_84, %c0_85] : memref<21x8x32xf32, #tpu.memory_space<vmem>>, vector<1x8x32xf32>
    %76 = vector.shape_cast %75 : vector<1x8x32xf32> to vector<8x32xf32>
    %c0_86 = arith.constant 0 : index
    %c0_87 = arith.constant 0 : index
    %77 = vector.load %arg3[%c0_86, %c0_87] : memref<32x32xf32, #tpu.memory_space<vmem>>, vector<32x32xf32>
    %cst_88 = arith.constant dense<0.000000e+00> : vector<8x32xf32>
    %78 = tpu.matmul %76, %77, %cst_88 {dimension_numbers = #tpu.dot_dimension_numbers<[1], [0], [0], [1], [0, 0, 1, 1], [], []>} : vector<8x32xf32>, vector<32x32xf32>, vector<8x32xf32> -> vector<8x32xf32>
    %79 = arith.addf %74, %78 : vector<8x32xf32>
    %c7 = arith.constant 7 : index
    %c0_89 = arith.constant 0 : index
    %c0_90 = arith.constant 0 : index
    %80 = vector.load %arg10[%c7, %c0_89, %c0_90] : memref<21x8x32xf32, #tpu.memory_space<vmem>>, vector<1x8x32xf32>
    %81 = vector.shape_cast %80 : vector<1x8x32xf32> to vector<8x32xf32>
    %82 = vector.shape_cast %79 : vector<8x32xf32> to vector<1x8x32xf32>
    tpu.vector_store %arg10[%c7, %c0_89, %c0_90], %82 {strides = array<i32>} : memref<21x8x32xf32, #tpu.memory_space<vmem>>, vector<1x8x32xf32>,
    %c7_91 = arith.constant 7 : index
    %c0_92 = arith.constant 0 : index
    %c0_93 = arith.constant 0 : index
    %83 = vector.load %arg11[%c7_91, %c0_92, %c0_93] : memref<20x8x32xf32, #tpu.memory_space<vmem>>, vector<1x8x32xf32>
    %84 = vector.shape_cast %83 : vector<1x8x32xf32> to vector<8x32xf32>
    %c7_94 = arith.constant 7 : index
    %c0_95 = arith.constant 0 : index
    %c0_96 = arith.constant 0 : index
    %85 = vector.load %arg10[%c7_94, %c0_95, %c0_96] : memref<21x8x32xf32, #tpu.memory_space<vmem>>, vector<1x8x32xf32>
    %86 = vector.shape_cast %85 : vector<1x8x32xf32> to vector<8x32xf32>
    %c0_97 = arith.constant 0 : index
    %c0_98 = arith.constant 0 : index
    %87 = vector.load %arg3[%c0_97, %c0_98] : memref<32x32xf32, #tpu.memory_space<vmem>>, vector<32x32xf32>
    %cst_99 = arith.constant dense<0.000000e+00> : vector<8x32xf32>
    %88 = tpu.matmul %86, %87, %cst_99 {dimension_numbers = #tpu.dot_dimension_numbers<[1], [0], [0], [1], [0, 0, 1, 1], [], []>} : vector<8x32xf32>, vector<32x32xf32>, vector<8x32xf32> -> vector<8x32xf32>
    %89 = arith.addf %84, %88 : vector<8x32xf32>
    %c8 = arith.constant 8 : index
    %c0_100 = arith.constant 0 : index
    %c0_101 = arith.constant 0 : index
    %90 = vector.load %arg10[%c8, %c0_100, %c0_101] : memref<21x8x32xf32, #tpu.memory_space<vmem>>, vector<1x8x32xf32>
    %91 = vector.shape_cast %90 : vector<1x8x32xf32> to vector<8x32xf32>
    %92 = vector.shape_cast %89 : vector<8x32xf32> to vector<1x8x32xf32>
    tpu.vector_store %arg10[%c8, %c0_100, %c0_101], %92 {strides = array<i32>} : memref<21x8x32xf32, #tpu.memory_space<vmem>>, vector<1x8x32xf32>,
    %c8_102 = arith.constant 8 : index
    %c0_103 = arith.constant 0 : index
    %c0_104 = arith.constant 0 : index
    %93 = vector.load %arg11[%c8_102, %c0_103, %c0_104] : memref<20x8x32xf32, #tpu.memory_space<vmem>>, vector<1x8x32xf32>
    %94 = vector.shape_cast %93 : vector<1x8x32xf32> to vector<8x32xf32>
    %c8_105 = arith.constant 8 : index
    %c0_106 = arith.constant 0 : index
    %c0_107 = arith.constant 0 : index
    %95 = vector.load %arg10[%c8_105, %c0_106, %c0_107] : memref<21x8x32xf32, #tpu.memory_space<vmem>>, vector<1x8x32xf32>
    %96 = vector.shape_cast %95 : vector<1x8x32xf32> to vector<8x32xf32>
    %c0_108 = arith.constant 0 : index
    %c0_109 = arith.constant 0 : index
    %97 = vector.load %arg3[%c0_108, %c0_109] : memref<32x32xf32, #tpu.memory_space<vmem>>, vector<32x32xf32>
    %cst_110 = arith.constant dense<0.000000e+00> : vector<8x32xf32>
    %98 = tpu.matmul %96, %97, %cst_110 {dimension_numbers = #tpu.dot_dimension_numbers<[1], [0], [0], [1], [0, 0, 1, 1], [], []>} : vector<8x32xf32>, vector<32x32xf32>, vector<8x32xf32> -> vector<8x32xf32>
    %99 = arith.addf %94, %98 : vector<8x32xf32>
    %c9 = arith.constant 9 : index
    %c0_111 = arith.constant 0 : index
    %c0_112 = arith.constant 0 : index
    %100 = vector.load %arg10[%c9, %c0_111, %c0_112] : memref<21x8x32xf32, #tpu.memory_space<vmem>>, vector<1x8x32xf32>
    %101 = vector.shape_cast %100 : vector<1x8x32xf32> to vector<8x32xf32>
    %102 = vector.shape_cast %99 : vector<8x32xf32> to vector<1x8x32xf32>
    tpu.vector_store %arg10[%c9, %c0_111, %c0_112], %102 {strides = array<i32>} : memref<21x8x32xf32, #tpu.memory_space<vmem>>, vector<1x8x32xf32>,
    %c9_113 = arith.constant 9 : index
    %c0_114 = arith.constant 0 : index
    %c0_115 = arith.constant 0 : index
    %103 = vector.load %arg11[%c9_113, %c0_114, %c0_115] : memref<20x8x32xf32, #tpu.memory_space<vmem>>, vector<1x8x32xf32>
    %104 = vector.shape_cast %103 : vector<1x8x32xf32> to vector<8x32xf32>
    %c9_116 = arith.constant 9 : index
    %c0_117 = arith.constant 0 : index
    %c0_118 = arith.constant 0 : index
    %105 = vector.load %arg10[%c9_116, %c0_117, %c0_118] : memref<21x8x32xf32, #tpu.memory_space<vmem>>, vector<1x8x32xf32>
    %106 = vector.shape_cast %105 : vector<1x8x32xf32> to vector<8x32xf32>
    %c0_119 = arith.constant 0 : index
    %c0_120 = arith.constant 0 : index
    %107 = vector.load %arg3[%c0_119, %c0_120] : memref<32x32xf32, #tpu.memory_space<vmem>>, vector<32x32xf32>
    %cst_121 = arith.constant dense<0.000000e+00> : vector<8x32xf32>
    %108 = tpu.matmul %106, %107, %cst_121 {dimension_numbers = #tpu.dot_dimension_numbers<[1], [0], [0], [1], [0, 0, 1, 1], [], []>} : vector<8x32xf32>, vector<32x32xf32>, vector<8x32xf32> -> vector<8x32xf32>
    %109 = arith.addf %104, %108 : vector<8x32xf32>
    %c10 = arith.constant 10 : index
    %c0_122 = arith.constant 0 : index
    %c0_123 = arith.constant 0 : index
    %110 = vector.load %arg10[%c10, %c0_122, %c0_123] : memref<21x8x32xf32, #tpu.memory_space<vmem>>, vector<1x8x32xf32>
    %111 = vector.shape_cast %110 : vector<1x8x32xf32> to vector<8x32xf32>
    %112 = vector.shape_cast %109 : vector<8x32xf32> to vector<1x8x32xf32>
    tpu.vector_store %arg10[%c10, %c0_122, %c0_123], %112 {strides = array<i32>} : memref<21x8x32xf32, #tpu.memory_space<vmem>>, vector<1x8x32xf32>,
    %c10_124 = arith.constant 10 : index
    %c0_125 = arith.constant 0 : index
    %c0_126 = arith.constant 0 : index
    %113 = vector.load %arg11[%c10_124, %c0_125, %c0_126] : memref<20x8x32xf32, #tpu.memory_space<vmem>>, vector<1x8x32xf32>
    %114 = vector.shape_cast %113 : vector<1x8x32xf32> to vector<8x32xf32>
    %c10_127 = arith.constant 10 : index
    %c0_128 = arith.constant 0 : index
    %c0_129 = arith.constant 0 : index
    %115 = vector.load %arg10[%c10_127, %c0_128, %c0_129] : memref<21x8x32xf32, #tpu.memory_space<vmem>>, vector<1x8x32xf32>
    %116 = vector.shape_cast %115 : vector<1x8x32xf32> to vector<8x32xf32>
    %c0_130 = arith.constant 0 : index
    %c0_131 = arith.constant 0 : index
    %117 = vector.load %arg3[%c0_130, %c0_131] : memref<32x32xf32, #tpu.memory_space<vmem>>, vector<32x32xf32>
    %cst_132 = arith.constant dense<0.000000e+00> : vector<8x32xf32>
    %118 = tpu.matmul %116, %117, %cst_132 {dimension_numbers = #tpu.dot_dimension_numbers<[1], [0], [0], [1], [0, 0, 1, 1], [], []>} : vector<8x32xf32>, vector<32x32xf32>, vector<8x32xf32> -> vector<8x32xf32>
    %119 = arith.addf %114, %118 : vector<8x32xf32>
    %c11 = arith.constant 11 : index
    %c0_133 = arith.constant 0 : index
    %c0_134 = arith.constant 0 : index
    %120 = vector.load %arg10[%c11, %c0_133, %c0_134] : memref<21x8x32xf32, #tpu.memory_space<vmem>>, vector<1x8x32xf32>
    %121 = vector.shape_cast %120 : vector<1x8x32xf32> to vector<8x32xf32>
    %122 = vector.shape_cast %119 : vector<8x32xf32> to vector<1x8x32xf32>
    tpu.vector_store %arg10[%c11, %c0_133, %c0_134], %122 {strides = array<i32>} : memref<21x8x32xf32, #tpu.memory_space<vmem>>, vector<1x8x32xf32>,
    %c11_135 = arith.constant 11 : index
    %c0_136 = arith.constant 0 : index
    %c0_137 = arith.constant 0 : index
    %123 = vector.load %arg11[%c11_135, %c0_136, %c0_137] : memref<20x8x32xf32, #tpu.memory_space<vmem>>, vector<1x8x32xf32>
    %124 = vector.shape_cast %123 : vector<1x8x32xf32> to vector<8x32xf32>
    %c11_138 = arith.constant 11 : index
    %c0_139 = arith.constant 0 : index
    %c0_140 = arith.constant 0 : index
    %125 = vector.load %arg10[%c11_138, %c0_139, %c0_140] : memref<21x8x32xf32, #tpu.memory_space<vmem>>, vector<1x8x32xf32>
    %126 = vector.shape_cast %125 : vector<1x8x32xf32> to vector<8x32xf32>
    %c0_141 = arith.constant 0 : index
    %c0_142 = arith.constant 0 : index
    %127 = vector.load %arg3[%c0_141, %c0_142] : memref<32x32xf32, #tpu.memory_space<vmem>>, vector<32x32xf32>
    %cst_143 = arith.constant dense<0.000000e+00> : vector<8x32xf32>
    %128 = tpu.matmul %126, %127, %cst_143 {dimension_numbers = #tpu.dot_dimension_numbers<[1], [0], [0], [1], [0, 0, 1, 1], [], []>} : vector<8x32xf32>, vector<32x32xf32>, vector<8x32xf32> -> vector<8x32xf32>
    %129 = arith.addf %124, %128 : vector<8x32xf32>
    %c12 = arith.constant 12 : index
    %c0_144 = arith.constant 0 : index
    %c0_145 = arith.constant 0 : index
    %130 = vector.load %arg10[%c12, %c0_144, %c0_145] : memref<21x8x32xf32, #tpu.memory_space<vmem>>, vector<1x8x32xf32>
    %131 = vector.shape_cast %130 : vector<1x8x32xf32> to vector<8x32xf32>
    %132 = vector.shape_cast %129 : vector<8x32xf32> to vector<1x8x32xf32>
    tpu.vector_store %arg10[%c12, %c0_144, %c0_145], %132 {strides = array<i32>} : memref<21x8x32xf32, #tpu.memory_space<vmem>>, vector<1x8x32xf32>,
    %c12_146 = arith.constant 12 : index
    %c0_147 = arith.constant 0 : index
    %c0_148 = arith.constant 0 : index
    %133 = vector.load %arg11[%c12_146, %c0_147, %c0_148] : memref<20x8x32xf32, #tpu.memory_space<vmem>>, vector<1x8x32xf32>
    %134 = vector.shape_cast %133 : vector<1x8x32xf32> to vector<8x32xf32>
    %c12_149 = arith.constant 12 : index
    %c0_150 = arith.constant 0 : index
    %c0_151 = arith.constant 0 : index
    %135 = vector.load %arg10[%c12_149, %c0_150, %c0_151] : memref<21x8x32xf32, #tpu.memory_space<vmem>>, vector<1x8x32xf32>
    %136 = vector.shape_cast %135 : vector<1x8x32xf32> to vector<8x32xf32>
    %c0_152 = arith.constant 0 : index
    %c0_153 = arith.constant 0 : index
    %137 = vector.load %arg3[%c0_152, %c0_153] : memref<32x32xf32, #tpu.memory_space<vmem>>, vector<32x32xf32>
    %cst_154 = arith.constant dense<0.000000e+00> : vector<8x32xf32>
    %138 = tpu.matmul %136, %137, %cst_154 {dimension_numbers = #tpu.dot_dimension_numbers<[1], [0], [0], [1], [0, 0, 1, 1], [], []>} : vector<8x32xf32>, vector<32x32xf32>, vector<8x32xf32> -> vector<8x32xf32>
    %139 = arith.addf %134, %138 : vector<8x32xf32>
    %c13 = arith.constant 13 : index
    %c0_155 = arith.constant 0 : index
    %c0_156 = arith.constant 0 : index
    %140 = vector.load %arg10[%c13, %c0_155, %c0_156] : memref<21x8x32xf32, #tpu.memory_space<vmem>>, vector<1x8x32xf32>
    %141 = vector.shape_cast %140 : vector<1x8x32xf32> to vector<8x32xf32>
    %142 = vector.shape_cast %139 : vector<8x32xf32> to vector<1x8x32xf32>
    tpu.vector_store %arg10[%c13, %c0_155, %c0_156], %142 {strides = array<i32>} : memref<21x8x32xf32, #tpu.memory_space<vmem>>, vector<1x8x32xf32>,
    %c13_157 = arith.constant 13 : index
    %c0_158 = arith.constant 0 : index
    %c0_159 = arith.constant 0 : index
    %143 = vector.load %arg11[%c13_157, %c0_158, %c0_159] : memref<20x8x32xf32, #tpu.memory_space<vmem>>, vector<1x8x32xf32>
    %144 = vector.shape_cast %143 : vector<1x8x32xf32> to vector<8x32xf32>
    %c13_160 = arith.constant 13 : index
    %c0_161 = arith.constant 0 : index
    %c0_162 = arith.constant 0 : index
    %145 = vector.load %arg10[%c13_160, %c0_161, %c0_162] : memref<21x8x32xf32, #tpu.memory_space<vmem>>, vector<1x8x32xf32>
    %146 = vector.shape_cast %145 : vector<1x8x32xf32> to vector<8x32xf32>
    %c0_163 = arith.constant 0 : index
    %c0_164 = arith.constant 0 : index
    %147 = vector.load %arg3[%c0_163, %c0_164] : memref<32x32xf32, #tpu.memory_space<vmem>>, vector<32x32xf32>
    %cst_165 = arith.constant dense<0.000000e+00> : vector<8x32xf32>
    %148 = tpu.matmul %146, %147, %cst_165 {dimension_numbers = #tpu.dot_dimension_numbers<[1], [0], [0], [1], [0, 0, 1, 1], [], []>} : vector<8x32xf32>, vector<32x32xf32>, vector<8x32xf32> -> vector<8x32xf32>
    %149 = arith.addf %144, %148 : vector<8x32xf32>
    %c14 = arith.constant 14 : index
    %c0_166 = arith.constant 0 : index
    %c0_167 = arith.constant 0 : index
    %150 = vector.load %arg10[%c14, %c0_166, %c0_167] : memref<21x8x32xf32, #tpu.memory_space<vmem>>, vector<1x8x32xf32>
    %151 = vector.shape_cast %150 : vector<1x8x32xf32> to vector<8x32xf32>
    %152 = vector.shape_cast %149 : vector<8x32xf32> to vector<1x8x32xf32>
    tpu.vector_store %arg10[%c14, %c0_166, %c0_167], %152 {strides = array<i32>} : memref<21x8x32xf32, #tpu.memory_space<vmem>>, vector<1x8x32xf32>,
    %c14_168 = arith.constant 14 : index
    %c0_169 = arith.constant 0 : index
    %c0_170 = arith.constant 0 : index
    %153 = vector.load %arg11[%c14_168, %c0_169, %c0_170] : memref<20x8x32xf32, #tpu.memory_space<vmem>>, vector<1x8x32xf32>
    %154 = vector.shape_cast %153 : vector<1x8x32xf32> to vector<8x32xf32>
    %c14_171 = arith.constant 14 : index
    %c0_172 = arith.constant 0 : index
    %c0_173 = arith.constant 0 : index
    %155 = vector.load %arg10[%c14_171, %c0_172, %c0_173] : memref<21x8x32xf32, #tpu.memory_space<vmem>>, vector<1x8x32xf32>
    %156 = vector.shape_cast %155 : vector<1x8x32xf32> to vector<8x32xf32>
    %c0_174 = arith.constant 0 : index
    %c0_175 = arith.constant 0 : index
    %157 = vector.load %arg3[%c0_174, %c0_175] : memref<32x32xf32, #tpu.memory_space<vmem>>, vector<32x32xf32>
    %cst_176 = arith.constant dense<0.000000e+00> : vector<8x32xf32>
    %158 = tpu.matmul %156, %157, %cst_176 {dimension_numbers = #tpu.dot_dimension_numbers<[1], [0], [0], [1], [0, 0, 1, 1], [], []>} : vector<8x32xf32>, vector<32x32xf32>, vector<8x32xf32> -> vector<8x32xf32>
    %159 = arith.addf %154, %158 : vector<8x32xf32>
    %c15 = arith.constant 15 : index
    %c0_177 = arith.constant 0 : index
    %c0_178 = arith.constant 0 : index
    %160 = vector.load %arg10[%c15, %c0_177, %c0_178] : memref<21x8x32xf32, #tpu.memory_space<vmem>>, vector<1x8x32xf32>
    %161 = vector.shape_cast %160 : vector<1x8x32xf32> to vector<8x32xf32>
    %162 = vector.shape_cast %159 : vector<8x32xf32> to vector<1x8x32xf32>
    tpu.vector_store %arg10[%c15, %c0_177, %c0_178], %162 {strides = array<i32>} : memref<21x8x32xf32, #tpu.memory_space<vmem>>, vector<1x8x32xf32>,
    %c15_179 = arith.constant 15 : index
    %c0_180 = arith.constant 0 : index
    %c0_181 = arith.constant 0 : index
    %163 = vector.load %arg11[%c15_179, %c0_180, %c0_181] : memref<20x8x32xf32, #tpu.memory_space<vmem>>, vector<1x8x32xf32>
    %164 = vector.shape_cast %163 : vector<1x8x32xf32> to vector<8x32xf32>
    %c15_182 = arith.constant 15 : index
    %c0_183 = arith.constant 0 : index
    %c0_184 = arith.constant 0 : index
    %165 = vector.load %arg10[%c15_182, %c0_183, %c0_184] : memref<21x8x32xf32, #tpu.memory_space<vmem>>, vector<1x8x32xf32>
    %166 = vector.shape_cast %165 : vector<1x8x32xf32> to vector<8x32xf32>
    %c0_185 = arith.constant 0 : index
    %c0_186 = arith.constant 0 : index
    %167 = vector.load %arg3[%c0_185, %c0_186] : memref<32x32xf32, #tpu.memory_space<vmem>>, vector<32x32xf32>
    %cst_187 = arith.constant dense<0.000000e+00> : vector<8x32xf32>
    %168 = tpu.matmul %166, %167, %cst_187 {dimension_numbers = #tpu.dot_dimension_numbers<[1], [0], [0], [1], [0, 0, 1, 1], [], []>} : vector<8x32xf32>, vector<32x32xf32>, vector<8x32xf32> -> vector<8x32xf32>
    %169 = arith.addf %164, %168 : vector<8x32xf32>
    %c16 = arith.constant 16 : index
    %c0_188 = arith.constant 0 : index
    %c0_189 = arith.constant 0 : index
    %170 = vector.load %arg10[%c16, %c0_188, %c0_189] : memref<21x8x32xf32, #tpu.memory_space<vmem>>, vector<1x8x32xf32>
    %171 = vector.shape_cast %170 : vector<1x8x32xf32> to vector<8x32xf32>
    %172 = vector.shape_cast %169 : vector<8x32xf32> to vector<1x8x32xf32>
    tpu.vector_store %arg10[%c16, %c0_188, %c0_189], %172 {strides = array<i32>} : memref<21x8x32xf32, #tpu.memory_space<vmem>>, vector<1x8x32xf32>,
    %c16_190 = arith.constant 16 : index
    %c0_191 = arith.constant 0 : index
    %c0_192 = arith.constant 0 : index
    %173 = vector.load %arg11[%c16_190, %c0_191, %c0_192] : memref<20x8x32xf32, #tpu.memory_space<vmem>>, vector<1x8x32xf32>
    %174 = vector.shape_cast %173 : vector<1x8x32xf32> to vector<8x32xf32>
    %c16_193 = arith.constant 16 : index
    %c0_194 = arith.constant 0 : index
    %c0_195 = arith.constant 0 : index
    %175 = vector.load %arg10[%c16_193, %c0_194, %c0_195] : memref<21x8x32xf32, #tpu.memory_space<vmem>>, vector<1x8x32xf32>
    %176 = vector.shape_cast %175 : vector<1x8x32xf32> to vector<8x32xf32>
    %c0_196 = arith.constant 0 : index
    %c0_197 = arith.constant 0 : index
    %177 = vector.load %arg3[%c0_196, %c0_197] : memref<32x32xf32, #tpu.memory_space<vmem>>, vector<32x32xf32>
    %cst_198 = arith.constant dense<0.000000e+00> : vector<8x32xf32>
    %178 = tpu.matmul %176, %177, %cst_198 {dimension_numbers = #tpu.dot_dimension_numbers<[1], [0], [0], [1], [0, 0, 1, 1], [], []>} : vector<8x32xf32>, vector<32x32xf32>, vector<8x32xf32> -> vector<8x32xf32>
    %179 = arith.addf %174, %178 : vector<8x32xf32>
    %c17 = arith.constant 17 : index
    %c0_199 = arith.constant 0 : index
    %c0_200 = arith.constant 0 : index
    %180 = vector.load %arg10[%c17, %c0_199, %c0_200] : memref<21x8x32xf32, #tpu.memory_space<vmem>>, vector<1x8x32xf32>
    %181 = vector.shape_cast %180 : vector<1x8x32xf32> to vector<8x32xf32>
    %182 = vector.shape_cast %179 : vector<8x32xf32> to vector<1x8x32xf32>
    tpu.vector_store %arg10[%c17, %c0_199, %c0_200], %182 {strides = array<i32>} : memref<21x8x32xf32, #tpu.memory_space<vmem>>, vector<1x8x32xf32>,
    %c17_201 = arith.constant 17 : index
    %c0_202 = arith.constant 0 : index
    %c0_203 = arith.constant 0 : index
    %183 = vector.load %arg11[%c17_201, %c0_202, %c0_203] : memref<20x8x32xf32, #tpu.memory_space<vmem>>, vector<1x8x32xf32>
    %184 = vector.shape_cast %183 : vector<1x8x32xf32> to vector<8x32xf32>
    %c17_204 = arith.constant 17 : index
    %c0_205 = arith.constant 0 : index
    %c0_206 = arith.constant 0 : index
    %185 = vector.load %arg10[%c17_204, %c0_205, %c0_206] : memref<21x8x32xf32, #tpu.memory_space<vmem>>, vector<1x8x32xf32>
    %186 = vector.shape_cast %185 : vector<1x8x32xf32> to vector<8x32xf32>
    %c0_207 = arith.constant 0 : index
    %c0_208 = arith.constant 0 : index
    %187 = vector.load %arg3[%c0_207, %c0_208] : memref<32x32xf32, #tpu.memory_space<vmem>>, vector<32x32xf32>
    %cst_209 = arith.constant dense<0.000000e+00> : vector<8x32xf32>
    %188 = tpu.matmul %186, %187, %cst_209 {dimension_numbers = #tpu.dot_dimension_numbers<[1], [0], [0], [1], [0, 0, 1, 1], [], []>} : vector<8x32xf32>, vector<32x32xf32>, vector<8x32xf32> -> vector<8x32xf32>
    %189 = arith.addf %184, %188 : vector<8x32xf32>
    %c18 = arith.constant 18 : index
    %c0_210 = arith.constant 0 : index
    %c0_211 = arith.constant 0 : index
    %190 = vector.load %arg10[%c18, %c0_210, %c0_211] : memref<21x8x32xf32, #tpu.memory_space<vmem>>, vector<1x8x32xf32>
    %191 = vector.shape_cast %190 : vector<1x8x32xf32> to vector<8x32xf32>
    %192 = vector.shape_cast %189 : vector<8x32xf32> to vector<1x8x32xf32>
    tpu.vector_store %arg10[%c18, %c0_210, %c0_211], %192 {strides = array<i32>} : memref<21x8x32xf32, #tpu.memory_space<vmem>>, vector<1x8x32xf32>,
    %c18_212 = arith.constant 18 : index
    %c0_213 = arith.constant 0 : index
    %c0_214 = arith.constant 0 : index
    %193 = vector.load %arg11[%c18_212, %c0_213, %c0_214] : memref<20x8x32xf32, #tpu.memory_space<vmem>>, vector<1x8x32xf32>
    %194 = vector.shape_cast %193 : vector<1x8x32xf32> to vector<8x32xf32>
    %c18_215 = arith.constant 18 : index
    %c0_216 = arith.constant 0 : index
    %c0_217 = arith.constant 0 : index
    %195 = vector.load %arg10[%c18_215, %c0_216, %c0_217] : memref<21x8x32xf32, #tpu.memory_space<vmem>>, vector<1x8x32xf32>
    %196 = vector.shape_cast %195 : vector<1x8x32xf32> to vector<8x32xf32>
    %c0_218 = arith.constant 0 : index
    %c0_219 = arith.constant 0 : index
    %197 = vector.load %arg3[%c0_218, %c0_219] : memref<32x32xf32, #tpu.memory_space<vmem>>, vector<32x32xf32>
    %cst_220 = arith.constant dense<0.000000e+00> : vector<8x32xf32>
    %198 = tpu.matmul %196, %197, %cst_220 {dimension_numbers = #tpu.dot_dimension_numbers<[1], [0], [0], [1], [0, 0, 1, 1], [], []>} : vector<8x32xf32>, vector<32x32xf32>, vector<8x32xf32> -> vector<8x32xf32>
    %199 = arith.addf %194, %198 : vector<8x32xf32>
    %c19 = arith.constant 19 : index
    %c0_221 = arith.constant 0 : index
    %c0_222 = arith.constant 0 : index
    %200 = vector.load %arg10[%c19, %c0_221, %c0_222] : memref<21x8x32xf32, #tpu.memory_space<vmem>>, vector<1x8x32xf32>
    %201 = vector.shape_cast %200 : vector<1x8x32xf32> to vector<8x32xf32>
    %202 = vector.shape_cast %199 : vector<8x32xf32> to vector<1x8x32xf32>
    tpu.vector_store %arg10[%c19, %c0_221, %c0_222], %202 {strides = array<i32>} : memref<21x8x32xf32, #tpu.memory_space<vmem>>, vector<1x8x32xf32>,
    %c19_223 = arith.constant 19 : index
    %c0_224 = arith.constant 0 : index
    %c0_225 = arith.constant 0 : index
    %203 = vector.load %arg11[%c19_223, %c0_224, %c0_225] : memref<20x8x32xf32, #tpu.memory_space<vmem>>, vector<1x8x32xf32>
    %204 = vector.shape_cast %203 : vector<1x8x32xf32> to vector<8x32xf32>
    %c19_226 = arith.constant 19 : index
    %c0_227 = arith.constant 0 : index
    %c0_228 = arith.constant 0 : index
    %205 = vector.load %arg10[%c19_226, %c0_227, %c0_228] : memref<21x8x32xf32, #tpu.memory_space<vmem>>, vector<1x8x32xf32>
    %206 = vector.shape_cast %205 : vector<1x8x32xf32> to vector<8x32xf32>
    %c0_229 = arith.constant 0 : index
    %c0_230 = arith.constant 0 : index
    %207 = vector.load %arg3[%c0_229, %c0_230] : memref<32x32xf32, #tpu.memory_space<vmem>>, vector<32x32xf32>
    %cst_231 = arith.constant dense<0.000000e+00> : vector<8x32xf32>
    %208 = tpu.matmul %206, %207, %cst_231 {dimension_numbers = #tpu.dot_dimension_numbers<[1], [0], [0], [1], [0, 0, 1, 1], [], []>} : vector<8x32xf32>, vector<32x32xf32>, vector<8x32xf32> -> vector<8x32xf32>
    %209 = arith.addf %204, %208 : vector<8x32xf32>
    %c20 = arith.constant 20 : index
    %c0_232 = arith.constant 0 : index
    %c0_233 = arith.constant 0 : index
    %210 = vector.load %arg10[%c20, %c0_232, %c0_233] : memref<21x8x32xf32, #tpu.memory_space<vmem>>, vector<1x8x32xf32>
    %211 = vector.shape_cast %210 : vector<1x8x32xf32> to vector<8x32xf32>
    %212 = vector.shape_cast %209 : vector<8x32xf32> to vector<1x8x32xf32>
    tpu.vector_store %arg10[%c20, %c0_232, %c0_233], %212 {strides = array<i32>} : memref<21x8x32xf32, #tpu.memory_space<vmem>>, vector<1x8x32xf32>,
    %c20_234 = arith.constant 20 : index
    %c0_235 = arith.constant 0 : index
    %c0_236 = arith.constant 0 : index
    %213 = vector.load %arg10[%c20_234, %c0_235, %c0_236] : memref<21x8x32xf32, #tpu.memory_space<vmem>>, vector<1x8x32xf32>
    %214 = vector.shape_cast %213 : vector<1x8x32xf32> to vector<8x32xf32>
    %c0_237 = arith.constant 0 : index
    %c0_238 = arith.constant 0 : index
    %215 = vector.load %arg9[%c0_237, %c0_238] : memref<8x32xf32, #tpu.memory_space<vmem>>, vector<8x32xf32>
    tpu.vector_store %arg9[%c0_237, %c0_238], %214 {strides = array<i32>} : memref<8x32xf32, #tpu.memory_space<vmem>>, vector<8x32xf32>,
    %c0_239 = arith.constant 0 : index
    %c0_240 = arith.constant 0 : index
    %c0_241 = arith.constant 0 : index
    %216 = vector.load %arg10[%c0_239, %c0_240, %c0_241] : memref<21x8x32xf32, #tpu.memory_space<vmem>>, vector<20x8x32xf32>
    %217 = vector.shape_cast %216 : vector<20x8x32xf32> to vector<160x32xf32>
    %c0_242 = arith.constant 0 : index
    %c0_243 = arith.constant 0 : index
    %218 = vector.load %arg5[%c0_242, %c0_243] : memref<16x128xf32, #tpu.memory_space<vmem>>, vector<16x128xf32>
    %cst_244 = arith.constant dense<0.000000e+00> : vector<160x128xf32>
    %219 = tpu.matmul %1, %218, %cst_244 {dimension_numbers = #tpu.dot_dimension_numbers<[1], [0], [0], [1], [0, 0, 1, 1], [], []>} : vector<160x16xf32>, vector<16x128xf32>, vector<160x128xf32> -> vector<160x128xf32>
    %c0_245 = arith.constant 0 : index
    %c0_246 = arith.constant 0 : index
    %220 = vector.load %arg6[%c0_245, %c0_246] : memref<32x128xf32, #tpu.memory_space<vmem>>, vector<32x128xf32>
    %cst_247 = arith.constant dense<0.000000e+00> : vector<160x128xf32>
    %221 = tpu.matmul %217, %220, %cst_247 {dimension_numbers = #tpu.dot_dimension_numbers<[1], [0], [0], [1], [0, 0, 1, 1], [], []>} : vector<160x32xf32>, vector<32x128xf32>, vector<160x128xf32> -> vector<160x128xf32>
    %222 = arith.addf %219, %221 : vector<160x128xf32>
    %c0_248 = arith.constant 0 : index
    %c0_249 = arith.constant 0 : index
    %223 = vector.load %arg7[%c0_248, %c0_249] : memref<1x128xf32, #tpu.memory_space<vmem>>, vector<1x128xf32>
    %224 = vector.broadcast %223 : vector<1x128xf32> to vector<160x128xf32>
    %225 = arith.addf %222, %224 : vector<160x128xf32>
    %cst_250 = arith.constant dense<0xFF800000> : vector<160xf32>
    %226 = vector.multi_reduction <maximumf>, %225, %cst_250 [1] : vector<160x128xf32> to vector<160xf32>
    %227 = vector.shape_cast %226 : vector<160xf32> to vector<160x1xf32>
    %228 = vector.broadcast %227 : vector<160x1xf32> to vector<160x128xf32>
    %229 = arith.subf %225, %228 : vector<160x128xf32>
    %230 = math.exp %229 : vector<160x128xf32>
    %cst_251 = arith.constant dense<0.000000e+00> : vector<160xf32>
    %231 = vector.multi_reduction <add>, %230, %cst_251 [1] : vector<160x128xf32> to vector<160xf32>
    %232 = vector.shape_cast %231 : vector<160xf32> to vector<160x1xf32>
    %233 = math.log %232 : vector<160x1xf32>
    %234 = vector.broadcast %233 : vector<160x1xf32> to vector<160x128xf32>
    %235 = arith.subf %229, %234 : vector<160x128xf32>
    %236 = vector.shape_cast %235 : vector<160x128xf32> to vector<20x8x128xf32>
    %c0_252 = arith.constant 0 : index
    %c0_253 = arith.constant 0 : index
    %c0_254 = arith.constant 0 : index
    %237 = vector.load %arg8[%c0_252, %c0_253, %c0_254] : memref<20x8x128xf32, #tpu.memory_space<vmem>>, vector<20x8x128xf32>
    tpu.vector_store %arg8[%c0_252, %c0_253, %c0_254], %236 {strides = array<i32>} : memref<20x8x128xf32, #tpu.memory_space<vmem>>, vector<20x8x128xf32>,
    return
  }
}

</mosaic_0001>

<llo_original>
// kernel: tpu_custom_call.1
$region0: #{tpu_custom_call.1}
  #allocation0 [shape = 'u32[]', space=smem, size = 0x4, offset = 0x4, fixed_abs, tag = 'smem constant byte address 0x4 - core index']
  #allocation1 [shape = 'u32[144,128]{1,0:T(1,128)}', space=vmem, size = 0x12000, scoped, tag = 'internal scratch']
  #allocation2 [shape = 'f32[21,8,32]{2,1,0:T(8,128)}', space=vmem, size = 0x15000, scoped, tag = 'scratch operand']
  #allocation3 [shape = 'f32[20,8,32]{2,1,0:T(8,128)}', space=vmem, size = 0x14000, scoped, tag = 'scratch operand']
  %s0 = inlined_call_operand.vmem [shape: f32[20,8,16], index: 0, kind: input, shape index: {}]
  %s1 = inlined_call_operand.vmem [shape: f32[8,32], index: 1, kind: input, shape index: {}]
  %s2 = inlined_call_operand.vmem [shape: f32[16,32], index: 2, kind: input, shape index: {}]
  %s3 = inlined_call_operand.vmem [shape: f32[32,32], index: 3, kind: input, shape index: {}]
  %s4 = inlined_call_operand.vmem [shape: f32[1,32], index: 4, kind: input, shape index: {}]
  %s5 = inlined_call_operand.vmem [shape: f32[16,128], index: 5, kind: input, shape index: {}]
  %s6 = inlined_call_operand.vmem [shape: f32[32,128], index: 6, kind: input, shape index: {}]
  %s7 = inlined_call_operand.vmem [shape: f32[1,128], index: 7, kind: input, shape index: {}]
  %s8 = inlined_call_operand.hbm [shape: f32[20,8,128], index: 8, kind: output, shape index: {0}]
  %s9 = inlined_call_operand.hbm [shape: f32[8,32], index: 9, kind: output, shape index: {1}]
  %10 = xla_tuple %s8, %s9
  %s11 = sld [smem:[#allocation0]]
  $region50: #{tpu_custom_call.1} parent=0
    _
  %s13 = ssub.s32 1, %s11
  %s14 = scalar_select 0, %s13, %s11
  $region1: #{tpu_custom_call.1} parent=0
    #allocation4 [shape = 'u8[81920]{0}', space=vmem, size = 0x14000, scoped, tag = 'output window, operand 0, single buffered']
    #allocation5 [shape = 's32[1]{0}', space=sflag, size = 0x4, scoped, tag = 'scoped memory for tpu_custom_call.1']
    #allocation6 [shape = 'u8[4096]{0}', space=vmem, size = 0x1000, scoped, tag = 'output window, operand 1, single buffered']
    #allocation7 [shape = 's32[1]{0}', space=sflag, size = 0x4, scoped, tag = 'scoped memory for tpu_custom_call.1']
    %15 = vsyncpa [#allocation5], 0
    %16 = vsyncpa [#allocation7], 0
    // Predicated region
    $region2: #{tpu_custom_call.1} parent=1 // pred_check
      _
    $region3: #{tpu_custom_call.1} parent=1 // pred_check_branch
      %18 = sbr.rel (0) target = $region5
    $region4: #{tpu_custom_call.1} parent=1 // pred_region
      _
    $region5: #{tpu_custom_call.1} parent=1 // pred_fallthru
      _
    // Predicated region
    $region6: #{tpu_custom_call.1} parent=1 // pred_check
      _
    $region7: #{tpu_custom_call.1} parent=1 // pred_check_branch
      %20 = sbr.rel (0) target = $region9
    $region8: #{tpu_custom_call.1} parent=1 // pred_region
      _
    $region9: #{tpu_custom_call.1} parent=1 // pred_fallthru
      _
    // Predicated region
    $region10: #{tpu_custom_call.1} parent=1 // pred_check
      _
    $region11: #{tpu_custom_call.1} parent=1 // pred_check_branch
      %22 = sbr.rel (0) target = $region13
    $region12: #{tpu_custom_call.1} parent=1 // pred_region
      _
    $region13: #{tpu_custom_call.1} parent=1 // pred_fallthru
      _
    // Predicated region
    $region14: #{tpu_custom_call.1} parent=1 // pred_check
      _
    $region15: #{tpu_custom_call.1} parent=1 // pred_check_branch
      %24 = sbr.rel (0) target = $region17
    $region16: #{tpu_custom_call.1} parent=1 // pred_region
      _
    $region17: #{tpu_custom_call.1} parent=1 // pred_fallthru
      _
    // Predicated region
    $region18: #{tpu_custom_call.1} parent=1 // pred_check
      _
    $region19: #{tpu_custom_call.1} parent=1 // pred_check_branch
      %26 = sbr.rel (0) target = $region21
    $region20: #{tpu_custom_call.1} parent=1 // pred_region
      _
    $region21: #{tpu_custom_call.1} parent=1 // pred_fallthru
      _
    // Predicated region
    $region22: #{tpu_custom_call.1} parent=1 // pred_check
      _
    $region23: #{tpu_custom_call.1} parent=1 // pred_check_branch
      %28 = sbr.rel (0) target = $region25
    $region24: #{tpu_custom_call.1} parent=1 // pred_region
      _
    $region25: #{tpu_custom_call.1} parent=1 // pred_fallthru
      _
    // Predicated region
    $region26: #{tpu_custom_call.1} parent=1 // pred_check
      _
    $region27: #{tpu_custom_call.1} parent=1 // pred_check_branch
      %30 = sbr.rel (0) target = $region29
    $region28: #{tpu_custom_call.1} parent=1 // pred_region
      _
    $region29: #{tpu_custom_call.1} parent=1 // pred_fallthru
      _
    // Predicated region
    $region30: #{tpu_custom_call.1} parent=1 // pred_check
      _
    $region31: #{tpu_custom_call.1} parent=1 // pred_check_branch
      %32 = sbr.rel (0) target = $region33
    $region32: #{tpu_custom_call.1} parent=1 // pred_region
      _
    $region33: #{tpu_custom_call.1} parent=1 // pred_fallthru
      _
    %v33 = vld [vmem:[%s0] sm:$0xff]
    %v34 = vld [vmem:[%s0 + $0x8] sm:$0xff]
    %v35 = vld [vmem:[%s0 + $0x10] sm:$0xff]
    %v36 = vld [vmem:[%s0 + $0x18] sm:$0xff]
    %v37 = vld [vmem:[%s0 + $0x20] sm:$0xff]
    %v38 = vld [vmem:[%s0 + $0x28] sm:$0xff]
    %v39 = vld [vmem:[%s0 + $0x30] sm:$0xff]
    %v40 = vld [vmem:[%s0 + $0x38] sm:$0xff]
    %v41 = vld [vmem:[%s0 + $0x40] sm:$0xff]
    %v42 = vld [vmem:[%s0 + $0x48] sm:$0xff]
    %v43 = vld [vmem:[%s0 + $0x50] sm:$0xff]
    %v44 = vld [vmem:[%s0 + $0x58] sm:$0xff]
    %v45 = vld [vmem:[%s0 + $0x60] sm:$0xff]
    %v46 = vld [vmem:[%s0 + $0x68] sm:$0xff]
    %v47 = vld [vmem:[%s0 + $0x70] sm:$0xff]
    %v48 = vld [vmem:[%s0 + $0x78] sm:$0xff]
    %v49 = vld [vmem:[%s0 + $0x80] sm:$0xff]
    %v50 = vld [vmem:[%s0 + $0x88] sm:$0xff]
    %v51 = vld [vmem:[%s0 + $0x90] sm:$0xff]
    %v52 = vld [vmem:[%s0 + $0x98] sm:$0xff]
    %v53 = vld [vmem:[%s2] sm:$0xff]
    %v54 = vld [vmem:[%s2 + $0x8] sm:$0xff]
    %v55 = vld [vmem:[%s4] sm:$0x1]
    %v57 = vlaneseq
    %v58 = vshrl.u32 %v57, 7
    %v59 = vsub.s32 0, %v58
    %v60 = vrot.slane %v55, %v59
    %vm62 = vcmask 130048
    %v64 = vsel %vm62, %v33, 0
    %v67 = vsel %vm62, %v34, 0
    %v70 = vsel %vm62, %v35, 0
    %v73 = vsel %vm62, %v36, 0
    %v76 = vsel %vm62, %v37, 0
    %v79 = vsel %vm62, %v38, 0
    %v82 = vsel %vm62, %v39, 0
    %v85 = vsel %vm62, %v40, 0
    %v88 = vsel %vm62, %v41, 0
    %v91 = vsel %vm62, %v42, 0
    %v94 = vsel %vm62, %v43, 0
    %v97 = vsel %vm62, %v44, 0
    %v100 = vsel %vm62, %v45, 0
    %v103 = vsel %vm62, %v46, 0
    %v106 = vsel %vm62, %v47, 0
    %v109 = vsel %vm62, %v48, 0
    %v112 = vsel %vm62, %v49, 0
    %v115 = vsel %vm62, %v50, 0
    %v118 = vsel %vm62, %v51, 0
    %v121 = vsel %vm62, %v52, 0
    %123 = vmatprep.subr.mxu0 0.0
    %124 = vmatpush1.msra.mxu0 0.0
    %125 = vmatprep.subr.mxu0 0.0
    %126 = vmatpush1.msra.mxu0 0.0
    %127 = vmatprep.subr.mxu0 0.0
    %128 = vmatpush1.msra.mxu0 0.0
    %129 = vmatprep.subr.mxu0 0.0
    %130 = vmatpush1.msra.mxu0 0.0
    %131 = vmatprep.subr.mxu0 0.0
    %132 = vmatpush1.msra.mxu0 0.0
    %133 = vmatprep.subr.mxu0 0.0
    %134 = vmatpush1.msra.mxu0 0.0
    %135 = vmatprep.subr.mxu0 0.0
    %136 = vmatpush1.msra.mxu0 0.0
    %137 = vmatprep.subr.mxu0 0.0
    %138 = vmatpush1.msra.mxu0 0.0
    %139 = vmatprep.subr.mxu0 0.0
    %140 = vmatpush1.msra.mxu0 0.0
    %141 = vmatprep.subr.mxu0 0.0
    %142 = vmatpush1.msra.mxu0 0.0
    %143 = vmatprep.subr.mxu0 0.0
    %144 = vmatpush1.msra.mxu0 0.0
    %145 = vmatprep.subr.mxu0 0.0
    %146 = vmatpush1.msra.mxu0 0.0
    %147 = vmatprep.subr.mxu0 0.0
    %148 = vmatpush1.msra.mxu0 0.0
    %149 = vmatprep.subr.mxu0 0.0
    %150 = vmatpush1.msra.mxu0 0.0
    %151 = vmatprep.subr.mxu0 0.0
    %152 = vmatpush1.msra.mxu0 %v54
    %153 = vmatprep.subr.mxu0 0.0
    %154 = vmatpush1.msra.mxu0 %v53
    %155 = vmatprep.subr.mxu0 0.0
    %156 = vmatpush2.msra.mxu0 0.0
    %157 = vmatprep.subr.mxu0 0.0
    %158 = vmatpush2.msra.mxu0 0.0
    %159 = vmatprep.subr.mxu0 0.0
    %160 = vmatpush2.msra.mxu0 0.0
    %161 = vmatprep.subr.mxu0 0.0
    %162 = vmatpush2.msra.mxu0 0.0
    %163 = vmatprep.subr.mxu0 0.0
    %164 = vmatpush2.msra.mxu0 0.0
    %165 = vmatprep.subr.mxu0 0.0
    %166 = vmatpush2.msra.mxu0 0.0
    %167 = vmatprep.subr.mxu0 0.0
    %168 = vmatpush2.msra.mxu0 0.0
    %169 = vmatprep.subr.mxu0 0.0
    %170 = vmatpush2.msra.mxu0 0.0
    %171 = vmatprep.subr.mxu0 0.0
    %172 = vmatpush2.msra.mxu0 0.0
    %173 = vmatprep.subr.mxu0 0.0
    %174 = vmatpush2.msra.mxu0 0.0
    %175 = vmatprep.subr.mxu0 0.0
    %176 = vmatpush2.msra.mxu0 0.0
    %177 = vmatprep.subr.mxu0 0.0
    %178 = vmatpush2.msra.mxu0 0.0
    %179 = vmatprep.subr.mxu0 0.0
    %180 = vmatpush2.msra.mxu0 0.0
    %181 = vmatprep.subr.mxu0 0.0
    %182 = vmatpush2.msra.mxu0 0.0
    %183 = vmatprep.subr.mxu0 0.0
    %184 = vmatpush2.msra.mxu0 0.0
    %185 = vmatprep.subr.mxu0 0.0
    %186 = vmatpush2.msra.mxu0 0.0
    %187 = vmatprep.mubr.f32.mxu0 0.0
    %188 = vmatmul.mubr.f32.gmra.mxu0 %v64
    %v189 = vpop.f32.mrf.mxu0
    %v190 = vadd.f32 %v60, %v189
    %v191 = vpop.f32.mrf.mxu0
    %192 = vmatprep.mubr.f32.mxu0 0.0
    %193 = vmatmul.mubr.f32.gmra.mxu0 %v67
    %v194 = vpop.f32.mrf.mxu0
    %v195 = vadd.f32 %v60, %v194
    %v196 = vpop.f32.mrf.mxu0
    %197 = vmatprep.mubr.f32.mxu0 0.0
    %198 = vmatmul.mubr.f32.gmra.mxu0 %v70
    %v199 = vpop.f32.mrf.mxu0
    %v200 = vadd.f32 %v60, %v199
    %v201 = vpop.f32.mrf.mxu0
    %202 = vmatprep.mubr.f32.mxu0 0.0
    %203 = vmatmul.mubr.f32.gmra.mxu0 %v73
    %v204 = vpop.f32.mrf.mxu0
    %v205 = vadd.f32 %v60, %v204
    %v206 = vpop.f32.mrf.mxu0
    %207 = vmatprep.mubr.f32.mxu0 0.0
    %208 = vmatmul.mubr.f32.gmra.mxu0 %v76
    %v209 = vpop.f32.mrf.mxu0
    %v210 = vadd.f32 %v60, %v209
    %v211 = vpop.f32.mrf.mxu0
    %212 = vmatprep.mubr.f32.mxu0 0.0
    %213 = vmatmul.mubr.f32.gmra.mxu0 %v79
    %v214 = vpop.f32.mrf.mxu0
    %v215 = vadd.f32 %v60, %v214
    %v216 = vpop.f32.mrf.mxu0
    %217 = vmatprep.mubr.f32.mxu0 0.0
    %218 = vmatmul.mubr.f32.gmra.mxu0 %v82
    %v219 = vpop.f32.mrf.mxu0
    %v220 = vadd.f32 %v60, %v219
    %v221 = vpop.f32.mrf.mxu0
    %222 = vmatprep.mubr.f32.mxu0 0.0
    %223 = vmatmul.mubr.f32.gmra.mxu0 %v85
    %v224 = vpop.f32.mrf.mxu0
    %v225 = vadd.f32 %v60, %v224
    %v226 = vpop.f32.mrf.mxu0
    %227 = vmatprep.mubr.f32.mxu0 0.0
    %228 = vmatmul.mubr.f32.gmra.mxu0 %v88
    %v229 = vpop.f32.mrf.mxu0
    %v230 = vadd.f32 %v60, %v229
    %v231 = vpop.f32.mrf.mxu0
    %232 = vmatprep.mubr.f32.mxu0 0.0
    %233 = vmatmul.mubr.f32.gmra.mxu0 %v91
    %v234 = vpop.f32.mrf.mxu0
    %v235 = vadd.f32 %v60, %v234
    %v236 = vpop.f32.mrf.mxu0
    %237 = vmatprep.mubr.f32.mxu0 0.0
    %238 = vmatmul.mubr.f32.gmra.mxu0 %v94
    %v239 = vpop.f32.mrf.mxu0
    %v240 = vadd.f32 %v60, %v239
    %v241 = vpop.f32.mrf.mxu0
    %242 = vmatprep.mubr.f32.mxu0 0.0
    %243 = vmatmul.mubr.f32.gmra.mxu0 %v97
    %v244 = vpop.f32.mrf.mxu0
    %v245 = vadd.f32 %v60, %v244
    %v246 = vpop.f32.mrf.mxu0
    %247 = vmatprep.mubr.f32.mxu0 0.0
    %248 = vmatmul.mubr.f32.gmra.mxu0 %v100
    %v249 = vpop.f32.mrf.mxu0
    %v250 = vadd.f32 %v60, %v249
    %v251 = vpop.f32.mrf.mxu0
    %252 = vmatprep.mubr.f32.mxu0 0.0
    %253 = vmatmul.mubr.f32.gmra.mxu0 %v103
    %v254 = vpop.f32.mrf.mxu0
    %v255 = vadd.f32 %v60, %v254
    %v256 = vpop.f32.mrf.mxu0
    %257 = vmatprep.mubr.f32.mxu0 0.0
    %258 = vmatmul.mubr.f32.gmra.mxu0 %v106
    %v259 = vpop.f32.mrf.mxu0
    %v260 = vadd.f32 %v60, %v259
    %v261 = vpop.f32.mrf.mxu0
    %262 = vmatprep.mubr.f32.mxu0 0.0
    %263 = vmatmul.mubr.f32.gmra.mxu0 %v109
    %v264 = vpop.f32.mrf.mxu0
    %v265 = vadd.f32 %v60, %v264
    %v266 = vpop.f32.mrf.mxu0
    %267 = vmatprep.mubr.f32.mxu0 0.0
    %268 = vmatmul.mubr.f32.gmra.mxu0 %v112
    %v269 = vpop.f32.mrf.mxu0
    %v270 = vadd.f32 %v60, %v269
    %v271 = vpop.f32.mrf.mxu0
    %272 = vmatprep.mubr.f32.mxu0 0.0
    %273 = vmatmul.mubr.f32.gmra.mxu0 %v115
    %v274 = vpop.f32.mrf.mxu0
    %v275 = vadd.f32 %v60, %v274
    %v276 = vpop.f32.mrf.mxu0
    %277 = vmatprep.mubr.f32.mxu0 0.0
    %278 = vmatmul.mubr.f32.gmra.mxu0 %v118
    %v279 = vpop.f32.mrf.mxu0
    %v280 = vadd.f32 %v60, %v279
    %v281 = vpop.f32.mrf.mxu0
    %282 = vmatprep.mubr.f32.mxu0 0.0
    %283 = vmatmul.mubr.f32.gmra.mxu0 %v121
    %v284 = vpop.f32.mrf.mxu0
    %v285 = vadd.f32 %v60, %v284
    %v286 = vpop.f32.mrf.mxu0
    %287 = vdwg.mxu0
    %vm288 = vcmask 261120
    %289 = vst.msk [vmem:[#allocation3] sm:$0xff] %vm288, %v190
    %290 = vst.msk [vmem:[#allocation3 + $0x8] sm:$0xff] %vm288, %v195
    %291 = vst.msk [vmem:[#allocation3 + $0x10] sm:$0xff] %vm288, %v200
    %292 = vst.msk [vmem:[#allocation3 + $0x18] sm:$0xff] %vm288, %v205
    %293 = vst.msk [vmem:[#allocation3 + $0x20] sm:$0xff] %vm288, %v210
    %294 = vst.msk [vmem:[#allocation3 + $0x28] sm:$0xff] %vm288, %v215
    %295 = vst.msk [vmem:[#allocation3 + $0x30] sm:$0xff] %vm288, %v220
    %296 = vst.msk [vmem:[#allocation3 + $0x38] sm:$0xff] %vm288, %v225
    %297 = vst.msk [vmem:[#allocation3 + $0x40] sm:$0xff] %vm288, %v230
    %298 = vst.msk [vmem:[#allocation3 + $0x48] sm:$0xff] %vm288, %v235
    %299 = vst.msk [vmem:[#allocation3 + $0x50] sm:$0xff] %vm288, %v240
    %300 = vst.msk [vmem:[#allocation3 + $0x58] sm:$0xff] %vm288, %v245
    %301 = vst.msk [vmem:[#allocation3 + $0x60] sm:$0xff] %vm288, %v250
    %302 = vst.msk [vmem:[#allocation3 + $0x68] sm:$0xff] %vm288, %v255
    %303 = vst.msk [vmem:[#allocation3 + $0x70] sm:$0xff] %vm288, %v260
    %304 = vst.msk [vmem:[#allocation3 + $0x78] sm:$0xff] %vm288, %v265
    %305 = vst.msk [vmem:[#allocation3 + $0x80] sm:$0xff] %vm288, %v270
    %306 = vst.msk [vmem:[#allocation3 + $0x88] sm:$0xff] %vm288, %v275
    %307 = vst.msk [vmem:[#allocation3 + $0x90] sm:$0xff] %vm288, %v280
    %308 = vst.msk [vmem:[#allocation3 + $0x98] sm:$0xff] %vm288, %v285
    %v309 = vld [vmem:[%s1] sm:$0xff]
    %310 = vst.msk [vmem:[#allocation2] sm:$0xff] %vm288, %v309
    %v311 = vld [vmem:[#allocation3] sm:$0xff]
    %v312 = vld [vmem:[#allocation2] sm:$0xff]
    %v313 = vld [vmem:[%s3] sm:$0xff]
    %v314 = vld [vmem:[%s3 + $0x8] sm:$0xff]
    %v315 = vld [vmem:[%s3 + $0x10] sm:$0xff]
    %v316 = vld [vmem:[%s3 + $0x18] sm:$0xff]
    %v318 = vsel %vm288, %v312, 0
    %320 = vmatprep.subr.mxu0 0.0
    %321 = vmatpush1.msra.mxu0 0.0
    %322 = vmatprep.subr.mxu0 0.0
    %323 = vmatpush1.msra.mxu0 0.0
    %324 = vmatprep.subr.mxu0 0.0
    %325 = vmatpush1.msra.mxu0 0.0
    %326 = vmatprep.subr.mxu0 0.0
    %327 = vmatpush1.msra.mxu0 0.0
    %328 = vmatprep.subr.mxu0 0.0
    %329 = vmatpush1.msra.mxu0 0.0
    %330 = vmatprep.subr.mxu0 0.0
    %331 = vmatpush1.msra.mxu0 0.0
    %332 = vmatprep.subr.mxu0 0.0
    %333 = vmatpush1.msra.mxu0 0.0
    %334 = vmatprep.subr.mxu0 0.0
    %335 = vmatpush1.msra.mxu0 0.0
    %336 = vmatprep.subr.mxu0 0.0
    %337 = vmatpush1.msra.mxu0 0.0
    %338 = vmatprep.subr.mxu0 0.0
    %339 = vmatpush1.msra.mxu0 0.0
    %340 = vmatprep.subr.mxu0 0.0
    %341 = vmatpush1.msra.mxu0 0.0
    %342 = vmatprep.subr.mxu0 0.0
    %343 = vmatpush1.msra.mxu0 0.0
    %344 = vmatprep.subr.mxu0 0.0
    %345 = vmatpush1.msra.mxu0 %v316
    %346 = vmatprep.subr.mxu0 0.0
    %347 = vmatpush1.msra.mxu0 %v315
    %348 = vmatprep.subr.mxu0 0.0
    %349 = vmatpush1.msra.mxu0 %v314
    %350 = vmatprep.subr.mxu0 0.0
    %351 = vmatpush1.msra.mxu0 %v313
    %352 = vmatprep.subr.mxu0 0.0
    %353 = vmatpush2.msra.mxu0 0.0
    %354 = vmatprep.subr.mxu0 0.0
    %355 = vmatpush2.msra.mxu0 0.0
    %356 = vmatprep.subr.mxu0 0.0
    %357 = vmatpush2.msra.mxu0 0.0
    %358 = vmatprep.subr.mxu0 0.0
    %359 = vmatpush2.msra.mxu0 0.0
    %360 = vmatprep.subr.mxu0 0.0
    %361 = vmatpush2.msra.mxu0 0.0
    %362 = vmatprep.subr.mxu0 0.0
    %363 = vmatpush2.msra.mxu0 0.0
    %364 = vmatprep.subr.mxu0 0.0
    %365 = vmatpush2.msra.mxu0 0.0
    %366 = vmatprep.subr.mxu0 0.0
    %367 = vmatpush2.msra.mxu0 0.0
    %368 = vmatprep.subr.mxu0 0.0
    %369 = vmatpush2.msra.mxu0 0.0
    %370 = vmatprep.subr.mxu0 0.0
    %371 = vmatpush2.msra.mxu0 0.0
    %372 = vmatprep.subr.mxu0 0.0
    %373 = vmatpush2.msra.mxu0 0.0
    %374 = vmatprep.subr.mxu0 0.0
    %375 = vmatpush2.msra.mxu0 0.0
    %376 = vmatprep.subr.mxu0 0.0
    %377 = vmatpush2.msra.mxu0 0.0
    %378 = vmatprep.subr.mxu0 0.0
    %379 = vmatpush2.msra.mxu0 0.0
    %380 = vmatprep.subr.mxu0 0.0
    %381 = vmatpush2.msra.mxu0 0.0
    %382 = vmatprep.subr.mxu0 0.0
    %383 = vmatpush2.msra.mxu0 0.0
    %384 = vmatprep.mubr.f32.mxu0 0.0
    %385 = vmatmul.mubr.f32.gmra.mxu0 %v318
    %v386 = vpop.f32.mrf.mxu0
    %v387 = vadd.f32 0.0, %v386
    %v388 = vpop.f32.mrf.mxu0
    %389 = vdwg.mxu0
    %v390 = vadd.f32 %v311, %v387
    %s391 = scalar_lea.vmem [#allocation2], 8
    %392 = vst.msk [vmem:[%s391] sm:$0xff] %vm288, %v390
    %s393 = scalar_lea.vmem [#allocation3], 8
    %v394 = vld [vmem:[%s393] sm:$0xff]
    %v395 = vld [vmem:[%s391] sm:$0xff]
    %v396 = vld [vmem:[%s3] sm:$0xff]
    %v397 = vld [vmem:[%s3 + $0x8] sm:$0xff]
    %v398 = vld [vmem:[%s3 + $0x10] sm:$0xff]
    %v399 = vld [vmem:[%s3 + $0x18] sm:$0xff]
    %v401 = vsel %vm288, %v395, 0
    %403 = vmatprep.subr.mxu0 0.0
    %404 = vmatpush1.msra.mxu0 0.0
    %405 = vmatprep.subr.mxu0 0.0
    %406 = vmatpush1.msra.mxu0 0.0
    %407 = vmatprep.subr.mxu0 0.0
    %408 = vmatpush1.msra.mxu0 0.0
    %409 = vmatprep.subr.mxu0 0.0
    %410 = vmatpush1.msra.mxu0 0.0
    %411 = vmatprep.subr.mxu0 0.0
    %412 = vmatpush1.msra.mxu0 0.0
    %413 = vmatprep.subr.mxu0 0.0
    %414 = vmatpush1.msra.mxu0 0.0
    %415 = vmatprep.subr.mxu0 0.0
    %416 = vmatpush1.msra.mxu0 0.0
    %417 = vmatprep.subr.mxu0 0.0
    %418 = vmatpush1.msra.mxu0 0.0
    %419 = vmatprep.subr.mxu0 0.0
    %420 = vmatpush1.msra.mxu0 0.0
    %421 = vmatprep.subr.mxu0 0.0
    %422 = vmatpush1.msra.mxu0 0.0
    %423 = vmatprep.subr.mxu0 0.0
    %424 = vmatpush1.msra.mxu0 0.0
    %425 = vmatprep.subr.mxu0 0.0
    %426 = vmatpush1.msra.mxu0 0.0
    %427 = vmatprep.subr.mxu0 0.0
    %428 = vmatpush1.msra.mxu0 %v399
    %429 = vmatprep.subr.mxu0 0.0
    %430 = vmatpush1.msra.mxu0 %v398
    %431 = vmatprep.subr.mxu0 0.0
    %432 = vmatpush1.msra.mxu0 %v397
    %433 = vmatprep.subr.mxu0 0.0
    %434 = vmatpush1.msra.mxu0 %v396
    %435 = vmatprep.subr.mxu0 0.0
    %436 = vmatpush2.msra.mxu0 0.0
    %437 = vmatprep.subr.mxu0 0.0
    %438 = vmatpush2.msra.mxu0 0.0
    %439 = vmatprep.subr.mxu0 0.0
    %440 = vmatpush2.msra.mxu0 0.0
    %441 = vmatprep.subr.mxu0 0.0
    %442 = vmatpush2.msra.mxu0 0.0
    %443 = vmatprep.subr.mxu0 0.0
    %444 = vmatpush2.msra.mxu0 0.0
    %445 = vmatprep.subr.mxu0 0.0
    %446 = vmatpush2.msra.mxu0 0.0
    %447 = vmatprep.subr.mxu0 0.0
    %448 = vmatpush2.msra.mxu0 0.0
    %449 = vmatprep.subr.mxu0 0.0
    %450 = vmatpush2.msra.mxu0 0.0
    %451 = vmatprep.subr.mxu0 0.0
    %452 = vmatpush2.msra.mxu0 0.0
    %453 = vmatprep.subr.mxu0 0.0
    %454 = vmatpush2.msra.mxu0 0.0
    %455 = vmatprep.subr.mxu0 0.0
    %456 = vmatpush2.msra.mxu0 0.0
    %457 = vmatprep.subr.mxu0 0.0
    %458 = vmatpush2.msra.mxu0 0.0
    %459 = vmatprep.subr.mxu0 0.0
    %460 = vmatpush2.msra.mxu0 0.0
    %461 = vmatprep.subr.mxu0 0.0
    %462 = vmatpush2.msra.mxu0 0.0
    %463 = vmatprep.subr.mxu0 0.0
    %464 = vmatpush2.msra.mxu0 0.0
    %465 = vmatprep.subr.mxu0 0.0
    %466 = vmatpush2.msra.mxu0 0.0
    %467 = vmatprep.mubr.f32.mxu0 0.0
    %468 = vmatmul.mubr.f32.gmra.mxu0 %v401
    %v469 = vpop.f32.mrf.mxu0
    %v470 = vadd.f32 0.0, %v469
    %v471 = vpop.f32.mrf.mxu0
    %472 = vdwg.mxu0
    %v473 = vadd.f32 %v394, %v470
    %s474 = scalar_lea.vmem [#allocation2], 16
    %475 = vst.msk [vmem:[%s474] sm:$0xff] %vm288, %v473
    %s476 = scalar_lea.vmem [#allocation3], 16
    %v477 = vld [vmem:[%s476] sm:$0xff]
    %v478 = vld [vmem:[%s474] sm:$0xff]
    %v479 = vld [vmem:[%s3] sm:$0xff]
    %v480 = vld [vmem:[%s3 + $0x8] sm:$0xff]
    %v481 = vld [vmem:[%s3 + $0x10] sm:$0xff]
    %v482 = vld [vmem:[%s3 + $0x18] sm:$0xff]
    %v484 = vsel %vm288, %v478, 0
    %486 = vmatprep.subr.mxu0 0.0
    %487 = vmatpush1.msra.mxu0 0.0
    %488 = vmatprep.subr.mxu0 0.0
    %489 = vmatpush1.msra.mxu0 0.0
    %490 = vmatprep.subr.mxu0 0.0
    %491 = vmatpush1.msra.mxu0 0.0
    %492 = vmatprep.subr.mxu0 0.0
    %493 = vmatpush1.msra.mxu0 0.0
    %494 = vmatprep.subr.mxu0 0.0
    %495 = vmatpush1.msra.mxu0 0.0
    %496 = vmatprep.subr.mxu0 0.0
    %497 = vmatpush1.msra.mxu0 0.0
    %498 = vmatprep.subr.mxu0 0.0
    %499 = vmatpush1.msra.mxu0 0.0
    %500 = vmatprep.subr.mxu0 0.0
    %501 = vmatpush1.msra.mxu0 0.0
    %502 = vmatprep.subr.mxu0 0.0
    %503 = vmatpush1.msra.mxu0 0.0
    %504 = vmatprep.subr.mxu0 0.0
    %505 = vmatpush1.msra.mxu0 0.0
    %506 = vmatprep.subr.mxu0 0.0
    %507 = vmatpush1.msra.mxu0 0.0
    %508 = vmatprep.subr.mxu0 0.0
    %509 = vmatpush1.msra.mxu0 0.0
    %510 = vmatprep.subr.mxu0 0.0
    %511 = vmatpush1.msra.mxu0 %v482
    %512 = vmatprep.subr.mxu0 0.0
    %513 = vmatpush1.msra.mxu0 %v481
    %514 = vmatprep.subr.mxu0 0.0
    %515 = vmatpush1.msra.mxu0 %v480
    %516 = vmatprep.subr.mxu0 0.0
    %517 = vmatpush1.msra.mxu0 %v479
    %518 = vmatprep.subr.mxu0 0.0
    %519 = vmatpush2.msra.mxu0 0.0
    %520 = vmatprep.subr.mxu0 0.0
    %521 = vmatpush2.msra.mxu0 0.0
    %522 = vmatprep.subr.mxu0 0.0
    %523 = vmatpush2.msra.mxu0 0.0
    %524 = vmatprep.subr.mxu0 0.0
    %525 = vmatpush2.msra.mxu0 0.0
    %526 = vmatprep.subr.mxu0 0.0
    %527 = vmatpush2.msra.mxu0 0.0
    %528 = vmatprep.subr.mxu0 0.0
    %529 = vmatpush2.msra.mxu0 0.0
    %530 = vmatprep.subr.mxu0 0.0
    %531 = vmatpush2.msra.mxu0 0.0
    %532 = vmatprep.subr.mxu0 0.0
    %533 = vmatpush2.msra.mxu0 0.0
    %534 = vmatprep.subr.mxu0 0.0
    %535 = vmatpush2.msra.mxu0 0.0
    %536 = vmatprep.subr.mxu0 0.0
    %537 = vmatpush2.msra.mxu0 0.0
    %538 = vmatprep.subr.mxu0 0.0
    %539 = vmatpush2.msra.mxu0 0.0
    %540 = vmatprep.subr.mxu0 0.0
    %541 = vmatpush2.msra.mxu0 0.0
    %542 = vmatprep.subr.mxu0 0.0
    %543 = vmatpush2.msra.mxu0 0.0
    %544 = vmatprep.subr.mxu0 0.0
    %545 = vmatpush2.msra.mxu0 0.0
    %546 = vmatprep.subr.mxu0 0.0
    %547 = vmatpush2.msra.mxu0 0.0
    %548 = vmatprep.subr.mxu0 0.0
    %549 = vmatpush2.msra.mxu0 0.0
    %550 = vmatprep.mubr.f32.mxu0 0.0
    %551 = vmatmul.mubr.f32.gmra.mxu0 %v484
    %v552 = vpop.f32.mrf.mxu0
    %v553 = vadd.f32 0.0, %v552
    %v554 = vpop.f32.mrf.mxu0
    %555 = vdwg.mxu0
    %v556 = vadd.f32 %v477, %v553
    %s557 = scalar_lea.vmem [#allocation2], 24
    %558 = vst.msk [vmem:[%s557] sm:$0xff] %vm288, %v556
    %s559 = scalar_lea.vmem [#allocation3], 24
    %v560 = vld [vmem:[%s559] sm:$0xff]
    %v561 = vld [vmem:[%s557] sm:$0xff]
    %v562 = vld [vmem:[%s3] sm:$0xff]
    %v563 = vld [vmem:[%s3 + $0x8] sm:$0xff]
    %v564 = vld [vmem:[%s3 + $0x10] sm:$0xff]
    %v565 = vld [vmem:[%s3 + $0x18] sm:$0xff]
    %v567 = vsel %vm288, %v561, 0
    %569 = vmatprep.subr.mxu0 0.0
    %570 = vmatpush1.msra.mxu0 0.0
    %571 = vmatprep.subr.mxu0 0.0
    %572 = vmatpush1.msra.mxu0 0.0
    %573 = vmatprep.subr.mxu0 0.0
    %574 = vmatpush1.msra.mxu0 0.0
    %575 = vmatprep.subr.mxu0 0.0
    %576 = vmatpush1.msra.mxu0 0.0
    %577 = vmatprep.subr.mxu0 0.0
    %578 = vmatpush1.msra.mxu0 0.0
    %579 = vmatprep.subr.mxu0 0.0
    %580 = vmatpush1.msra.mxu0 0.0
    %581 = vmatprep.subr.mxu0 0.0
    %582 = vmatpush1.msra.mxu0 0.0
    %583 = vmatprep.subr.mxu0 0.0
    %584 = vmatpush1.msra.mxu0 0.0
    %585 = vmatprep.subr.mxu0 0.0
    %586 = vmatpush1.msra.mxu0 0.0
    %587 = vmatprep.subr.mxu0 0.0
    %588 = vmatpush1.msra.mxu0 0.0
    %589 = vmatprep.subr.mxu0 0.0
    %590 = vmatpush1.msra.mxu0 0.0
    %591 = vmatprep.subr.mxu0 0.0
    %592 = vmatpush1.msra.mxu0 0.0
    %593 = vmatprep.subr.mxu0 0.0
    %594 = vmatpush1.msra.mxu0 %v565
    %595 = vmatprep.subr.mxu0 0.0
    %596 = vmatpush1.msra.mxu0 %v564
    %597 = vmatprep.subr.mxu0 0.0
    %598 = vmatpush1.msra.mxu0 %v563
    %599 = vmatprep.subr.mxu0 0.0
    %600 = vmatpush1.msra.mxu0 %v562
    %601 = vmatprep.subr.mxu0 0.0
    %602 = vmatpush2.msra.mxu0 0.0
    %603 = vmatprep.subr.mxu0 0.0
    %604 = vmatpush2.msra.mxu0 0.0
    %605 = vmatprep.subr.mxu0 0.0
    %606 = vmatpush2.msra.mxu0 0.0
    %607 = vmatprep.subr.mxu0 0.0
    %608 = vmatpush2.msra.mxu0 0.0
    %609 = vmatprep.subr.mxu0 0.0
    %610 = vmatpush2.msra.mxu0 0.0
    %611 = vmatprep.subr.mxu0 0.0
    %612 = vmatpush2.msra.mxu0 0.0
    %613 = vmatprep.subr.mxu0 0.0
    %614 = vmatpush2.msra.mxu0 0.0
    %615 = vmatprep.subr.mxu0 0.0
    %616 = vmatpush2.msra.mxu0 0.0
    %617 = vmatprep.subr.mxu0 0.0
    %618 = vmatpush2.msra.mxu0 0.0
    %619 = vmatprep.subr.mxu0 0.0
    %620 = vmatpush2.msra.mxu0 0.0
    %621 = vmatprep.subr.mxu0 0.0
    %622 = vmatpush2.msra.mxu0 0.0
    %623 = vmatprep.subr.mxu0 0.0
    %624 = vmatpush2.msra.mxu0 0.0
    %625 = vmatprep.subr.mxu0 0.0
    %626 = vmatpush2.msra.mxu0 0.0
    %627 = vmatprep.subr.mxu0 0.0
    %628 = vmatpush2.msra.mxu0 0.0
    %629 = vmatprep.subr.mxu0 0.0
    %630 = vmatpush2.msra.mxu0 0.0
    %631 = vmatprep.subr.mxu0 0.0
    %632 = vmatpush2.msra.mxu0 0.0
    %633 = vmatprep.mubr.f32.mxu0 0.0
    %634 = vmatmul.mubr.f32.gmra.mxu0 %v567
    %v635 = vpop.f32.mrf.mxu0
    %v636 = vadd.f32 0.0, %v635
    %v637 = vpop.f32.mrf.mxu0
    %638 = vdwg.mxu0
    %v639 = vadd.f32 %v560, %v636
    %s640 = scalar_lea.vmem [#allocation2], 32
    %641 = vst.msk [vmem:[%s640] sm:$0xff] %vm288, %v639
    %s642 = scalar_lea.vmem [#allocation3], 32
    %v643 = vld [vmem:[%s642] sm:$0xff]
    %v644 = vld [vmem:[%s640] sm:$0xff]
    %v645 = vld [vmem:[%s3] sm:$0xff]
    %v646 = vld [vmem:[%s3 + $0x8] sm:$0xff]
    %v647 = vld [vmem:[%s3 + $0x10] sm:$0xff]
    %v648 = vld [vmem:[%s3 + $0x18] sm:$0xff]
    %v650 = vsel %vm288, %v644, 0
    %652 = vmatprep.subr.mxu0 0.0
    %653 = vmatpush1.msra.mxu0 0.0
    %654 = vmatprep.subr.mxu0 0.0
    %655 = vmatpush1.msra.mxu0 0.0
    %656 = vmatprep.subr.mxu0 0.0
    %657 = vmatpush1.msra.mxu0 0.0
    %658 = vmatprep.subr.mxu0 0.0
    %659 = vmatpush1.msra.mxu0 0.0
    %660 = vmatprep.subr.mxu0 0.0
    %661 = vmatpush1.msra.mxu0 0.0
    %662 = vmatprep.subr.mxu0 0.0
    %663 = vmatpush1.msra.mxu0 0.0
    %664 = vmatprep.subr.mxu0 0.0
    %665 = vmatpush1.msra.mxu0 0.0
    %666 = vmatprep.subr.mxu0 0.0
    %667 = vmatpush1.msra.mxu0 0.0
    %668 = vmatprep.subr.mxu0 0.0
    %669 = vmatpush1.msra.mxu0 0.0
    %670 = vmatprep.subr.mxu0 0.0
    %671 = vmatpush1.msra.mxu0 0.0
    %672 = vmatprep.subr.mxu0 0.0
    %673 = vmatpush1.msra.mxu0 0.0
    %674 = vmatprep.subr.mxu0 0.0
    %675 = vmatpush1.msra.mxu0 0.0
    %676 = vmatprep.subr.mxu0 0.0
    %677 = vmatpush1.msra.mxu0 %v648
    %678 = vmatprep.subr.mxu0 0.0
    %679 = vmatpush1.msra.mxu0 %v647
    %680 = vmatprep.subr.mxu0 0.0
    %681 = vmatpush1.msra.mxu0 %v646
    %682 = vmatprep.subr.mxu0 0.0
    %683 = vmatpush1.msra.mxu0 %v645
    %684 = vmatprep.subr.mxu0 0.0
    %685 = vmatpush2.msra.mxu0 0.0
    %686 = vmatprep.subr.mxu0 0.0
    %687 = vmatpush2.msra.mxu0 0.0
    %688 = vmatprep.subr.mxu0 0.0
    %689 = vmatpush2.msra.mxu0 0.0
    %690 = vmatprep.subr.mxu0 0.0
    %691 = vmatpush2.msra.mxu0 0.0
    %692 = vmatprep.subr.mxu0 0.0
    %693 = vmatpush2.msra.mxu0 0.0
    %694 = vmatprep.subr.mxu0 0.0
    %695 = vmatpush2.msra.mxu0 0.0
    %696 = vmatprep.subr.mxu0 0.0
    %697 = vmatpush2.msra.mxu0 0.0
    %698 = vmatprep.subr.mxu0 0.0
    %699 = vmatpush2.msra.mxu0 0.0
    %700 = vmatprep.subr.mxu0 0.0
    %701 = vmatpush2.msra.mxu0 0.0
    %702 = vmatprep.subr.mxu0 0.0
    %703 = vmatpush2.msra.mxu0 0.0
    %704 = vmatprep.subr.mxu0 0.0
    %705 = vmatpush2.msra.mxu0 0.0
    %706 = vmatprep.subr.mxu0 0.0
    %707 = vmatpush2.msra.mxu0 0.0
    %708 = vmatprep.subr.mxu0 0.0
    %709 = vmatpush2.msra.mxu0 0.0
    %710 = vmatprep.subr.mxu0 0.0
    %711 = vmatpush2.msra.mxu0 0.0
    %712 = vmatprep.subr.mxu0 0.0
    %713 = vmatpush2.msra.mxu0 0.0
    %714 = vmatprep.subr.mxu0 0.0
    %715 = vmatpush2.msra.mxu0 0.0
    %716 = vmatprep.mubr.f32.mxu0 0.0
    %717 = vmatmul.mubr.f32.gmra.mxu0 %v650
    %v718 = vpop.f32.mrf.mxu0
    %v719 = vadd.f32 0.0, %v718
    %v720 = vpop.f32.mrf.mxu0
    %721 = vdwg.mxu0
    %v722 = vadd.f32 %v643, %v719
    %s723 = scalar_lea.vmem [#allocation2], 40
    %724 = vst.msk [vmem:[%s723] sm:$0xff] %vm288, %v722
    %s725 = scalar_lea.vmem [#allocation3], 40
    %v726 = vld [vmem:[%s725] sm:$0xff]
    %v727 = vld [vmem:[%s723] sm:$0xff]
    %v728 = vld [vmem:[%s3] sm:$0xff]
    %v729 = vld [vmem:[%s3 + $0x8] sm:$0xff]
    %v730 = vld [vmem:[%s3 + $0x10] sm:$0xff]
    %v731 = vld [vmem:[%s3 + $0x18] sm:$0xff]
    %v733 = vsel %vm288, %v727, 0
    %735 = vmatprep.subr.mxu0 0.0
    %736 = vmatpush1.msra.mxu0 0.0
    %737 = vmatprep.subr.mxu0 0.0
    %738 = vmatpush1.msra.mxu0 0.0
    %739 = vmatprep.subr.mxu0 0.0
    %740 = vmatpush1.msra.mxu0 0.0
    %741 = vmatprep.subr.mxu0 0.0
    %742 = vmatpush1.msra.mxu0 0.0
    %743 = vmatprep.subr.mxu0 0.0
    %744 = vmatpush1.msra.mxu0 0.0
    %745 = vmatprep.subr.mxu0 0.0
    %746 = vmatpush1.msra.mxu0 0.0
    %747 = vmatprep.subr.mxu0 0.0
    %748 = vmatpush1.msra.mxu0 0.0
    %749 = vmatprep.subr.mxu0 0.0
    %750 = vmatpush1.msra.mxu0 0.0
    %751 = vmatprep.subr.mxu0 0.0
    %752 = vmatpush1.msra.mxu0 0.0
    %753 = vmatprep.subr.mxu0 0.0
    %754 = vmatpush1.msra.mxu0 0.0
    %755 = vmatprep.subr.mxu0 0.0
    %756 = vmatpush1.msra.mxu0 0.0
    %757 = vmatprep.subr.mxu0 0.0
    %758 = vmatpush1.msra.mxu0 0.0
    %759 = vmatprep.subr.mxu0 0.0
    %760 = vmatpush1.msra.mxu0 %v731
    %761 = vmatprep.subr.mxu0 0.0
    %762 = vmatpush1.msra.mxu0 %v730
    %763 = vmatprep.subr.mxu0 0.0
    %764 = vmatpush1.msra.mxu0 %v729
    %765 = vmatprep.subr.mxu0 0.0
    %766 = vmatpush1.msra.mxu0 %v728
    %767 = vmatprep.subr.mxu0 0.0
    %768 = vmatpush2.msra.mxu0 0.0
    %769 = vmatprep.subr.mxu0 0.0
    %770 = vmatpush2.msra.mxu0 0.0
    %771 = vmatprep.subr.mxu0 0.0
    %772 = vmatpush2.msra.mxu0 0.0
    %773 = vmatprep.subr.mxu0 0.0
    %774 = vmatpush2.msra.mxu0 0.0
    %775 = vmatprep.subr.mxu0 0.0
    %776 = vmatpush2.msra.mxu0 0.0
    %777 = vmatprep.subr.mxu0 0.0
    %778 = vmatpush2.msra.mxu0 0.0
    %779 = vmatprep.subr.mxu0 0.0
    %780 = vmatpush2.msra.mxu0 0.0
    %781 = vmatprep.subr.mxu0 0.0
    %782 = vmatpush2.msra.mxu0 0.0
    %783 = vmatprep.subr.mxu0 0.0
    %784 = vmatpush2.msra.mxu0 0.0
    %785 = vmatprep.subr.mxu0 0.0
    %786 = vmatpush2.msra.mxu0 0.0
    %787 = vmatprep.subr.mxu0 0.0
    %788 = vmatpush2.msra.mxu0 0.0
    %789 = vmatprep.subr.mxu0 0.0
    %790 = vmatpush2.msra.mxu0 0.0
    %791 = vmatprep.subr.mxu0 0.0
    %792 = vmatpush2.msra.mxu0 0.0
    %793 = vmatprep.subr.mxu0 0.0
    %794 = vmatpush2.msra.mxu0 0.0
    %795 = vmatprep.subr.mxu0 0.0
    %796 = vmatpush2.msra.mxu0 0.0
    %797 = vmatprep.subr.mxu0 0.0
    %798 = vmatpush2.msra.mxu0 0.0
    %799 = vmatprep.mubr.f32.mxu0 0.0
    %800 = vmatmul.mubr.f32.gmra.mxu0 %v733
    %v801 = vpop.f32.mrf.mxu0
    %v802 = vadd.f32 0.0, %v801
    %v803 = vpop.f32.mrf.mxu0
    %804 = vdwg.mxu0
    %v805 = vadd.f32 %v726, %v802
    %s806 = scalar_lea.vmem [#allocation2], 48
    %807 = vst.msk [vmem:[%s806] sm:$0xff] %vm288, %v805
    %s808 = scalar_lea.vmem [#allocation3], 48
    %v809 = vld [vmem:[%s808] sm:$0xff]
    %v810 = vld [vmem:[%s806] sm:$0xff]
    %v811 = vld [vmem:[%s3] sm:$0xff]
    %v812 = vld [vmem:[%s3 + $0x8] sm:$0xff]
    %v813 = vld [vmem:[%s3 + $0x10] sm:$0xff]
    %v814 = vld [vmem:[%s3 + $0x18] sm:$0xff]
    %v816 = vsel %vm288, %v810, 0
    %818 = vmatprep.subr.mxu0 0.0
    %819 = vmatpush1.msra.mxu0 0.0
    %820 = vmatprep.subr.mxu0 0.0
    %821 = vmatpush1.msra.mxu0 0.0
    %822 = vmatprep.subr.mxu0 0.0
    %823 = vmatpush1.msra.mxu0 0.0
    %824 = vmatprep.subr.mxu0 0.0
    %825 = vmatpush1.msra.mxu0 0.0
    %826 = vmatprep.subr.mxu0 0.0
    %827 = vmatpush1.msra.mxu0 0.0
    %828 = vmatprep.subr.mxu0 0.0
    %829 = vmatpush1.msra.mxu0 0.0
    %830 = vmatprep.subr.mxu0 0.0
    %831 = vmatpush1.msra.mxu0 0.0
    %832 = vmatprep.subr.mxu0 0.0
    %833 = vmatpush1.msra.mxu0 0.0
    %834 = vmatprep.subr.mxu0 0.0
    %835 = vmatpush1.msra.mxu0 0.0
    %836 = vmatprep.subr.mxu0 0.0
    %837 = vmatpush1.msra.mxu0 0.0
    %838 = vmatprep.subr.mxu0 0.0
    %839 = vmatpush1.msra.mxu0 0.0
    %840 = vmatprep.subr.mxu0 0.0
    %841 = vmatpush1.msra.mxu0 0.0
    %842 = vmatprep.subr.mxu0 0.0
    %843 = vmatpush1.msra.mxu0 %v814
    %844 = vmatprep.subr.mxu0 0.0
    %845 = vmatpush1.msra.mxu0 %v813
    %846 = vmatprep.subr.mxu0 0.0
    %847 = vmatpush1.msra.mxu0 %v812
    %848 = vmatprep.subr.mxu0 0.0
    %849 = vmatpush1.msra.mxu0 %v811
    %850 = vmatprep.subr.mxu0 0.0
    %851 = vmatpush2.msra.mxu0 0.0
    %852 = vmatprep.subr.mxu0 0.0
    %853 = vmatpush2.msra.mxu0 0.0
    %854 = vmatprep.subr.mxu0 0.0
    %855 = vmatpush2.msra.mxu0 0.0
    %856 = vmatprep.subr.mxu0 0.0
    %857 = vmatpush2.msra.mxu0 0.0
    %858 = vmatprep.subr.mxu0 0.0
    %859 = vmatpush2.msra.mxu0 0.0
    %860 = vmatprep.subr.mxu0 0.0
    %861 = vmatpush2.msra.mxu0 0.0
    %862 = vmatprep.subr.mxu0 0.0
    %863 = vmatpush2.msra.mxu0 0.0
    %864 = vmatprep.subr.mxu0 0.0
    %865 = vmatpush2.msra.mxu0 0.0
    %866 = vmatprep.subr.mxu0 0.0
    %867 = vmatpush2.msra.mxu0 0.0
    %868 = vmatprep.subr.mxu0 0.0
    %869 = vmatpush2.msra.mxu0 0.0
    %870 = vmatprep.subr.mxu0 0.0
    %871 = vmatpush2.msra.mxu0 0.0
    %872 = vmatprep.subr.mxu0 0.0
    %873 = vmatpush2.msra.mxu0 0.0
    %874 = vmatprep.subr.mxu0 0.0
    %875 = vmatpush2.msra.mxu0 0.0
    %876 = vmatprep.subr.mxu0 0.0
    %877 = vmatpush2.msra.mxu0 0.0
    %878 = vmatprep.subr.mxu0 0.0
    %879 = vmatpush2.msra.mxu0 0.0
    %880 = vmatprep.subr.mxu0 0.0
    %881 = vmatpush2.msra.mxu0 0.0
    %882 = vmatprep.mubr.f32.mxu0 0.0
    %883 = vmatmul.mubr.f32.gmra.mxu0 %v816
    %v884 = vpop.f32.mrf.mxu0
    %v885 = vadd.f32 0.0, %v884
    %v886 = vpop.f32.mrf.mxu0
    %887 = vdwg.mxu0
    %v888 = vadd.f32 %v809, %v885
    %s889 = scalar_lea.vmem [#allocation2], 56
    %890 = vst.msk [vmem:[%s889] sm:$0xff] %vm288, %v888
    %s891 = scalar_lea.vmem [#allocation3], 56
    %v892 = vld [vmem:[%s891] sm:$0xff]
    %v893 = vld [vmem:[%s889] sm:$0xff]
    %v894 = vld [vmem:[%s3] sm:$0xff]
    %v895 = vld [vmem:[%s3 + $0x8] sm:$0xff]
    %v896 = vld [vmem:[%s3 + $0x10] sm:$0xff]
    %v897 = vld [vmem:[%s3 + $0x18] sm:$0xff]
    %v899 = vsel %vm288, %v893, 0
    %901 = vmatprep.subr.mxu0 0.0
    %902 = vmatpush1.msra.mxu0 0.0
    %903 = vmatprep.subr.mxu0 0.0
    %904 = vmatpush1.msra.mxu0 0.0
    %905 = vmatprep.subr.mxu0 0.0
    %906 = vmatpush1.msra.mxu0 0.0
    %907 = vmatprep.subr.mxu0 0.0
    %908 = vmatpush1.msra.mxu0 0.0
    %909 = vmatprep.subr.mxu0 0.0
    %910 = vmatpush1.msra.mxu0 0.0
    %911 = vmatprep.subr.mxu0 0.0
    %912 = vmatpush1.msra.mxu0 0.0
    %913 = vmatprep.subr.mxu0 0.0
    %914 = vmatpush1.msra.mxu0 0.0
    %915 = vmatprep.subr.mxu0 0.0
    %916 = vmatpush1.msra.mxu0 0.0
    %917 = vmatprep.subr.mxu0 0.0
    %918 = vmatpush1.msra.mxu0 0.0
    %919 = vmatprep.subr.mxu0 0.0
    %920 = vmatpush1.msra.mxu0 0.0
    %921 = vmatprep.subr.mxu0 0.0
    %922 = vmatpush1.msra.mxu0 0.0
    %923 = vmatprep.subr.mxu0 0.0
    %924 = vmatpush1.msra.mxu0 0.0
    %925 = vmatprep.subr.mxu0 0.0
    %926 = vmatpush1.msra.mxu0 %v897
    %927 = vmatprep.subr.mxu0 0.0
    %928 = vmatpush1.msra.mxu0 %v896
    %929 = vmatprep.subr.mxu0 0.0
    %930 = vmatpush1.msra.mxu0 %v895
    %931 = vmatprep.subr.mxu0 0.0
    %932 = vmatpush1.msra.mxu0 %v894
    %933 = vmatprep.subr.mxu0 0.0
    %934 = vmatpush2.msra.mxu0 0.0
    %935 = vmatprep.subr.mxu0 0.0
    %936 = vmatpush2.msra.mxu0 0.0
    %937 = vmatprep.subr.mxu0 0.0
    %938 = vmatpush2.msra.mxu0 0.0
    %939 = vmatprep.subr.mxu0 0.0
    %940 = vmatpush2.msra.mxu0 0.0
    %941 = vmatprep.subr.mxu0 0.0
    %942 = vmatpush2.msra.mxu0 0.0
    %943 = vmatprep.subr.mxu0 0.0
    %944 = vmatpush2.msra.mxu0 0.0
    %945 = vmatprep.subr.mxu0 0.0
    %946 = vmatpush2.msra.mxu0 0.0
    %947 = vmatprep.subr.mxu0 0.0
    %948 = vmatpush2.msra.mxu0 0.0
    %949 = vmatprep.subr.mxu0 0.0
    %950 = vmatpush2.msra.mxu0 0.0
    %951 = vmatprep.subr.mxu0 0.0
    %952 = vmatpush2.msra.mxu0 0.0
    %953 = vmatprep.subr.mxu0 0.0
    %954 = vmatpush2.msra.mxu0 0.0
    %955 = vmatprep.subr.mxu0 0.0
    %956 = vmatpush2.msra.mxu0 0.0
    %957 = vmatprep.subr.mxu0 0.0
    %958 = vmatpush2.msra.mxu0 0.0
    %959 = vmatprep.subr.mxu0 0.0
    %960 = vmatpush2.msra.mxu0 0.0
    %961 = vmatprep.subr.mxu0 0.0
    %962 = vmatpush2.msra.mxu0 0.0
    %963 = vmatprep.subr.mxu0 0.0
    %964 = vmatpush2.msra.mxu0 0.0
    %965 = vmatprep.mubr.f32.mxu0 0.0
    %966 = vmatmul.mubr.f32.gmra.mxu0 %v899
    %v967 = vpop.f32.mrf.mxu0
    %v968 = vadd.f32 0.0, %v967
    %v969 = vpop.f32.mrf.mxu0
    %970 = vdwg.mxu0
    %v971 = vadd.f32 %v892, %v968
    %s972 = scalar_lea.vmem [#allocation2], 64
    %973 = vst.msk [vmem:[%s972] sm:$0xff] %vm288, %v971
    %s974 = scalar_lea.vmem [#allocation3], 64
    %v975 = vld [vmem:[%s974] sm:$0xff]
    %v976 = vld [vmem:[%s972] sm:$0xff]
    %v977 = vld [vmem:[%s3] sm:$0xff]
    %v978 = vld [vmem:[%s3 + $0x8] sm:$0xff]
    %v979 = vld [vmem:[%s3 + $0x10] sm:$0xff]
    %v980 = vld [vmem:[%s3 + $0x18] sm:$0xff]
    %v982 = vsel %vm288, %v976, 0
    %984 = vmatprep.subr.mxu0 0.0
    %985 = vmatpush1.msra.mxu0 0.0
    %986 = vmatprep.subr.mxu0 0.0
    %987 = vmatpush1.msra.mxu0 0.0
    %988 = vmatprep.subr.mxu0 0.0
    %989 = vmatpush1.msra.mxu0 0.0
    %990 = vmatprep.subr.mxu0 0.0
    %991 = vmatpush1.msra.mxu0 0.0
    %992 = vmatprep.subr.mxu0 0.0
    %993 = vmatpush1.msra.mxu0 0.0
    %994 = vmatprep.subr.mxu0 0.0
    %995 = vmatpush1.msra.mxu0 0.0
    %996 = vmatprep.subr.mxu0 0.0
    %997 = vmatpush1.msra.mxu0 0.0
    %998 = vmatprep.subr.mxu0 0.0
    %999 = vmatpush1.msra.mxu0 0.0
    %1000 = vmatprep.subr.mxu0 0.0
    %1001 = vmatpush1.msra.mxu0 0.0
    %1002 = vmatprep.subr.mxu0 0.0
    %1003 = vmatpush1.msra.mxu0 0.0
    %1004 = vmatprep.subr.mxu0 0.0
    %1005 = vmatpush1.msra.mxu0 0.0
    %1006 = vmatprep.subr.mxu0 0.0
    %1007 = vmatpush1.msra.mxu0 0.0
    %1008 = vmatprep.subr.mxu0 0.0
    %1009 = vmatpush1.msra.mxu0 %v980
    %1010 = vmatprep.subr.mxu0 0.0
    %1011 = vmatpush1.msra.mxu0 %v979
    %1012 = vmatprep.subr.mxu0 0.0
    %1013 = vmatpush1.msra.mxu0 %v978
    %1014 = vmatprep.subr.mxu0 0.0
    %1015 = vmatpush1.msra.mxu0 %v977
    %1016 = vmatprep.subr.mxu0 0.0
    %1017 = vmatpush2.msra.mxu0 0.0
    %1018 = vmatprep.subr.mxu0 0.0
    %1019 = vmatpush2.msra.mxu0 0.0
    %1020 = vmatprep.subr.mxu0 0.0
    %1021 = vmatpush2.msra.mxu0 0.0
    %1022 = vmatprep.subr.mxu0 0.0
    %1023 = vmatpush2.msra.mxu0 0.0
    %1024 = vmatprep.subr.mxu0 0.0
    %1025 = vmatpush2.msra.mxu0 0.0
    %1026 = vmatprep.subr.mxu0 0.0
    %1027 = vmatpush2.msra.mxu0 0.0
    %1028 = vmatprep.subr.mxu0 0.0
    %1029 = vmatpush2.msra.mxu0 0.0
    %1030 = vmatprep.subr.mxu0 0.0
    %1031 = vmatpush2.msra.mxu0 0.0
    %1032 = vmatprep.subr.mxu0 0.0
    %1033 = vmatpush2.msra.mxu0 0.0
    %1034 = vmatprep.subr.mxu0 0.0
    %1035 = vmatpush2.msra.mxu0 0.0
    %1036 = vmatprep.subr.mxu0 0.0
    %1037 = vmatpush2.msra.mxu0 0.0
    %1038 = vmatprep.subr.mxu0 0.0
    %1039 = vmatpush2.msra.mxu0 0.0
    %1040 = vmatprep.subr.mxu0 0.0
    %1041 = vmatpush2.msra.mxu0 0.0
    %1042 = vmatprep.subr.mxu0 0.0
    %1043 = vmatpush2.msra.mxu0 0.0
    %1044 = vmatprep.subr.mxu0 0.0
    %1045 = vmatpush2.msra.mxu0 0.0
    %1046 = vmatprep.subr.mxu0 0.0
    %1047 = vmatpush2.msra.mxu0 0.0
    %1048 = vmatprep.mubr.f32.mxu0 0.0
    %1049 = vmatmul.mubr.f32.gmra.mxu0 %v982
    %v1050 = vpop.f32.mrf.mxu0
    %v1051 = vadd.f32 0.0, %v1050
    %v1052 = vpop.f32.mrf.mxu0
    %1053 = vdwg.mxu0
    %v1054 = vadd.f32 %v975, %v1051
    %s1055 = scalar_lea.vmem [#allocation2], 72
    %1056 = vst.msk [vmem:[%s1055] sm:$0xff] %vm288, %v1054
    %s1057 = scalar_lea.vmem [#allocation3], 72
    %v1058 = vld [vmem:[%s1057] sm:$0xff]
    %v1059 = vld [vmem:[%s1055] sm:$0xff]
    %v1060 = vld [vmem:[%s3] sm:$0xff]
    %v1061 = vld [vmem:[%s3 + $0x8] sm:$0xff]
    %v1062 = vld [vmem:[%s3 + $0x10] sm:$0xff]
    %v1063 = vld [vmem:[%s3 + $0x18] sm:$0xff]
    %v1065 = vsel %vm288, %v1059, 0
    %1067 = vmatprep.subr.mxu0 0.0
    %1068 = vmatpush1.msra.mxu0 0.0
    %1069 = vmatprep.subr.mxu0 0.0
    %1070 = vmatpush1.msra.mxu0 0.0
    %1071 = vmatprep.subr.mxu0 0.0
    %1072 = vmatpush1.msra.mxu0 0.0
    %1073 = vmatprep.subr.mxu0 0.0
    %1074 = vmatpush1.msra.mxu0 0.0
    %1075 = vmatprep.subr.mxu0 0.0
    %1076 = vmatpush1.msra.mxu0 0.0
    %1077 = vmatprep.subr.mxu0 0.0
    %1078 = vmatpush1.msra.mxu0 0.0
    %1079 = vmatprep.subr.mxu0 0.0
    %1080 = vmatpush1.msra.mxu0 0.0
    %1081 = vmatprep.subr.mxu0 0.0
    %1082 = vmatpush1.msra.mxu0 0.0
    %1083 = vmatprep.subr.mxu0 0.0
    %1084 = vmatpush1.msra.mxu0 0.0
    %1085 = vmatprep.subr.mxu0 0.0
    %1086 = vmatpush1.msra.mxu0 0.0
    %1087 = vmatprep.subr.mxu0 0.0
    %1088 = vmatpush1.msra.mxu0 0.0
    %1089 = vmatprep.subr.mxu0 0.0
    %1090 = vmatpush1.msra.mxu0 0.0
    %1091 = vmatprep.subr.mxu0 0.0
    %1092 = vmatpush1.msra.mxu0 %v1063
    %1093 = vmatprep.subr.mxu0 0.0
    %1094 = vmatpush1.msra.mxu0 %v1062
    %1095 = vmatprep.subr.mxu0 0.0
    %1096 = vmatpush1.msra.mxu0 %v1061
    %1097 = vmatprep.subr.mxu0 0.0
    %1098 = vmatpush1.msra.mxu0 %v1060
    %1099 = vmatprep.subr.mxu0 0.0
    %1100 = vmatpush2.msra.mxu0 0.0
    %1101 = vmatprep.subr.mxu0 0.0
    %1102 = vmatpush2.msra.mxu0 0.0
    %1103 = vmatprep.subr.mxu0 0.0
    %1104 = vmatpush2.msra.mxu0 0.0
    %1105 = vmatprep.subr.mxu0 0.0
    %1106 = vmatpush2.msra.mxu0 0.0
    %1107 = vmatprep.subr.mxu0 0.0
    %1108 = vmatpush2.msra.mxu0 0.0
    %1109 = vmatprep.subr.mxu0 0.0
    %1110 = vmatpush2.msra.mxu0 0.0
    %1111 = vmatprep.subr.mxu0 0.0
    %1112 = vmatpush2.msra.mxu0 0.0
    %1113 = vmatprep.subr.mxu0 0.0
    %1114 = vmatpush2.msra.mxu0 0.0
    %1115 = vmatprep.subr.mxu0 0.0
    %1116 = vmatpush2.msra.mxu0 0.0
    %1117 = vmatprep.subr.mxu0 0.0
    %1118 = vmatpush2.msra.mxu0 0.0
    %1119 = vmatprep.subr.mxu0 0.0
    %1120 = vmatpush2.msra.mxu0 0.0
    %1121 = vmatprep.subr.mxu0 0.0
    %1122 = vmatpush2.msra.mxu0 0.0
    %1123 = vmatprep.subr.mxu0 0.0
    %1124 = vmatpush2.msra.mxu0 0.0
    %1125 = vmatprep.subr.mxu0 0.0
    %1126 = vmatpush2.msra.mxu0 0.0
    %1127 = vmatprep.subr.mxu0 0.0
    %1128 = vmatpush2.msra.mxu0 0.0
    %1129 = vmatprep.subr.mxu0 0.0
    %1130 = vmatpush2.msra.mxu0 0.0
    %1131 = vmatprep.mubr.f32.mxu0 0.0
    %1132 = vmatmul.mubr.f32.gmra.mxu0 %v1065
    %v1133 = vpop.f32.mrf.mxu0
    %v1134 = vadd.f32 0.0, %v1133
    %v1135 = vpop.f32.mrf.mxu0
    %1136 = vdwg.mxu0
    %v1137 = vadd.f32 %v1058, %v1134
    %s1138 = scalar_lea.vmem [#allocation2], 80
    %1139 = vst.msk [vmem:[%s1138] sm:$0xff] %vm288, %v1137
    %s1140 = scalar_lea.vmem [#allocation3], 80
    %v1141 = vld [vmem:[%s1140] sm:$0xff]
    %v1142 = vld [vmem:[%s1138] sm:$0xff]
    %v1143 = vld [vmem:[%s3] sm:$0xff]
    %v1144 = vld [vmem:[%s3 + $0x8] sm:$0xff]
    %v1145 = vld [vmem:[%s3 + $0x10] sm:$0xff]
    %v1146 = vld [vmem:[%s3 + $0x18] sm:$0xff]
    %v1148 = vsel %vm288, %v1142, 0
    %1150 = vmatprep.subr.mxu0 0.0
    %1151 = vmatpush1.msra.mxu0 0.0
    %1152 = vmatprep.subr.mxu0 0.0
    %1153 = vmatpush1.msra.mxu0 0.0
    %1154 = vmatprep.subr.mxu0 0.0
    %1155 = vmatpush1.msra.mxu0 0.0
    %1156 = vmatprep.subr.mxu0 0.0
    %1157 = vmatpush1.msra.mxu0 0.0
    %1158 = vmatprep.subr.mxu0 0.0
    %1159 = vmatpush1.msra.mxu0 0.0
    %1160 = vmatprep.subr.mxu0 0.0
    %1161 = vmatpush1.msra.mxu0 0.0
    %1162 = vmatprep.subr.mxu0 0.0
    %1163 = vmatpush1.msra.mxu0 0.0
    %1164 = vmatprep.subr.mxu0 0.0
    %1165 = vmatpush1.msra.mxu0 0.0
    %1166 = vmatprep.subr.mxu0 0.0
    %1167 = vmatpush1.msra.mxu0 0.0
    %1168 = vmatprep.subr.mxu0 0.0
    %1169 = vmatpush1.msra.mxu0 0.0
    %1170 = vmatprep.subr.mxu0 0.0
    %1171 = vmatpush1.msra.mxu0 0.0
    %1172 = vmatprep.subr.mxu0 0.0
    %1173 = vmatpush1.msra.mxu0 0.0
    %1174 = vmatprep.subr.mxu0 0.0
    %1175 = vmatpush1.msra.mxu0 %v1146
    %1176 = vmatprep.subr.mxu0 0.0
    %1177 = vmatpush1.msra.mxu0 %v1145
    %1178 = vmatprep.subr.mxu0 0.0
    %1179 = vmatpush1.msra.mxu0 %v1144
    %1180 = vmatprep.subr.mxu0 0.0
    %1181 = vmatpush1.msra.mxu0 %v1143
    %1182 = vmatprep.subr.mxu0 0.0
    %1183 = vmatpush2.msra.mxu0 0.0
    %1184 = vmatprep.subr.mxu0 0.0
    %1185 = vmatpush2.msra.mxu0 0.0
    %1186 = vmatprep.subr.mxu0 0.0
    %1187 = vmatpush2.msra.mxu0 0.0
    %1188 = vmatprep.subr.mxu0 0.0
    %1189 = vmatpush2.msra.mxu0 0.0
    %1190 = vmatprep.subr.mxu0 0.0
    %1191 = vmatpush2.msra.mxu0 0.0
    %1192 = vmatprep.subr.mxu0 0.0
    %1193 = vmatpush2.msra.mxu0 0.0
    %1194 = vmatprep.subr.mxu0 0.0
    %1195 = vmatpush2.msra.mxu0 0.0
    %1196 = vmatprep.subr.mxu0 0.0
    %1197 = vmatpush2.msra.mxu0 0.0
    %1198 = vmatprep.subr.mxu0 0.0
    %1199 = vmatpush2.msra.mxu0 0.0
    %1200 = vmatprep.subr.mxu0 0.0
    %1201 = vmatpush2.msra.mxu0 0.0
    %1202 = vmatprep.subr.mxu0 0.0
    %1203 = vmatpush2.msra.mxu0 0.0
    %1204 = vmatprep.subr.mxu0 0.0
    %1205 = vmatpush2.msra.mxu0 0.0
    %1206 = vmatprep.subr.mxu0 0.0
    %1207 = vmatpush2.msra.mxu0 0.0
    %1208 = vmatprep.subr.mxu0 0.0
    %1209 = vmatpush2.msra.mxu0 0.0
    %1210 = vmatprep.subr.mxu0 0.0
    %1211 = vmatpush2.msra.mxu0 0.0
    %1212 = vmatprep.subr.mxu0 0.0
    %1213 = vmatpush2.msra.mxu0 0.0
    %1214 = vmatprep.mubr.f32.mxu0 0.0
    %1215 = vmatmul.mubr.f32.gmra.mxu0 %v1148
    %v1216 = vpop.f32.mrf.mxu0
    %v1217 = vadd.f32 0.0, %v1216
    %v1218 = vpop.f32.mrf.mxu0
    %1219 = vdwg.mxu0
    %v1220 = vadd.f32 %v1141, %v1217
    %s1221 = scalar_lea.vmem [#allocation2], 88
    %1222 = vst.msk [vmem:[%s1221] sm:$0xff] %vm288, %v1220
    %s1223 = scalar_lea.vmem [#allocation3], 88
    %v1224 = vld [vmem:[%s1223] sm:$0xff]
    %v1225 = vld [vmem:[%s1221] sm:$0xff]
    %v1226 = vld [vmem:[%s3] sm:$0xff]
    %v1227 = vld [vmem:[%s3 + $0x8] sm:$0xff]
    %v1228 = vld [vmem:[%s3 + $0x10] sm:$0xff]
    %v1229 = vld [vmem:[%s3 + $0x18] sm:$0xff]
    %v1231 = vsel %vm288, %v1225, 0
    %1233 = vmatprep.subr.mxu0 0.0
    %1234 = vmatpush1.msra.mxu0 0.0
    %1235 = vmatprep.subr.mxu0 0.0
    %1236 = vmatpush1.msra.mxu0 0.0
    %1237 = vmatprep.subr.mxu0 0.0
    %1238 = vmatpush1.msra.mxu0 0.0
    %1239 = vmatprep.subr.mxu0 0.0
    %1240 = vmatpush1.msra.mxu0 0.0
    %1241 = vmatprep.subr.mxu0 0.0
    %1242 = vmatpush1.msra.mxu0 0.0
    %1243 = vmatprep.subr.mxu0 0.0
    %1244 = vmatpush1.msra.mxu0 0.0
    %1245 = vmatprep.subr.mxu0 0.0
    %1246 = vmatpush1.msra.mxu0 0.0
    %1247 = vmatprep.subr.mxu0 0.0
    %1248 = vmatpush1.msra.mxu0 0.0
    %1249 = vmatprep.subr.mxu0 0.0
    %1250 = vmatpush1.msra.mxu0 0.0
    %1251 = vmatprep.subr.mxu0 0.0
    %1252 = vmatpush1.msra.mxu0 0.0
    %1253 = vmatprep.subr.mxu0 0.0
    %1254 = vmatpush1.msra.mxu0 0.0
    %1255 = vmatprep.subr.mxu0 0.0
    %1256 = vmatpush1.msra.mxu0 0.0
    %1257 = vmatprep.subr.mxu0 0.0
    %1258 = vmatpush1.msra.mxu0 %v1229
    %1259 = vmatprep.subr.mxu0 0.0
    %1260 = vmatpush1.msra.mxu0 %v1228
    %1261 = vmatprep.subr.mxu0 0.0
    %1262 = vmatpush1.msra.mxu0 %v1227
    %1263 = vmatprep.subr.mxu0 0.0
    %1264 = vmatpush1.msra.mxu0 %v1226
    %1265 = vmatprep.subr.mxu0 0.0
    %1266 = vmatpush2.msra.mxu0 0.0
    %1267 = vmatprep.subr.mxu0 0.0
    %1268 = vmatpush2.msra.mxu0 0.0
    %1269 = vmatprep.subr.mxu0 0.0
    %1270 = vmatpush2.msra.mxu0 0.0
    %1271 = vmatprep.subr.mxu0 0.0
    %1272 = vmatpush2.msra.mxu0 0.0
    %1273 = vmatprep.subr.mxu0 0.0
    %1274 = vmatpush2.msra.mxu0 0.0
    %1275 = vmatprep.subr.mxu0 0.0
    %1276 = vmatpush2.msra.mxu0 0.0
    %1277 = vmatprep.subr.mxu0 0.0
    %1278 = vmatpush2.msra.mxu0 0.0
    %1279 = vmatprep.subr.mxu0 0.0
    %1280 = vmatpush2.msra.mxu0 0.0
    %1281 = vmatprep.subr.mxu0 0.0
    %1282 = vmatpush2.msra.mxu0 0.0
    %1283 = vmatprep.subr.mxu0 0.0
    %1284 = vmatpush2.msra.mxu0 0.0
    %1285 = vmatprep.subr.mxu0 0.0
    %1286 = vmatpush2.msra.mxu0 0.0
    %1287 = vmatprep.subr.mxu0 0.0
    %1288 = vmatpush2.msra.mxu0 0.0
    %1289 = vmatprep.subr.mxu0 0.0
    %1290 = vmatpush2.msra.mxu0 0.0
    %1291 = vmatprep.subr.mxu0 0.0
    %1292 = vmatpush2.msra.mxu0 0.0
    %1293 = vmatprep.subr.mxu0 0.0
    %1294 = vmatpush2.msra.mxu0 0.0
    %1295 = vmatprep.subr.mxu0 0.0
    %1296 = vmatpush2.msra.mxu0 0.0
    %1297 = vmatprep.mubr.f32.mxu0 0.0
    %1298 = vmatmul.mubr.f32.gmra.mxu0 %v1231
    %v1299 = vpop.f32.mrf.mxu0
    %v1300 = vadd.f32 0.0, %v1299
    %v1301 = vpop.f32.mrf.mxu0
    %1302 = vdwg.mxu0
    %v1303 = vadd.f32 %v1224, %v1300
    %s1304 = scalar_lea.vmem [#allocation2], 96
    %1305 = vst.msk [vmem:[%s1304] sm:$0xff] %vm288, %v1303
    %s1306 = scalar_lea.vmem [#allocation3], 96
    %v1307 = vld [vmem:[%s1306] sm:$0xff]
    %v1308 = vld [vmem:[%s1304] sm:$0xff]
    %v1309 = vld [vmem:[%s3] sm:$0xff]
    %v1310 = vld [vmem:[%s3 + $0x8] sm:$0xff]
    %v1311 = vld [vmem:[%s3 + $0x10] sm:$0xff]
    %v1312 = vld [vmem:[%s3 + $0x18] sm:$0xff]
    %v1314 = vsel %vm288, %v1308, 0
    %1316 = vmatprep.subr.mxu0 0.0
    %1317 = vmatpush1.msra.mxu0 0.0
    %1318 = vmatprep.subr.mxu0 0.0
    %1319 = vmatpush1.msra.mxu0 0.0
    %1320 = vmatprep.subr.mxu0 0.0
    %1321 = vmatpush1.msra.mxu0 0.0
    %1322 = vmatprep.subr.mxu0 0.0
    %1323 = vmatpush1.msra.mxu0 0.0
    %1324 = vmatprep.subr.mxu0 0.0
    %1325 = vmatpush1.msra.mxu0 0.0
    %1326 = vmatprep.subr.mxu0 0.0
    %1327 = vmatpush1.msra.mxu0 0.0
    %1328 = vmatprep.subr.mxu0 0.0
    %1329 = vmatpush1.msra.mxu0 0.0
    %1330 = vmatprep.subr.mxu0 0.0
    %1331 = vmatpush1.msra.mxu0 0.0
    %1332 = vmatprep.subr.mxu0 0.0
    %1333 = vmatpush1.msra.mxu0 0.0
    %1334 = vmatprep.subr.mxu0 0.0
    %1335 = vmatpush1.msra.mxu0 0.0
    %1336 = vmatprep.subr.mxu0 0.0
    %1337 = vmatpush1.msra.mxu0 0.0
    %1338 = vmatprep.subr.mxu0 0.0
    %1339 = vmatpush1.msra.mxu0 0.0
    %1340 = vmatprep.subr.mxu0 0.0
    %1341 = vmatpush1.msra.mxu0 %v1312
    %1342 = vmatprep.subr.mxu0 0.0
    %1343 = vmatpush1.msra.mxu0 %v1311
    %1344 = vmatprep.subr.mxu0 0.0
    %1345 = vmatpush1.msra.mxu0 %v1310
    %1346 = vmatprep.subr.mxu0 0.0
    %1347 = vmatpush1.msra.mxu0 %v1309
    %1348 = vmatprep.subr.mxu0 0.0
    %1349 = vmatpush2.msra.mxu0 0.0
    %1350 = vmatprep.subr.mxu0 0.0
    %1351 = vmatpush2.msra.mxu0 0.0
    %1352 = vmatprep.subr.mxu0 0.0
    %1353 = vmatpush2.msra.mxu0 0.0
    %1354 = vmatprep.subr.mxu0 0.0
    %1355 = vmatpush2.msra.mxu0 0.0
    %1356 = vmatprep.subr.mxu0 0.0
    %1357 = vmatpush2.msra.mxu0 0.0
    %1358 = vmatprep.subr.mxu0 0.0
    %1359 = vmatpush2.msra.mxu0 0.0
    %1360 = vmatprep.subr.mxu0 0.0
    %1361 = vmatpush2.msra.mxu0 0.0
    %1362 = vmatprep.subr.mxu0 0.0
    %1363 = vmatpush2.msra.mxu0 0.0
    %1364 = vmatprep.subr.mxu0 0.0
    %1365 = vmatpush2.msra.mxu0 0.0
    %1366 = vmatprep.subr.mxu0 0.0
    %1367 = vmatpush2.msra.mxu0 0.0
    %1368 = vmatprep.subr.mxu0 0.0
    %1369 = vmatpush2.msra.mxu0 0.0
    %1370 = vmatprep.subr.mxu0 0.0
    %1371 = vmatpush2.msra.mxu0 0.0
    %1372 = vmatprep.subr.mxu0 0.0
    %1373 = vmatpush2.msra.mxu0 0.0
    %1374 = vmatprep.subr.mxu0 0.0
    %1375 = vmatpush2.msra.mxu0 0.0
    %1376 = vmatprep.subr.mxu0 0.0
    %1377 = vmatpush2.msra.mxu0 0.0
    %1378 = vmatprep.subr.mxu0 0.0
    %1379 = vmatpush2.msra.mxu0 0.0
    %1380 = vmatprep.mubr.f32.mxu0 0.0
    %1381 = vmatmul.mubr.f32.gmra.mxu0 %v1314
    %v1382 = vpop.f32.mrf.mxu0
    %v1383 = vadd.f32 0.0, %v1382
    %v1384 = vpop.f32.mrf.mxu0
    %1385 = vdwg.mxu0
    %v1386 = vadd.f32 %v1307, %v1383
    %s1387 = scalar_lea.vmem [#allocation2], 104
    %1388 = vst.msk [vmem:[%s1387] sm:$0xff] %vm288, %v1386
    %s1389 = scalar_lea.vmem [#allocation3], 104
    %v1390 = vld [vmem:[%s1389] sm:$0xff]
    %v1391 = vld [vmem:[%s1387] sm:$0xff]
    %v1392 = vld [vmem:[%s3] sm:$0xff]
    %v1393 = vld [vmem:[%s3 + $0x8] sm:$0xff]
    %v1394 = vld [vmem:[%s3 + $0x10] sm:$0xff]
    %v1395 = vld [vmem:[%s3 + $0x18] sm:$0xff]
    %v1397 = vsel %vm288, %v1391, 0
    %1399 = vmatprep.subr.mxu0 0.0
    %1400 = vmatpush1.msra.mxu0 0.0
    %1401 = vmatprep.subr.mxu0 0.0
    %1402 = vmatpush1.msra.mxu0 0.0
    %1403 = vmatprep.subr.mxu0 0.0
    %1404 = vmatpush1.msra.mxu0 0.0
    %1405 = vmatprep.subr.mxu0 0.0
    %1406 = vmatpush1.msra.mxu0 0.0
    %1407 = vmatprep.subr.mxu0 0.0
    %1408 = vmatpush1.msra.mxu0 0.0
    %1409 = vmatprep.subr.mxu0 0.0
    %1410 = vmatpush1.msra.mxu0 0.0
    %1411 = vmatprep.subr.mxu0 0.0
    %1412 = vmatpush1.msra.mxu0 0.0
    %1413 = vmatprep.subr.mxu0 0.0
    %1414 = vmatpush1.msra.mxu0 0.0
    %1415 = vmatprep.subr.mxu0 0.0
    %1416 = vmatpush1.msra.mxu0 0.0
    %1417 = vmatprep.subr.mxu0 0.0
    %1418 = vmatpush1.msra.mxu0 0.0
    %1419 = vmatprep.subr.mxu0 0.0
    %1420 = vmatpush1.msra.mxu0 0.0
    %1421 = vmatprep.subr.mxu0 0.0
    %1422 = vmatpush1.msra.mxu0 0.0
    %1423 = vmatprep.subr.mxu0 0.0
    %1424 = vmatpush1.msra.mxu0 %v1395
    %1425 = vmatprep.subr.mxu0 0.0
    %1426 = vmatpush1.msra.mxu0 %v1394
    %1427 = vmatprep.subr.mxu0 0.0
    %1428 = vmatpush1.msra.mxu0 %v1393
    %1429 = vmatprep.subr.mxu0 0.0
    %1430 = vmatpush1.msra.mxu0 %v1392
    %1431 = vmatprep.subr.mxu0 0.0
    %1432 = vmatpush2.msra.mxu0 0.0
    %1433 = vmatprep.subr.mxu0 0.0
    %1434 = vmatpush2.msra.mxu0 0.0
    %1435 = vmatprep.subr.mxu0 0.0
    %1436 = vmatpush2.msra.mxu0 0.0
    %1437 = vmatprep.subr.mxu0 0.0
    %1438 = vmatpush2.msra.mxu0 0.0
    %1439 = vmatprep.subr.mxu0 0.0
    %1440 = vmatpush2.msra.mxu0 0.0
    %1441 = vmatprep.subr.mxu0 0.0
    %1442 = vmatpush2.msra.mxu0 0.0
    %1443 = vmatprep.subr.mxu0 0.0
    %1444 = vmatpush2.msra.mxu0 0.0
    %1445 = vmatprep.subr.mxu0 0.0
    %1446 = vmatpush2.msra.mxu0 0.0
    %1447 = vmatprep.subr.mxu0 0.0
    %1448 = vmatpush2.msra.mxu0 0.0
    %1449 = vmatprep.subr.mxu0 0.0
    %1450 = vmatpush2.msra.mxu0 0.0
    %1451 = vmatprep.subr.mxu0 0.0
    %1452 = vmatpush2.msra.mxu0 0.0
    %1453 = vmatprep.subr.mxu0 0.0
    %1454 = vmatpush2.msra.mxu0 0.0
    %1455 = vmatprep.subr.mxu0 0.0
    %1456 = vmatpush2.msra.mxu0 0.0
    %1457 = vmatprep.subr.mxu0 0.0
    %1458 = vmatpush2.msra.mxu0 0.0
    %1459 = vmatprep.subr.mxu0 0.0
    %1460 = vmatpush2.msra.mxu0 0.0
    %1461 = vmatprep.subr.mxu0 0.0
    %1462 = vmatpush2.msra.mxu0 0.0
    %1463 = vmatprep.mubr.f32.mxu0 0.0
    %1464 = vmatmul.mubr.f32.gmra.mxu0 %v1397
    %v1465 = vpop.f32.mrf.mxu0
    %v1466 = vadd.f32 0.0, %v1465
    %v1467 = vpop.f32.mrf.mxu0
    %1468 = vdwg.mxu0
    %v1469 = vadd.f32 %v1390, %v1466
    %s1470 = scalar_lea.vmem [#allocation2], 112
    %1471 = vst.msk [vmem:[%s1470] sm:$0xff] %vm288, %v1469
    %s1472 = scalar_lea.vmem [#allocation3], 112
    %v1473 = vld [vmem:[%s1472] sm:$0xff]
    %v1474 = vld [vmem:[%s1470] sm:$0xff]
    %v1475 = vld [vmem:[%s3] sm:$0xff]
    %v1476 = vld [vmem:[%s3 + $0x8] sm:$0xff]
    %v1477 = vld [vmem:[%s3 + $0x10] sm:$0xff]
    %v1478 = vld [vmem:[%s3 + $0x18] sm:$0xff]
    %v1480 = vsel %vm288, %v1474, 0
    %1482 = vmatprep.subr.mxu0 0.0
    %1483 = vmatpush1.msra.mxu0 0.0
    %1484 = vmatprep.subr.mxu0 0.0
    %1485 = vmatpush1.msra.mxu0 0.0
    %1486 = vmatprep.subr.mxu0 0.0
    %1487 = vmatpush1.msra.mxu0 0.0
    %1488 = vmatprep.subr.mxu0 0.0
    %1489 = vmatpush1.msra.mxu0 0.0
    %1490 = vmatprep.subr.mxu0 0.0
    %1491 = vmatpush1.msra.mxu0 0.0
    %1492 = vmatprep.subr.mxu0 0.0
    %1493 = vmatpush1.msra.mxu0 0.0
    %1494 = vmatprep.subr.mxu0 0.0
    %1495 = vmatpush1.msra.mxu0 0.0
    %1496 = vmatprep.subr.mxu0 0.0
    %1497 = vmatpush1.msra.mxu0 0.0
    %1498 = vmatprep.subr.mxu0 0.0
    %1499 = vmatpush1.msra.mxu0 0.0
    %1500 = vmatprep.subr.mxu0 0.0
    %1501 = vmatpush1.msra.mxu0 0.0
    %1502 = vmatprep.subr.mxu0 0.0
    %1503 = vmatpush1.msra.mxu0 0.0
    %1504 = vmatprep.subr.mxu0 0.0
    %1505 = vmatpush1.msra.mxu0 0.0
    %1506 = vmatprep.subr.mxu0 0.0
    %1507 = vmatpush1.msra.mxu0 %v1478
    %1508 = vmatprep.subr.mxu0 0.0
    %1509 = vmatpush1.msra.mxu0 %v1477
    %1510 = vmatprep.subr.mxu0 0.0
    %1511 = vmatpush1.msra.mxu0 %v1476
    %1512 = vmatprep.subr.mxu0 0.0
    %1513 = vmatpush1.msra.mxu0 %v1475
    %1514 = vmatprep.subr.mxu0 0.0
    %1515 = vmatpush2.msra.mxu0 0.0
    %1516 = vmatprep.subr.mxu0 0.0
    %1517 = vmatpush2.msra.mxu0 0.0
    %1518 = vmatprep.subr.mxu0 0.0
    %1519 = vmatpush2.msra.mxu0 0.0
    %1520 = vmatprep.subr.mxu0 0.0
    %1521 = vmatpush2.msra.mxu0 0.0
    %1522 = vmatprep.subr.mxu0 0.0
    %1523 = vmatpush2.msra.mxu0 0.0
    %1524 = vmatprep.subr.mxu0 0.0
    %1525 = vmatpush2.msra.mxu0 0.0
    %1526 = vmatprep.subr.mxu0 0.0
    %1527 = vmatpush2.msra.mxu0 0.0
    %1528 = vmatprep.subr.mxu0 0.0
    %1529 = vmatpush2.msra.mxu0 0.0
    %1530 = vmatprep.subr.mxu0 0.0
    %1531 = vmatpush2.msra.mxu0 0.0
    %1532 = vmatprep.subr.mxu0 0.0
    %1533 = vmatpush2.msra.mxu0 0.0
    %1534 = vmatprep.subr.mxu0 0.0
    %1535 = vmatpush2.msra.mxu0 0.0
    %1536 = vmatprep.subr.mxu0 0.0
    %1537 = vmatpush2.msra.mxu0 0.0
    %1538 = vmatprep.subr.mxu0 0.0
    %1539 = vmatpush2.msra.mxu0 0.0
    %1540 = vmatprep.subr.mxu0 0.0
    %1541 = vmatpush2.msra.mxu0 0.0
    %1542 = vmatprep.subr.mxu0 0.0
    %1543 = vmatpush2.msra.mxu0 0.0
    %1544 = vmatprep.subr.mxu0 0.0
    %1545 = vmatpush2.msra.mxu0 0.0
    %1546 = vmatprep.mubr.f32.mxu0 0.0
    %1547 = vmatmul.mubr.f32.gmra.mxu0 %v1480
    %v1548 = vpop.f32.mrf.mxu0
    %v1549 = vadd.f32 0.0, %v1548
    %v1550 = vpop.f32.mrf.mxu0
    %1551 = vdwg.mxu0
    %v1552 = vadd.f32 %v1473, %v1549
    %s1553 = scalar_lea.vmem [#allocation2], 120
    %1554 = vst.msk [vmem:[%s1553] sm:$0xff] %vm288, %v1552
    %s1555 = scalar_lea.vmem [#allocation3], 120
    %v1556 = vld [vmem:[%s1555] sm:$0xff]
    %v1557 = vld [vmem:[%s1553] sm:$0xff]
    %v1558 = vld [vmem:[%s3] sm:$0xff]
    %v1559 = vld [vmem:[%s3 + $0x8] sm:$0xff]
    %v1560 = vld [vmem:[%s3 + $0x10] sm:$0xff]
    %v1561 = vld [vmem:[%s3 + $0x18] sm:$0xff]
    %v1563 = vsel %vm288, %v1557, 0
    %1565 = vmatprep.subr.mxu0 0.0
    %1566 = vmatpush1.msra.mxu0 0.0
    %1567 = vmatprep.subr.mxu0 0.0
    %1568 = vmatpush1.msra.mxu0 0.0
    %1569 = vmatprep.subr.mxu0 0.0
    %1570 = vmatpush1.msra.mxu0 0.0
    %1571 = vmatprep.subr.mxu0 0.0
    %1572 = vmatpush1.msra.mxu0 0.0
    %1573 = vmatprep.subr.mxu0 0.0
    %1574 = vmatpush1.msra.mxu0 0.0
    %1575 = vmatprep.subr.mxu0 0.0
    %1576 = vmatpush1.msra.mxu0 0.0
    %1577 = vmatprep.subr.mxu0 0.0
    %1578 = vmatpush1.msra.mxu0 0.0
    %1579 = vmatprep.subr.mxu0 0.0
    %1580 = vmatpush1.msra.mxu0 0.0
    %1581 = vmatprep.subr.mxu0 0.0
    %1582 = vmatpush1.msra.mxu0 0.0
    %1583 = vmatprep.subr.mxu0 0.0
    %1584 = vmatpush1.msra.mxu0 0.0
    %1585 = vmatprep.subr.mxu0 0.0
    %1586 = vmatpush1.msra.mxu0 0.0
    %1587 = vmatprep.subr.mxu0 0.0
    %1588 = vmatpush1.msra.mxu0 0.0
    %1589 = vmatprep.subr.mxu0 0.0
    %1590 = vmatpush1.msra.mxu0 %v1561
    %1591 = vmatprep.subr.mxu0 0.0
    %1592 = vmatpush1.msra.mxu0 %v1560
    %1593 = vmatprep.subr.mxu0 0.0
    %1594 = vmatpush1.msra.mxu0 %v1559
    %1595 = vmatprep.subr.mxu0 0.0
    %1596 = vmatpush1.msra.mxu0 %v1558
    %1597 = vmatprep.subr.mxu0 0.0
    %1598 = vmatpush2.msra.mxu0 0.0
    %1599 = vmatprep.subr.mxu0 0.0
    %1600 = vmatpush2.msra.mxu0 0.0
    %1601 = vmatprep.subr.mxu0 0.0
    %1602 = vmatpush2.msra.mxu0 0.0
    %1603 = vmatprep.subr.mxu0 0.0
    %1604 = vmatpush2.msra.mxu0 0.0
    %1605 = vmatprep.subr.mxu0 0.0
    %1606 = vmatpush2.msra.mxu0 0.0
    %1607 = vmatprep.subr.mxu0 0.0
    %1608 = vmatpush2.msra.mxu0 0.0
    %1609 = vmatprep.subr.mxu0 0.0
    %1610 = vmatpush2.msra.mxu0 0.0
    %1611 = vmatprep.subr.mxu0 0.0
    %1612 = vmatpush2.msra.mxu0 0.0
    %1613 = vmatprep.subr.mxu0 0.0
    %1614 = vmatpush2.msra.mxu0 0.0
    %1615 = vmatprep.subr.mxu0 0.0
    %1616 = vmatpush2.msra.mxu0 0.0
    %1617 = vmatprep.subr.mxu0 0.0
    %1618 = vmatpush2.msra.mxu0 0.0
    %1619 = vmatprep.subr.mxu0 0.0
    %1620 = vmatpush2.msra.mxu0 0.0
    %1621 = vmatprep.subr.mxu0 0.0
    %1622 = vmatpush2.msra.mxu0 0.0
    %1623 = vmatprep.subr.mxu0 0.0
    %1624 = vmatpush2.msra.mxu0 0.0
    %1625 = vmatprep.subr.mxu0 0.0
    %1626 = vmatpush2.msra.mxu0 0.0
    %1627 = vmatprep.subr.mxu0 0.0
    %1628 = vmatpush2.msra.mxu0 0.0
    %1629 = vmatprep.mubr.f32.mxu0 0.0
    %1630 = vmatmul.mubr.f32.gmra.mxu0 %v1563
    %v1631 = vpop.f32.mrf.mxu0
    %v1632 = vadd.f32 0.0, %v1631
    %v1633 = vpop.f32.mrf.mxu0
    %1634 = vdwg.mxu0
    %v1635 = vadd.f32 %v1556, %v1632
    %s1636 = scalar_lea.vmem [#allocation2], 128
    %1637 = vst.msk [vmem:[%s1636] sm:$0xff] %vm288, %v1635
    %s1638 = scalar_lea.vmem [#allocation3], 128
    %v1639 = vld [vmem:[%s1638] sm:$0xff]
    %v1640 = vld [vmem:[%s1636] sm:$0xff]
    %v1641 = vld [vmem:[%s3] sm:$0xff]
    %v1642 = vld [vmem:[%s3 + $0x8] sm:$0xff]
    %v1643 = vld [vmem:[%s3 + $0x10] sm:$0xff]
    %v1644 = vld [vmem:[%s3 + $0x18] sm:$0xff]
    %v1646 = vsel %vm288, %v1640, 0
    %1648 = vmatprep.subr.mxu0 0.0
    %1649 = vmatpush1.msra.mxu0 0.0
    %1650 = vmatprep.subr.mxu0 0.0
    %1651 = vmatpush1.msra.mxu0 0.0
    %1652 = vmatprep.subr.mxu0 0.0
    %1653 = vmatpush1.msra.mxu0 0.0
    %1654 = vmatprep.subr.mxu0 0.0
    %1655 = vmatpush1.msra.mxu0 0.0
    %1656 = vmatprep.subr.mxu0 0.0
    %1657 = vmatpush1.msra.mxu0 0.0
    %1658 = vmatprep.subr.mxu0 0.0
    %1659 = vmatpush1.msra.mxu0 0.0
    %1660 = vmatprep.subr.mxu0 0.0
    %1661 = vmatpush1.msra.mxu0 0.0
    %1662 = vmatprep.subr.mxu0 0.0
    %1663 = vmatpush1.msra.mxu0 0.0
    %1664 = vmatprep.subr.mxu0 0.0
    %1665 = vmatpush1.msra.mxu0 0.0
    %1666 = vmatprep.subr.mxu0 0.0
    %1667 = vmatpush1.msra.mxu0 0.0
    %1668 = vmatprep.subr.mxu0 0.0
    %1669 = vmatpush1.msra.mxu0 0.0
    %1670 = vmatprep.subr.mxu0 0.0
    %1671 = vmatpush1.msra.mxu0 0.0
    %1672 = vmatprep.subr.mxu0 0.0
    %1673 = vmatpush1.msra.mxu0 %v1644
    %1674 = vmatprep.subr.mxu0 0.0
    %1675 = vmatpush1.msra.mxu0 %v1643
    %1676 = vmatprep.subr.mxu0 0.0
    %1677 = vmatpush1.msra.mxu0 %v1642
    %1678 = vmatprep.subr.mxu0 0.0
    %1679 = vmatpush1.msra.mxu0 %v1641
    %1680 = vmatprep.subr.mxu0 0.0
    %1681 = vmatpush2.msra.mxu0 0.0
    %1682 = vmatprep.subr.mxu0 0.0
    %1683 = vmatpush2.msra.mxu0 0.0
    %1684 = vmatprep.subr.mxu0 0.0
    %1685 = vmatpush2.msra.mxu0 0.0
    %1686 = vmatprep.subr.mxu0 0.0
    %1687 = vmatpush2.msra.mxu0 0.0
    %1688 = vmatprep.subr.mxu0 0.0
    %1689 = vmatpush2.msra.mxu0 0.0
    %1690 = vmatprep.subr.mxu0 0.0
    %1691 = vmatpush2.msra.mxu0 0.0
    %1692 = vmatprep.subr.mxu0 0.0
    %1693 = vmatpush2.msra.mxu0 0.0
    %1694 = vmatprep.subr.mxu0 0.0
    %1695 = vmatpush2.msra.mxu0 0.0
    %1696 = vmatprep.subr.mxu0 0.0
    %1697 = vmatpush2.msra.mxu0 0.0
    %1698 = vmatprep.subr.mxu0 0.0
    %1699 = vmatpush2.msra.mxu0 0.0
    %1700 = vmatprep.subr.mxu0 0.0
    %1701 = vmatpush2.msra.mxu0 0.0
    %1702 = vmatprep.subr.mxu0 0.0
    %1703 = vmatpush2.msra.mxu0 0.0
    %1704 = vmatprep.subr.mxu0 0.0
    %1705 = vmatpush2.msra.mxu0 0.0
    %1706 = vmatprep.subr.mxu0 0.0
    %1707 = vmatpush2.msra.mxu0 0.0
    %1708 = vmatprep.subr.mxu0 0.0
    %1709 = vmatpush2.msra.mxu0 0.0
    %1710 = vmatprep.subr.mxu0 0.0
    %1711 = vmatpush2.msra.mxu0 0.0
    %1712 = vmatprep.mubr.f32.mxu0 0.0
    %1713 = vmatmul.mubr.f32.gmra.mxu0 %v1646
    %v1714 = vpop.f32.mrf.mxu0
    %v1715 = vadd.f32 0.0, %v1714
    %v1716 = vpop.f32.mrf.mxu0
    %1717 = vdwg.mxu0
    %v1718 = vadd.f32 %v1639, %v1715
    %s1719 = scalar_lea.vmem [#allocation2], 136
    %1720 = vst.msk [vmem:[%s1719] sm:$0xff] %vm288, %v1718
    %s1721 = scalar_lea.vmem [#allocation3], 136
    %v1722 = vld [vmem:[%s1721] sm:$0xff]
    %v1723 = vld [vmem:[%s1719] sm:$0xff]
    %v1724 = vld [vmem:[%s3] sm:$0xff]
    %v1725 = vld [vmem:[%s3 + $0x8] sm:$0xff]
    %v1726 = vld [vmem:[%s3 + $0x10] sm:$0xff]
    %v1727 = vld [vmem:[%s3 + $0x18] sm:$0xff]
    %v1729 = vsel %vm288, %v1723, 0
    %1731 = vmatprep.subr.mxu0 0.0
    %1732 = vmatpush1.msra.mxu0 0.0
    %1733 = vmatprep.subr.mxu0 0.0
    %1734 = vmatpush1.msra.mxu0 0.0
    %1735 = vmatprep.subr.mxu0 0.0
    %1736 = vmatpush1.msra.mxu0 0.0
    %1737 = vmatprep.subr.mxu0 0.0
    %1738 = vmatpush1.msra.mxu0 0.0
    %1739 = vmatprep.subr.mxu0 0.0
    %1740 = vmatpush1.msra.mxu0 0.0
    %1741 = vmatprep.subr.mxu0 0.0
    %1742 = vmatpush1.msra.mxu0 0.0
    %1743 = vmatprep.subr.mxu0 0.0
    %1744 = vmatpush1.msra.mxu0 0.0
    %1745 = vmatprep.subr.mxu0 0.0
    %1746 = vmatpush1.msra.mxu0 0.0
    %1747 = vmatprep.subr.mxu0 0.0
    %1748 = vmatpush1.msra.mxu0 0.0
    %1749 = vmatprep.subr.mxu0 0.0
    %1750 = vmatpush1.msra.mxu0 0.0
    %1751 = vmatprep.subr.mxu0 0.0
    %1752 = vmatpush1.msra.mxu0 0.0
    %1753 = vmatprep.subr.mxu0 0.0
    %1754 = vmatpush1.msra.mxu0 0.0
    %1755 = vmatprep.subr.mxu0 0.0
    %1756 = vmatpush1.msra.mxu0 %v1727
    %1757 = vmatprep.subr.mxu0 0.0
    %1758 = vmatpush1.msra.mxu0 %v1726
    %1759 = vmatprep.subr.mxu0 0.0
    %1760 = vmatpush1.msra.mxu0 %v1725
    %1761 = vmatprep.subr.mxu0 0.0
    %1762 = vmatpush1.msra.mxu0 %v1724
    %1763 = vmatprep.subr.mxu0 0.0
    %1764 = vmatpush2.msra.mxu0 0.0
    %1765 = vmatprep.subr.mxu0 0.0
    %1766 = vmatpush2.msra.mxu0 0.0
    %1767 = vmatprep.subr.mxu0 0.0
    %1768 = vmatpush2.msra.mxu0 0.0
    %1769 = vmatprep.subr.mxu0 0.0
    %1770 = vmatpush2.msra.mxu0 0.0
    %1771 = vmatprep.subr.mxu0 0.0
    %1772 = vmatpush2.msra.mxu0 0.0
    %1773 = vmatprep.subr.mxu0 0.0
    %1774 = vmatpush2.msra.mxu0 0.0
    %1775 = vmatprep.subr.mxu0 0.0
    %1776 = vmatpush2.msra.mxu0 0.0
    %1777 = vmatprep.subr.mxu0 0.0
    %1778 = vmatpush2.msra.mxu0 0.0
    %1779 = vmatprep.subr.mxu0 0.0
    %1780 = vmatpush2.msra.mxu0 0.0
    %1781 = vmatprep.subr.mxu0 0.0
    %1782 = vmatpush2.msra.mxu0 0.0
    %1783 = vmatprep.subr.mxu0 0.0
    %1784 = vmatpush2.msra.mxu0 0.0
    %1785 = vmatprep.subr.mxu0 0.0
    %1786 = vmatpush2.msra.mxu0 0.0
    %1787 = vmatprep.subr.mxu0 0.0
    %1788 = vmatpush2.msra.mxu0 0.0
    %1789 = vmatprep.subr.mxu0 0.0
    %1790 = vmatpush2.msra.mxu0 0.0
    %1791 = vmatprep.subr.mxu0 0.0
    %1792 = vmatpush2.msra.mxu0 0.0
    %1793 = vmatprep.subr.mxu0 0.0
    %1794 = vmatpush2.msra.mxu0 0.0
    %1795 = vmatprep.mubr.f32.mxu0 0.0
    %1796 = vmatmul.mubr.f32.gmra.mxu0 %v1729
    %v1797 = vpop.f32.mrf.mxu0
    %v1798 = vadd.f32 0.0, %v1797
    %v1799 = vpop.f32.mrf.mxu0
    %1800 = vdwg.mxu0
    %v1801 = vadd.f32 %v1722, %v1798
    %s1802 = scalar_lea.vmem [#allocation2], 144
    %1803 = vst.msk [vmem:[%s1802] sm:$0xff] %vm288, %v1801
    %s1804 = scalar_lea.vmem [#allocation3], 144
    %v1805 = vld [vmem:[%s1804] sm:$0xff]
    %v1806 = vld [vmem:[%s1802] sm:$0xff]
    %v1807 = vld [vmem:[%s3] sm:$0xff]
    %v1808 = vld [vmem:[%s3 + $0x8] sm:$0xff]
    %v1809 = vld [vmem:[%s3 + $0x10] sm:$0xff]
    %v1810 = vld [vmem:[%s3 + $0x18] sm:$0xff]
    %v1812 = vsel %vm288, %v1806, 0
    %1814 = vmatprep.subr.mxu0 0.0
    %1815 = vmatpush1.msra.mxu0 0.0
    %1816 = vmatprep.subr.mxu0 0.0
    %1817 = vmatpush1.msra.mxu0 0.0
    %1818 = vmatprep.subr.mxu0 0.0
    %1819 = vmatpush1.msra.mxu0 0.0
    %1820 = vmatprep.subr.mxu0 0.0
    %1821 = vmatpush1.msra.mxu0 0.0
    %1822 = vmatprep.subr.mxu0 0.0
    %1823 = vmatpush1.msra.mxu0 0.0
    %1824 = vmatprep.subr.mxu0 0.0
    %1825 = vmatpush1.msra.mxu0 0.0
    %1826 = vmatprep.subr.mxu0 0.0
    %1827 = vmatpush1.msra.mxu0 0.0
    %1828 = vmatprep.subr.mxu0 0.0
    %1829 = vmatpush1.msra.mxu0 0.0
    %1830 = vmatprep.subr.mxu0 0.0
    %1831 = vmatpush1.msra.mxu0 0.0
    %1832 = vmatprep.subr.mxu0 0.0
    %1833 = vmatpush1.msra.mxu0 0.0
    %1834 = vmatprep.subr.mxu0 0.0
    %1835 = vmatpush1.msra.mxu0 0.0
    %1836 = vmatprep.subr.mxu0 0.0
    %1837 = vmatpush1.msra.mxu0 0.0
    %1838 = vmatprep.subr.mxu0 0.0
    %1839 = vmatpush1.msra.mxu0 %v1810
    %1840 = vmatprep.subr.mxu0 0.0
    %1841 = vmatpush1.msra.mxu0 %v1809
    %1842 = vmatprep.subr.mxu0 0.0
    %1843 = vmatpush1.msra.mxu0 %v1808
    %1844 = vmatprep.subr.mxu0 0.0
    %1845 = vmatpush1.msra.mxu0 %v1807
    %1846 = vmatprep.subr.mxu0 0.0
    %1847 = vmatpush2.msra.mxu0 0.0
    %1848 = vmatprep.subr.mxu0 0.0
    %1849 = vmatpush2.msra.mxu0 0.0
    %1850 = vmatprep.subr.mxu0 0.0
    %1851 = vmatpush2.msra.mxu0 0.0
    %1852 = vmatprep.subr.mxu0 0.0
    %1853 = vmatpush2.msra.mxu0 0.0
    %1854 = vmatprep.subr.mxu0 0.0
    %1855 = vmatpush2.msra.mxu0 0.0
    %1856 = vmatprep.subr.mxu0 0.0
    %1857 = vmatpush2.msra.mxu0 0.0
    %1858 = vmatprep.subr.mxu0 0.0
    %1859 = vmatpush2.msra.mxu0 0.0
    %1860 = vmatprep.subr.mxu0 0.0
    %1861 = vmatpush2.msra.mxu0 0.0
    %1862 = vmatprep.subr.mxu0 0.0
    %1863 = vmatpush2.msra.mxu0 0.0
    %1864 = vmatprep.subr.mxu0 0.0
    %1865 = vmatpush2.msra.mxu0 0.0
    %1866 = vmatprep.subr.mxu0 0.0
    %1867 = vmatpush2.msra.mxu0 0.0
    %1868 = vmatprep.subr.mxu0 0.0
    %1869 = vmatpush2.msra.mxu0 0.0
    %1870 = vmatprep.subr.mxu0 0.0
    %1871 = vmatpush2.msra.mxu0 0.0
    %1872 = vmatprep.subr.mxu0 0.0
    %1873 = vmatpush2.msra.mxu0 0.0
    %1874 = vmatprep.subr.mxu0 0.0
    %1875 = vmatpush2.msra.mxu0 0.0
    %1876 = vmatprep.subr.mxu0 0.0
    %1877 = vmatpush2.msra.mxu0 0.0
    %1878 = vmatprep.mubr.f32.mxu0 0.0
    %1879 = vmatmul.mubr.f32.gmra.mxu0 %v1812
    %v1880 = vpop.f32.mrf.mxu0
    %v1881 = vadd.f32 0.0, %v1880
    %v1882 = vpop.f32.mrf.mxu0
    %1883 = vdwg.mxu0
    %v1884 = vadd.f32 %v1805, %v1881
    %s1885 = scalar_lea.vmem [#allocation2], 152
    %1886 = vst.msk [vmem:[%s1885] sm:$0xff] %vm288, %v1884
    %s1887 = scalar_lea.vmem [#allocation3], 152
    %v1888 = vld [vmem:[%s1887] sm:$0xff]
    %v1889 = vld [vmem:[%s1885] sm:$0xff]
    %v1890 = vld [vmem:[%s3] sm:$0xff]
    %v1891 = vld [vmem:[%s3 + $0x8] sm:$0xff]
    %v1892 = vld [vmem:[%s3 + $0x10] sm:$0xff]
    %v1893 = vld [vmem:[%s3 + $0x18] sm:$0xff]
    %v1895 = vsel %vm288, %v1889, 0
    %1897 = vmatprep.subr.mxu0 0.0
    %1898 = vmatpush1.msra.mxu0 0.0
    %1899 = vmatprep.subr.mxu0 0.0
    %1900 = vmatpush1.msra.mxu0 0.0
    %1901 = vmatprep.subr.mxu0 0.0
    %1902 = vmatpush1.msra.mxu0 0.0
    %1903 = vmatprep.subr.mxu0 0.0
    %1904 = vmatpush1.msra.mxu0 0.0
    %1905 = vmatprep.subr.mxu0 0.0
    %1906 = vmatpush1.msra.mxu0 0.0
    %1907 = vmatprep.subr.mxu0 0.0
    %1908 = vmatpush1.msra.mxu0 0.0
    %1909 = vmatprep.subr.mxu0 0.0
    %1910 = vmatpush1.msra.mxu0 0.0
    %1911 = vmatprep.subr.mxu0 0.0
    %1912 = vmatpush1.msra.mxu0 0.0
    %1913 = vmatprep.subr.mxu0 0.0
    %1914 = vmatpush1.msra.mxu0 0.0
    %1915 = vmatprep.subr.mxu0 0.0
    %1916 = vmatpush1.msra.mxu0 0.0
    %1917 = vmatprep.subr.mxu0 0.0
    %1918 = vmatpush1.msra.mxu0 0.0
    %1919 = vmatprep.subr.mxu0 0.0
    %1920 = vmatpush1.msra.mxu0 0.0
    %1921 = vmatprep.subr.mxu0 0.0
    %1922 = vmatpush1.msra.mxu0 %v1893
    %1923 = vmatprep.subr.mxu0 0.0
    %1924 = vmatpush1.msra.mxu0 %v1892
    %1925 = vmatprep.subr.mxu0 0.0
    %1926 = vmatpush1.msra.mxu0 %v1891
    %1927 = vmatprep.subr.mxu0 0.0
    %1928 = vmatpush1.msra.mxu0 %v1890
    %1929 = vmatprep.subr.mxu0 0.0
    %1930 = vmatpush2.msra.mxu0 0.0
    %1931 = vmatprep.subr.mxu0 0.0
    %1932 = vmatpush2.msra.mxu0 0.0
    %1933 = vmatprep.subr.mxu0 0.0
    %1934 = vmatpush2.msra.mxu0 0.0
    %1935 = vmatprep.subr.mxu0 0.0
    %1936 = vmatpush2.msra.mxu0 0.0
    %1937 = vmatprep.subr.mxu0 0.0
    %1938 = vmatpush2.msra.mxu0 0.0
    %1939 = vmatprep.subr.mxu0 0.0
    %1940 = vmatpush2.msra.mxu0 0.0
    %1941 = vmatprep.subr.mxu0 0.0
    %1942 = vmatpush2.msra.mxu0 0.0
    %1943 = vmatprep.subr.mxu0 0.0
    %1944 = vmatpush2.msra.mxu0 0.0
    %1945 = vmatprep.subr.mxu0 0.0
    %1946 = vmatpush2.msra.mxu0 0.0
    %1947 = vmatprep.subr.mxu0 0.0
    %1948 = vmatpush2.msra.mxu0 0.0
    %1949 = vmatprep.subr.mxu0 0.0
    %1950 = vmatpush2.msra.mxu0 0.0
    %1951 = vmatprep.subr.mxu0 0.0
    %1952 = vmatpush2.msra.mxu0 0.0
    %1953 = vmatprep.subr.mxu0 0.0
    %1954 = vmatpush2.msra.mxu0 0.0
    %1955 = vmatprep.subr.mxu0 0.0
    %1956 = vmatpush2.msra.mxu0 0.0
    %1957 = vmatprep.subr.mxu0 0.0
    %1958 = vmatpush2.msra.mxu0 0.0
    %1959 = vmatprep.subr.mxu0 0.0
    %1960 = vmatpush2.msra.mxu0 0.0
    %1961 = vmatprep.mubr.f32.mxu0 0.0
    %1962 = vmatmul.mubr.f32.gmra.mxu0 %v1895
    %v1963 = vpop.f32.mrf.mxu0
    %v1964 = vadd.f32 0.0, %v1963
    %v1965 = vpop.f32.mrf.mxu0
    %1966 = vdwg.mxu0
    %v1967 = vadd.f32 %v1888, %v1964
    %s1968 = scalar_lea.vmem [#allocation2], 160
    %1969 = vst.msk [vmem:[%s1968] sm:$0xff] %vm288, %v1967
    %v1970 = vld [vmem:[%s1968] sm:$0xff]
    %1971 = vst.msk [vmem:[#allocation6] sm:$0xff] %vm288, %v1970
    %v1972 = vld [vmem:[#allocation2] sm:$0xff]
    %v1973 = vld [vmem:[#allocation2 + $0x8] sm:$0xff]
    %v1974 = vld [vmem:[#allocation2 + $0x10] sm:$0xff]
    %v1975 = vld [vmem:[#allocation2 + $0x18] sm:$0xff]
    %v1976 = vld [vmem:[#allocation2 + $0x20] sm:$0xff]
    %v1977 = vld [vmem:[#allocation2 + $0x28] sm:$0xff]
    %v1978 = vld [vmem:[#allocation2 + $0x30] sm:$0xff]
    %v1979 = vld [vmem:[#allocation2 + $0x38] sm:$0xff]
    %v1980 = vld [vmem:[#allocation2 + $0x40] sm:$0xff]
    %v1981 = vld [vmem:[#allocation2 + $0x48] sm:$0xff]
    %v1982 = vld [vmem:[#allocation2 + $0x50] sm:$0xff]
    %v1983 = vld [vmem:[#allocation2 + $0x58] sm:$0xff]
    %v1984 = vld [vmem:[#allocation2 + $0x60] sm:$0xff]
    %v1985 = vld [vmem:[#allocation2 + $0x68] sm:$0xff]
    %v1986 = vld [vmem:[#allocation2 + $0x70] sm:$0xff]
    %v1987 = vld [vmem:[#allocation2 + $0x78] sm:$0xff]
    %v1988 = vld [vmem:[#allocation2 + $0x80] sm:$0xff]
    %v1989 = vld [vmem:[#allocation2 + $0x88] sm:$0xff]
    %v1990 = vld [vmem:[#allocation2 + $0x90] sm:$0xff]
    %v1991 = vld [vmem:[#allocation2 + $0x98] sm:$0xff]
    %v1992 = vld [vmem:[%s5] sm:$0xff]
    %v1993 = vld [vmem:[%s5 + $0x8] sm:$0xff]
    %v1994 = vld [vmem:[%s6] sm:$0xff]
    %v1995 = vld [vmem:[%s6 + $0x8] sm:$0xff]
    %v1996 = vld [vmem:[%s6 + $0x10] sm:$0xff]
    %v1997 = vld [vmem:[%s6 + $0x18] sm:$0xff]
    %v1999 = vsel %vm288, %v1972, 0
    %v2002 = vsel %vm288, %v1973, 0
    %v2005 = vsel %vm288, %v1974, 0
    %v2008 = vsel %vm288, %v1975, 0
    %v2011 = vsel %vm288, %v1976, 0
    %v2014 = vsel %vm288, %v1977, 0
    %v2017 = vsel %vm288, %v1978, 0
    %v2020 = vsel %vm288, %v1979, 0
    %v2023 = vsel %vm288, %v1980, 0
    %v2026 = vsel %vm288, %v1981, 0
    %v2029 = vsel %vm288, %v1982, 0
    %v2032 = vsel %vm288, %v1983, 0
    %v2035 = vsel %vm288, %v1984, 0
    %v2038 = vsel %vm288, %v1985, 0
    %v2041 = vsel %vm288, %v1986, 0
    %v2044 = vsel %vm288, %v1987, 0
    %v2047 = vsel %vm288, %v1988, 0
    %v2050 = vsel %vm288, %v1989, 0
    %v2053 = vsel %vm288, %v1990, 0
    %v2056 = vsel %vm288, %v1991, 0
    %2058 = vmatprep.subr.mxu0 0.0
    %2059 = vmatpush1.msra.mxu0 0.0
    %2060 = vmatprep.subr.mxu0 0.0
    %2061 = vmatpush1.msra.mxu0 0.0
    %2062 = vmatprep.subr.mxu0 0.0
    %2063 = vmatpush1.msra.mxu0 0.0
    %2064 = vmatprep.subr.mxu0 0.0
    %2065 = vmatpush1.msra.mxu0 0.0
    %2066 = vmatprep.subr.mxu0 0.0
    %2067 = vmatpush1.msra.mxu0 0.0
    %2068 = vmatprep.subr.mxu0 0.0
    %2069 = vmatpush1.msra.mxu0 0.0
    %2070 = vmatprep.subr.mxu0 0.0
    %2071 = vmatpush1.msra.mxu0 0.0
    %2072 = vmatprep.subr.mxu0 0.0
    %2073 = vmatpush1.msra.mxu0 0.0
    %2074 = vmatprep.subr.mxu0 0.0
    %2075 = vmatpush1.msra.mxu0 0.0
    %2076 = vmatprep.subr.mxu0 0.0
    %2077 = vmatpush1.msra.mxu0 0.0
    %2078 = vmatprep.subr.mxu0 0.0
    %2079 = vmatpush1.msra.mxu0 0.0
    %2080 = vmatprep.subr.mxu0 0.0
    %2081 = vmatpush1.msra.mxu0 0.0
    %2082 = vmatprep.subr.mxu0 0.0
    %2083 = vmatpush1.msra.mxu0 %v1997
    %2084 = vmatprep.subr.mxu0 0.0
    %2085 = vmatpush1.msra.mxu0 %v1996
    %2086 = vmatprep.subr.mxu0 0.0
    %2087 = vmatpush1.msra.mxu0 %v1995
    %2088 = vmatprep.subr.mxu0 0.0
    %2089 = vmatpush1.msra.mxu0 %v1994
    %2090 = vmatprep.subr.mxu0 0.0
    %2091 = vmatpush2.msra.mxu0 0.0
    %2092 = vmatprep.subr.mxu0 0.0
    %2093 = vmatpush2.msra.mxu0 0.0
    %2094 = vmatprep.subr.mxu0 0.0
    %2095 = vmatpush2.msra.mxu0 0.0
    %2096 = vmatprep.subr.mxu0 0.0
    %2097 = vmatpush2.msra.mxu0 0.0
    %2098 = vmatprep.subr.mxu0 0.0
    %2099 = vmatpush2.msra.mxu0 0.0
    %2100 = vmatprep.subr.mxu0 0.0
    %2101 = vmatpush2.msra.mxu0 0.0
    %2102 = vmatprep.subr.mxu0 0.0
    %2103 = vmatpush2.msra.mxu0 0.0
    %2104 = vmatprep.subr.mxu0 0.0
    %2105 = vmatpush2.msra.mxu0 0.0
    %2106 = vmatprep.subr.mxu0 0.0
    %2107 = vmatpush2.msra.mxu0 0.0
    %2108 = vmatprep.subr.mxu0 0.0
    %2109 = vmatpush2.msra.mxu0 0.0
    %2110 = vmatprep.subr.mxu0 0.0
    %2111 = vmatpush2.msra.mxu0 0.0
    %2112 = vmatprep.subr.mxu0 0.0
    %2113 = vmatpush2.msra.mxu0 0.0
    %2114 = vmatprep.subr.mxu0 0.0
    %2115 = vmatpush2.msra.mxu0 0.0
    %2116 = vmatprep.subr.mxu0 0.0
    %2117 = vmatpush2.msra.mxu0 0.0
    %2118 = vmatprep.subr.mxu0 0.0
    %2119 = vmatpush2.msra.mxu0 0.0
    %2120 = vmatprep.subr.mxu0 0.0
    %2121 = vmatpush2.msra.mxu0 0.0
    %2122 = vmatprep.mubr.f32.mxu0 0.0
    %2123 = vmatmul.mubr.f32.gmra.mxu0 %v1999
    %v2124 = vpop.f32.mrf.mxu0
    %v2125 = vadd.f32 0.0, %v2124
    %v2126 = vpop.f32.mrf.mxu0
    %2127 = vmatprep.mubr.f32.mxu0 0.0
    %2128 = vmatmul.mubr.f32.gmra.mxu0 %v2002
    %v2129 = vpop.f32.mrf.mxu0
    %v2130 = vadd.f32 0.0, %v2129
    %v2131 = vpop.f32.mrf.mxu0
    %2132 = vmatprep.mubr.f32.mxu0 0.0
    %2133 = vmatmul.mubr.f32.gmra.mxu0 %v2005
    %v2134 = vpop.f32.mrf.mxu0
    %v2135 = vadd.f32 0.0, %v2134
    %v2136 = vpop.f32.mrf.mxu0
    %2137 = vmatprep.mubr.f32.mxu0 0.0
    %2138 = vmatmul.mubr.f32.gmra.mxu0 %v2008
    %v2139 = vpop.f32.mrf.mxu0
    %v2140 = vadd.f32 0.0, %v2139
    %v2141 = vpop.f32.mrf.mxu0
    %2142 = vmatprep.mubr.f32.mxu0 0.0
    %2143 = vmatmul.mubr.f32.gmra.mxu0 %v2011
    %v2144 = vpop.f32.mrf.mxu0
    %v2145 = vadd.f32 0.0, %v2144
    %v2146 = vpop.f32.mrf.mxu0
    %2147 = vmatprep.mubr.f32.mxu0 0.0
    %2148 = vmatmul.mubr.f32.gmra.mxu0 %v2014
    %v2149 = vpop.f32.mrf.mxu0
    %v2150 = vadd.f32 0.0, %v2149
    %v2151 = vpop.f32.mrf.mxu0
    %2152 = vmatprep.mubr.f32.mxu0 0.0
    %2153 = vmatmul.mubr.f32.gmra.mxu0 %v2017
    %v2154 = vpop.f32.mrf.mxu0
    %v2155 = vadd.f32 0.0, %v2154
    %v2156 = vpop.f32.mrf.mxu0
    %2157 = vmatprep.mubr.f32.mxu0 0.0
    %2158 = vmatmul.mubr.f32.gmra.mxu0 %v2020
    %v2159 = vpop.f32.mrf.mxu0
    %v2160 = vadd.f32 0.0, %v2159
    %v2161 = vpop.f32.mrf.mxu0
    %2162 = vmatprep.mubr.f32.mxu0 0.0
    %2163 = vmatmul.mubr.f32.gmra.mxu0 %v2023
    %v2164 = vpop.f32.mrf.mxu0
    %v2165 = vadd.f32 0.0, %v2164
    %v2166 = vpop.f32.mrf.mxu0
    %2167 = vmatprep.mubr.f32.mxu0 0.0
    %2168 = vmatmul.mubr.f32.gmra.mxu0 %v2026
    %v2169 = vpop.f32.mrf.mxu0
    %v2170 = vadd.f32 0.0, %v2169
    %v2171 = vpop.f32.mrf.mxu0
    %2172 = vmatprep.mubr.f32.mxu0 0.0
    %2173 = vmatmul.mubr.f32.gmra.mxu0 %v2029
    %v2174 = vpop.f32.mrf.mxu0
    %v2175 = vadd.f32 0.0, %v2174
    %v2176 = vpop.f32.mrf.mxu0
    %2177 = vmatprep.mubr.f32.mxu0 0.0
    %2178 = vmatmul.mubr.f32.gmra.mxu0 %v2032
    %v2179 = vpop.f32.mrf.mxu0
    %v2180 = vadd.f32 0.0, %v2179
    %v2181 = vpop.f32.mrf.mxu0
    %2182 = vmatprep.mubr.f32.mxu0 0.0
    %2183 = vmatmul.mubr.f32.gmra.mxu0 %v2035
    %v2184 = vpop.f32.mrf.mxu0
    %v2185 = vadd.f32 0.0, %v2184
    %v2186 = vpop.f32.mrf.mxu0
    %2187 = vmatprep.mubr.f32.mxu0 0.0
    %2188 = vmatmul.mubr.f32.gmra.mxu0 %v2038
    %v2189 = vpop.f32.mrf.mxu0
    %v2190 = vadd.f32 0.0, %v2189
    %v2191 = vpop.f32.mrf.mxu0
    %2192 = vmatprep.mubr.f32.mxu0 0.0
    %2193 = vmatmul.mubr.f32.gmra.mxu0 %v2041
    %v2194 = vpop.f32.mrf.mxu0
    %v2195 = vadd.f32 0.0, %v2194
    %v2196 = vpop.f32.mrf.mxu0
    %2197 = vmatprep.mubr.f32.mxu0 0.0
    %2198 = vmatmul.mubr.f32.gmra.mxu0 %v2044
    %v2199 = vpop.f32.mrf.mxu0
    %v2200 = vadd.f32 0.0, %v2199
    %v2201 = vpop.f32.mrf.mxu0
    %2202 = vmatprep.mubr.f32.mxu0 0.0
    %2203 = vmatmul.mubr.f32.gmra.mxu0 %v2047
    %v2204 = vpop.f32.mrf.mxu0
    %v2205 = vadd.f32 0.0, %v2204
    %v2206 = vpop.f32.mrf.mxu0
    %2207 = vmatprep.mubr.f32.mxu0 0.0
    %2208 = vmatmul.mubr.f32.gmra.mxu0 %v2050
    %v2209 = vpop.f32.mrf.mxu0
    %v2210 = vadd.f32 0.0, %v2209
    %v2211 = vpop.f32.mrf.mxu0
    %2212 = vmatprep.mubr.f32.mxu0 0.0
    %2213 = vmatmul.mubr.f32.gmra.mxu0 %v2053
    %v2214 = vpop.f32.mrf.mxu0
    %v2215 = vadd.f32 0.0, %v2214
    %v2216 = vpop.f32.mrf.mxu0
    %2217 = vmatprep.mubr.f32.mxu0 0.0
    %2218 = vmatmul.mubr.f32.gmra.mxu0 %v2056
    %v2219 = vpop.f32.mrf.mxu0
    %v2220 = vadd.f32 0.0, %v2219
    %v2221 = vpop.f32.mrf.mxu0
    %2222 = vdwg.mxu0
    %2223 = vmatprep.subr.mxu0 0.0
    %2224 = vmatpush1.msra.mxu0 0.0
    %2225 = vmatprep.subr.mxu0 0.0
    %2226 = vmatpush1.msra.mxu0 0.0
    %2227 = vmatprep.subr.mxu0 0.0
    %2228 = vmatpush1.msra.mxu0 0.0
    %2229 = vmatprep.subr.mxu0 0.0
    %2230 = vmatpush1.msra.mxu0 0.0
    %2231 = vmatprep.subr.mxu0 0.0
    %2232 = vmatpush1.msra.mxu0 0.0
    %2233 = vmatprep.subr.mxu0 0.0
    %2234 = vmatpush1.msra.mxu0 0.0
    %2235 = vmatprep.subr.mxu0 0.0
    %2236 = vmatpush1.msra.mxu0 0.0
    %2237 = vmatprep.subr.mxu0 0.0
    %2238 = vmatpush1.msra.mxu0 0.0
    %2239 = vmatprep.subr.mxu0 0.0
    %2240 = vmatpush1.msra.mxu0 0.0
    %2241 = vmatprep.subr.mxu0 0.0
    %2242 = vmatpush1.msra.mxu0 0.0
    %2243 = vmatprep.subr.mxu0 0.0
    %2244 = vmatpush1.msra.mxu0 0.0
    %2245 = vmatprep.subr.mxu0 0.0
    %2246 = vmatpush1.msra.mxu0 0.0
    %2247 = vmatprep.subr.mxu0 0.0
    %2248 = vmatpush1.msra.mxu0 0.0
    %2249 = vmatprep.subr.mxu0 0.0
    %2250 = vmatpush1.msra.mxu0 0.0
    %2251 = vmatprep.subr.mxu0 0.0
    %2252 = vmatpush1.msra.mxu0 %v1993
    %2253 = vmatprep.subr.mxu0 0.0
    %2254 = vmatpush1.msra.mxu0 %v1992
    %2255 = vmatprep.subr.mxu0 0.0
    %2256 = vmatpush2.msra.mxu0 0.0
    %2257 = vmatprep.subr.mxu0 0.0
    %2258 = vmatpush2.msra.mxu0 0.0
    %2259 = vmatprep.subr.mxu0 0.0
    %2260 = vmatpush2.msra.mxu0 0.0
    %2261 = vmatprep.subr.mxu0 0.0
    %2262 = vmatpush2.msra.mxu0 0.0
    %2263 = vmatprep.subr.mxu0 0.0
    %2264 = vmatpush2.msra.mxu0 0.0
    %2265 = vmatprep.subr.mxu0 0.0
    %2266 = vmatpush2.msra.mxu0 0.0
    %2267 = vmatprep.subr.mxu0 0.0
    %2268 = vmatpush2.msra.mxu0 0.0
    %2269 = vmatprep.subr.mxu0 0.0
    %2270 = vmatpush2.msra.mxu0 0.0
    %2271 = vmatprep.subr.mxu0 0.0
    %2272 = vmatpush2.msra.mxu0 0.0
    %2273 = vmatprep.subr.mxu0 0.0
    %2274 = vmatpush2.msra.mxu0 0.0
    %2275 = vmatprep.subr.mxu0 0.0
    %2276 = vmatpush2.msra.mxu0 0.0
    %2277 = vmatprep.subr.mxu0 0.0
    %2278 = vmatpush2.msra.mxu0 0.0
    %2279 = vmatprep.subr.mxu0 0.0
    %2280 = vmatpush2.msra.mxu0 0.0
    %2281 = vmatprep.subr.mxu0 0.0
    %2282 = vmatpush2.msra.mxu0 0.0
    %2283 = vmatprep.subr.mxu0 0.0
    %2284 = vmatpush2.msra.mxu0 0.0
    %2285 = vmatprep.subr.mxu0 0.0
    %2286 = vmatpush2.msra.mxu0 0.0
    %2287 = vmatprep.mubr.f32.mxu0 0.0
    %2288 = vmatmul.mubr.f32.gmra.mxu0 %v64
    %v2289 = vpop.f32.mrf.mxu0
    %v2290 = vadd.f32 %v2125, %v2289
    %v2291 = vpop.f32.mrf.mxu0
    %2292 = vmatprep.mubr.f32.mxu0 0.0
    %2293 = vmatmul.mubr.f32.gmra.mxu0 %v67
    %v2294 = vpop.f32.mrf.mxu0
    %v2295 = vadd.f32 %v2130, %v2294
    %v2296 = vpop.f32.mrf.mxu0
    %2297 = vmatprep.mubr.f32.mxu0 0.0
    %2298 = vmatmul.mubr.f32.gmra.mxu0 %v70
    %v2299 = vpop.f32.mrf.mxu0
    %v2300 = vadd.f32 %v2135, %v2299
    %v2301 = vpop.f32.mrf.mxu0
    %2302 = vmatprep.mubr.f32.mxu0 0.0
    %2303 = vmatmul.mubr.f32.gmra.mxu0 %v73
    %v2304 = vpop.f32.mrf.mxu0
    %v2305 = vadd.f32 %v2140, %v2304
    %v2306 = vpop.f32.mrf.mxu0
    %2307 = vmatprep.mubr.f32.mxu0 0.0
    %2308 = vmatmul.mubr.f32.gmra.mxu0 %v76
    %v2309 = vpop.f32.mrf.mxu0
    %v2310 = vadd.f32 %v2145, %v2309
    %v2311 = vpop.f32.mrf.mxu0
    %2312 = vmatprep.mubr.f32.mxu0 0.0
    %2313 = vmatmul.mubr.f32.gmra.mxu0 %v79
    %v2314 = vpop.f32.mrf.mxu0
    %v2315 = vadd.f32 %v2150, %v2314
    %v2316 = vpop.f32.mrf.mxu0
    %2317 = vmatprep.mubr.f32.mxu0 0.0
    %2318 = vmatmul.mubr.f32.gmra.mxu0 %v82
    %v2319 = vpop.f32.mrf.mxu0
    %v2320 = vadd.f32 %v2155, %v2319
    %v2321 = vpop.f32.mrf.mxu0
    %2322 = vmatprep.mubr.f32.mxu0 0.0
    %2323 = vmatmul.mubr.f32.gmra.mxu0 %v85
    %v2324 = vpop.f32.mrf.mxu0
    %v2325 = vadd.f32 %v2160, %v2324
    %v2326 = vpop.f32.mrf.mxu0
    %2327 = vmatprep.mubr.f32.mxu0 0.0
    %2328 = vmatmul.mubr.f32.gmra.mxu0 %v88
    %v2329 = vpop.f32.mrf.mxu0
    %v2330 = vadd.f32 %v2165, %v2329
    %v2331 = vpop.f32.mrf.mxu0
    %2332 = vmatprep.mubr.f32.mxu0 0.0
    %2333 = vmatmul.mubr.f32.gmra.mxu0 %v91
    %v2334 = vpop.f32.mrf.mxu0
    %v2335 = vadd.f32 %v2170, %v2334
    %v2336 = vpop.f32.mrf.mxu0
    %2337 = vmatprep.mubr.f32.mxu0 0.0
    %2338 = vmatmul.mubr.f32.gmra.mxu0 %v94
    %v2339 = vpop.f32.mrf.mxu0
    %v2340 = vadd.f32 %v2175, %v2339
    %v2341 = vpop.f32.mrf.mxu0
    %2342 = vmatprep.mubr.f32.mxu0 0.0
    %2343 = vmatmul.mubr.f32.gmra.mxu0 %v97
    %v2344 = vpop.f32.mrf.mxu0
    %v2345 = vadd.f32 %v2180, %v2344
    %v2346 = vpop.f32.mrf.mxu0
    %2347 = vmatprep.mubr.f32.mxu0 0.0
    %2348 = vmatmul.mubr.f32.gmra.mxu0 %v100
    %v2349 = vpop.f32.mrf.mxu0
    %v2350 = vadd.f32 %v2185, %v2349
    %v2351 = vpop.f32.mrf.mxu0
    %2352 = vmatprep.mubr.f32.mxu0 0.0
    %2353 = vmatmul.mubr.f32.gmra.mxu0 %v103
    %v2354 = vpop.f32.mrf.mxu0
    %v2355 = vadd.f32 %v2190, %v2354
    %v2356 = vpop.f32.mrf.mxu0
    %2357 = vmatprep.mubr.f32.mxu0 0.0
    %2358 = vmatmul.mubr.f32.gmra.mxu0 %v106
    %v2359 = vpop.f32.mrf.mxu0
    %v2360 = vadd.f32 %v2195, %v2359
    %v2361 = vpop.f32.mrf.mxu0
    %2362 = vmatprep.mubr.f32.mxu0 0.0
    %2363 = vmatmul.mubr.f32.gmra.mxu0 %v109
    %v2364 = vpop.f32.mrf.mxu0
    %v2365 = vadd.f32 %v2200, %v2364
    %v2366 = vpop.f32.mrf.mxu0
    %2367 = vmatprep.mubr.f32.mxu0 0.0
    %2368 = vmatmul.mubr.f32.gmra.mxu0 %v112
    %v2369 = vpop.f32.mrf.mxu0
    %v2370 = vadd.f32 %v2205, %v2369
    %v2371 = vpop.f32.mrf.mxu0
    %2372 = vmatprep.mubr.f32.mxu0 0.0
    %2373 = vmatmul.mubr.f32.gmra.mxu0 %v115
    %v2374 = vpop.f32.mrf.mxu0
    %v2375 = vadd.f32 %v2210, %v2374
    %v2376 = vpop.f32.mrf.mxu0
    %2377 = vmatprep.mubr.f32.mxu0 0.0
    %2378 = vmatmul.mubr.f32.gmra.mxu0 %v118
    %v2379 = vpop.f32.mrf.mxu0
    %v2380 = vadd.f32 %v2215, %v2379
    %v2381 = vpop.f32.mrf.mxu0
    %2382 = vmatprep.mubr.f32.mxu0 0.0
    %2383 = vmatmul.mubr.f32.gmra.mxu0 %v121
    %v2384 = vpop.f32.mrf.mxu0
    %v2385 = vadd.f32 %v2220, %v2384
    %v2386 = vpop.f32.mrf.mxu0
    %2387 = vdwg.mxu0
    %v2388 = vld [vmem:[%s7] sm:$0x1]
    %v2390 = vlaneseq
    %v2391 = vshrl.u32 %v2390, 7
    %v2392 = vsub.s32 0, %v2391
    %v2393 = vrot.slane %v2388, %v2392
    %v2395 = vadd.f32 %v2290, %v2393
    %v2396 = vadd.f32 %v2295, %v2393
    %v2397 = vadd.f32 %v2300, %v2393
    %v2398 = vadd.f32 %v2305, %v2393
    %v2399 = vadd.f32 %v2310, %v2393
    %v2400 = vadd.f32 %v2315, %v2393
    %v2401 = vadd.f32 %v2320, %v2393
    %v2402 = vadd.f32 %v2325, %v2393
    %v2403 = vadd.f32 %v2330, %v2393
    %v2404 = vadd.f32 %v2335, %v2393
    %v2405 = vadd.f32 %v2340, %v2393
    %v2406 = vadd.f32 %v2345, %v2393
    %v2407 = vadd.f32 %v2350, %v2393
    %v2408 = vadd.f32 %v2355, %v2393
    %v2409 = vadd.f32 %v2360, %v2393
    %v2410 = vadd.f32 %v2365, %v2393
    %v2411 = vadd.f32 %v2370, %v2393
    %v2412 = vadd.f32 %v2375, %v2393
    %v2413 = vadd.f32 %v2380, %v2393
    %v2414 = vadd.f32 %v2385, %v2393
    %2415 = vmax.xlane.f32.xlu0 %v2395
    %v2416 = vpop.xlane.xlu0 %2415
    %2417 = vmax.xlane.f32.xlu0 %v2396
    %v2418 = vpop.xlane.xlu0 %2417
    %2419 = vmax.xlane.f32.xlu0 %v2397
    %v2420 = vpop.xlane.xlu0 %2419
    %2421 = vmax.xlane.f32.xlu0 %v2398
    %v2422 = vpop.xlane.xlu0 %2421
    %2423 = vmax.xlane.f32.xlu0 %v2399
    %v2424 = vpop.xlane.xlu0 %2423
    %2425 = vmax.xlane.f32.xlu0 %v2400
    %v2426 = vpop.xlane.xlu0 %2425
    %2427 = vmax.xlane.f32.xlu0 %v2401
    %v2428 = vpop.xlane.xlu0 %2427
    %2429 = vmax.xlane.f32.xlu0 %v2402
    %v2430 = vpop.xlane.xlu0 %2429
    %2431 = vmax.xlane.f32.xlu0 %v2403
    %v2432 = vpop.xlane.xlu0 %2431
    %2433 = vmax.xlane.f32.xlu0 %v2404
    %v2434 = vpop.xlane.xlu0 %2433
    %2435 = vmax.xlane.f32.xlu0 %v2405
    %v2436 = vpop.xlane.xlu0 %2435
    %2437 = vmax.xlane.f32.xlu0 %v2406
    %v2438 = vpop.xlane.xlu0 %2437
    %2439 = vmax.xlane.f32.xlu0 %v2407
    %v2440 = vpop.xlane.xlu0 %2439
    %2441 = vmax.xlane.f32.xlu0 %v2408
    %v2442 = vpop.xlane.xlu0 %2441
    %2443 = vmax.xlane.f32.xlu0 %v2409
    %v2444 = vpop.xlane.xlu0 %2443
    %2445 = vmax.xlane.f32.xlu0 %v2410
    %v2446 = vpop.xlane.xlu0 %2445
    %2447 = vmax.xlane.f32.xlu0 %v2411
    %v2448 = vpop.xlane.xlu0 %2447
    %2449 = vmax.xlane.f32.xlu0 %v2412
    %v2450 = vpop.xlane.xlu0 %2449
    %2451 = vmax.xlane.f32.xlu0 %v2413
    %v2452 = vpop.xlane.xlu0 %2451
    %2453 = vmax.xlane.f32.xlu0 %v2414
    %v2454 = vpop.xlane.xlu0 %2453
    %v2455 = vsub.f32 %v2395, %v2416
    %v2456 = vsub.f32 %v2396, %v2418
    %v2457 = vsub.f32 %v2397, %v2420
    %v2458 = vsub.f32 %v2398, %v2422
    %v2459 = vsub.f32 %v2399, %v2424
    %v2460 = vsub.f32 %v2400, %v2426
    %v2461 = vsub.f32 %v2401, %v2428
    %v2462 = vsub.f32 %v2402, %v2430
    %v2463 = vsub.f32 %v2403, %v2432
    %v2464 = vsub.f32 %v2404, %v2434
    %v2465 = vsub.f32 %v2405, %v2436
    %v2466 = vsub.f32 %v2406, %v2438
    %v2467 = vsub.f32 %v2407, %v2440
    %v2468 = vsub.f32 %v2408, %v2442
    %v2469 = vsub.f32 %v2409, %v2444
    %v2470 = vsub.f32 %v2410, %v2446
    %v2471 = vsub.f32 %v2411, %v2448
    %v2472 = vsub.f32 %v2412, %v2450
    %v2473 = vsub.f32 %v2413, %v2452
    %v2474 = vsub.f32 %v2414, %v2454
    %v2475 = vmul.f32 %v2455, 1.442695
    %v2476 = vpow.pop %v2475
    %v2477 = vmul.f32 %v2456, 1.442695
    %v2478 = vpow.pop %v2477
    %v2479 = vmul.f32 %v2457, 1.442695
    %v2480 = vpow.pop %v2479
    %v2481 = vmul.f32 %v2458, 1.442695
    %v2482 = vpow.pop %v2481
    %v2483 = vmul.f32 %v2459, 1.442695
    %v2484 = vpow.pop %v2483
    %v2485 = vmul.f32 %v2460, 1.442695
    %v2486 = vpow.pop %v2485
    %v2487 = vmul.f32 %v2461, 1.442695
    %v2488 = vpow.pop %v2487
    %v2489 = vmul.f32 %v2462, 1.442695
    %v2490 = vpow.pop %v2489
    %v2491 = vmul.f32 %v2463, 1.442695
    %v2492 = vpow.pop %v2491
    %v2493 = vmul.f32 %v2464, 1.442695
    %v2494 = vpow.pop %v2493
    %v2495 = vmul.f32 %v2465, 1.442695
    %v2496 = vpow.pop %v2495
    %v2497 = vmul.f32 %v2466, 1.442695
    %v2498 = vpow.pop %v2497
    %v2499 = vmul.f32 %v2467, 1.442695
    %v2500 = vpow.pop %v2499
    %v2501 = vmul.f32 %v2468, 1.442695
    %v2502 = vpow.pop %v2501
    %v2503 = vmul.f32 %v2469, 1.442695
    %v2504 = vpow.pop %v2503
    %v2505 = vmul.f32 %v2470, 1.442695
    %v2506 = vpow.pop %v2505
    %v2507 = vmul.f32 %v2471, 1.442695
    %v2508 = vpow.pop %v2507
    %v2509 = vmul.f32 %v2472, 1.442695
    %v2510 = vpow.pop %v2509
    %v2511 = vmul.f32 %v2473, 1.442695
    %v2512 = vpow.pop %v2511
    %v2513 = vmul.f32 %v2474, 1.442695
    %v2514 = vpow.pop %v2513
    %2515 = vadd.xlane.f32.xlu0 %v2476
    %v2516 = vpop.xlane.xlu0 %2515
    %2517 = vadd.xlane.f32.xlu0 %v2478
    %v2518 = vpop.xlane.xlu0 %2517
    %2519 = vadd.xlane.f32.xlu0 %v2480
    %v2520 = vpop.xlane.xlu0 %2519
    %2521 = vadd.xlane.f32.xlu0 %v2482
    %v2522 = vpop.xlane.xlu0 %2521
    %2523 = vadd.xlane.f32.xlu0 %v2484
    %v2524 = vpop.xlane.xlu0 %2523
    %2525 = vadd.xlane.f32.xlu0 %v2486
    %v2526 = vpop.xlane.xlu0 %2525
    %2527 = vadd.xlane.f32.xlu0 %v2488
    %v2528 = vpop.xlane.xlu0 %2527
    %2529 = vadd.xlane.f32.xlu0 %v2490
    %v2530 = vpop.xlane.xlu0 %2529
    %2531 = vadd.xlane.f32.xlu0 %v2492
    %v2532 = vpop.xlane.xlu0 %2531
    %2533 = vadd.xlane.f32.xlu0 %v2494
    %v2534 = vpop.xlane.xlu0 %2533
    %2535 = vadd.xlane.f32.xlu0 %v2496
    %v2536 = vpop.xlane.xlu0 %2535
    %2537 = vadd.xlane.f32.xlu0 %v2498
    %v2538 = vpop.xlane.xlu0 %2537
    %2539 = vadd.xlane.f32.xlu0 %v2500
    %v2540 = vpop.xlane.xlu0 %2539
    %2541 = vadd.xlane.f32.xlu0 %v2502
    %v2542 = vpop.xlane.xlu0 %2541
    %2543 = vadd.xlane.f32.xlu0 %v2504
    %v2544 = vpop.xlane.xlu0 %2543
    %2545 = vadd.xlane.f32.xlu0 %v2506
    %v2546 = vpop.xlane.xlu0 %2545
    %2547 = vadd.xlane.f32.xlu0 %v2508
    %v2548 = vpop.xlane.xlu0 %2547
    %2549 = vadd.xlane.f32.xlu0 %v2510
    %v2550 = vpop.xlane.xlu0 %2549
    %2551 = vadd.xlane.f32.xlu0 %v2512
    %v2552 = vpop.xlane.xlu0 %2551
    %2553 = vadd.xlane.f32.xlu0 %v2514
    %v2554 = vpop.xlane.xlu0 %2553
    %v2555 = vlog2.pop %v2516
    %v2556 = vmul.f32 %v2555, 0.6931472
    %v2557 = vlog2.pop %v2518
    %v2558 = vmul.f32 %v2557, 0.6931472
    %v2559 = vlog2.pop %v2520
    %v2560 = vmul.f32 %v2559, 0.6931472
    %v2561 = vlog2.pop %v2522
    %v2562 = vmul.f32 %v2561, 0.6931472
    %v2563 = vlog2.pop %v2524
    %v2564 = vmul.f32 %v2563, 0.6931472
    %v2565 = vlog2.pop %v2526
    %v2566 = vmul.f32 %v2565, 0.6931472
    %v2567 = vlog2.pop %v2528
    %v2568 = vmul.f32 %v2567, 0.6931472
    %v2569 = vlog2.pop %v2530
    %v2570 = vmul.f32 %v2569, 0.6931472
    %v2571 = vlog2.pop %v2532
    %v2572 = vmul.f32 %v2571, 0.6931472
    %v2573 = vlog2.pop %v2534
    %v2574 = vmul.f32 %v2573, 0.6931472
    %v2575 = vlog2.pop %v2536
    %v2576 = vmul.f32 %v2575, 0.6931472
    %v2577 = vlog2.pop %v2538
    %v2578 = vmul.f32 %v2577, 0.6931472
    %v2579 = vlog2.pop %v2540
    %v2580 = vmul.f32 %v2579, 0.6931472
    %v2581 = vlog2.pop %v2542
    %v2582 = vmul.f32 %v2581, 0.6931472
    %v2583 = vlog2.pop %v2544
    %v2584 = vmul.f32 %v2583, 0.6931472
    %v2585 = vlog2.pop %v2546
    %v2586 = vmul.f32 %v2585, 0.6931472
    %v2587 = vlog2.pop %v2548
    %v2588 = vmul.f32 %v2587, 0.6931472
    %v2589 = vlog2.pop %v2550
    %v2590 = vmul.f32 %v2589, 0.6931472
    %v2591 = vlog2.pop %v2552
    %v2592 = vmul.f32 %v2591, 0.6931472
    %v2593 = vlog2.pop %v2554
    %v2594 = vmul.f32 %v2593, 0.6931472
    %v2595 = vsub.f32 %v2455, %v2556
    %v2596 = vsub.f32 %v2456, %v2558
    %v2597 = vsub.f32 %v2457, %v2560
    %v2598 = vsub.f32 %v2458, %v2562
    %v2599 = vsub.f32 %v2459, %v2564
    %v2600 = vsub.f32 %v2460, %v2566
    %v2601 = vsub.f32 %v2461, %v2568
    %v2602 = vsub.f32 %v2462, %v2570
    %v2603 = vsub.f32 %v2463, %v2572
    %v2604 = vsub.f32 %v2464, %v2574
    %v2605 = vsub.f32 %v2465, %v2576
    %v2606 = vsub.f32 %v2466, %v2578
    %v2607 = vsub.f32 %v2467, %v2580
    %v2608 = vsub.f32 %v2468, %v2582
    %v2609 = vsub.f32 %v2469, %v2584
    %v2610 = vsub.f32 %v2470, %v2586
    %v2611 = vsub.f32 %v2471, %v2588
    %v2612 = vsub.f32 %v2472, %v2590
    %v2613 = vsub.f32 %v2473, %v2592
    %v2614 = vsub.f32 %v2474, %v2594
    %2615 = vst [vmem:[#allocation4] sm:$0xff] %v2595
    %2616 = vst [vmem:[#allocation4 + $0x8] sm:$0xff] %v2596
    %2617 = vst [vmem:[#allocation4 + $0x10] sm:$0xff] %v2597
    %2618 = vst [vmem:[#allocation4 + $0x18] sm:$0xff] %v2598
    %2619 = vst [vmem:[#allocation4 + $0x20] sm:$0xff] %v2599
    %2620 = vst [vmem:[#allocation4 + $0x28] sm:$0xff] %v2600
    %2621 = vst [vmem:[#allocation4 + $0x30] sm:$0xff] %v2601
    %2622 = vst [vmem:[#allocation4 + $0x38] sm:$0xff] %v2602
    %2623 = vst [vmem:[#allocation4 + $0x40] sm:$0xff] %v2603
    %2624 = vst [vmem:[#allocation4 + $0x48] sm:$0xff] %v2604
    %2625 = vst [vmem:[#allocation4 + $0x50] sm:$0xff] %v2605
    %2626 = vst [vmem:[#allocation4 + $0x58] sm:$0xff] %v2606
    %2627 = vst [vmem:[#allocation4 + $0x60] sm:$0xff] %v2607
    %2628 = vst [vmem:[#allocation4 + $0x68] sm:$0xff] %v2608
    %2629 = vst [vmem:[#allocation4 + $0x70] sm:$0xff] %v2609
    %2630 = vst [vmem:[#allocation4 + $0x78] sm:$0xff] %v2610
    %2631 = vst [vmem:[#allocation4 + $0x80] sm:$0xff] %v2611
    %2632 = vst [vmem:[#allocation4 + $0x88] sm:$0xff] %v2612
    %2633 = vst [vmem:[#allocation4 + $0x90] sm:$0xff] %v2613
    %2634 = vst [vmem:[#allocation4 + $0x98] sm:$0xff] %v2614
    // Predicated region
    $region34: #{tpu_custom_call.1} parent=1 // pred_check
      _
    $region35: #{tpu_custom_call.1} parent=1 // pred_check_branch
      %2636 = sbr.rel (0) target = $region37
    $region36: #{tpu_custom_call.1} parent=1 // pred_region
      %s2638 = ssub.s32 2560, 2560
      %2639 = vsyncadd [#allocation5], %s2638
      %s2640 = sshll.u32 [#allocation4], 4
      %s2641 = int_to_ptr.vmem [resolvable:$true] %s2640
      %2646 = dma.vmem_to_hbm [thread:$0]  %s2641, 2560, %s8, [#allocation5], 128, 128, 8
    $region37: #{tpu_custom_call.1} parent=1 // pred_fallthru
      _
    // Predicated region
    $region38: #{tpu_custom_call.1} parent=1 // pred_check
      _
    $region39: #{tpu_custom_call.1} parent=1 // pred_check_branch
      %2648 = sbr.rel (0) target = $region41
    $region40: #{tpu_custom_call.1} parent=1 // pred_region
      %s2650 = ssub.s32 128, 128
      %2651 = vsyncadd [#allocation7], %s2650
      %s2653 = sshll.u32 [#allocation6], 4
      %s2654 = int_to_ptr.vmem [resolvable:$true] %s2653
      %2656 = dma.vmem_to_hbm [thread:$0]  %s2654, 128, %s9, [#allocation7]
    $region41: #{tpu_custom_call.1} parent=1 // pred_fallthru
      _
    // Predicated region
    $region42: #{tpu_custom_call.1} parent=1 // pred_check
      _
    $region43: #{tpu_custom_call.1} parent=1 // pred_check_branch
      %2658 = sbr.rel (0) target = $region45
    $region44: #{tpu_custom_call.1} parent=1 // pred_region
      %2659 = dma.done [#allocation5], 2560
    $region45: #{tpu_custom_call.1} parent=1 // pred_fallthru
      _
    // Predicated region
    $region46: #{tpu_custom_call.1} parent=1 // pred_check
      _
    $region47: #{tpu_custom_call.1} parent=1 // pred_check_branch
      %2661 = sbr.rel (0) target = $region49
    $region48: #{tpu_custom_call.1} parent=1 // pred_region
      %2662 = dma.done [#allocation7], 128
    $region49: #{tpu_custom_call.1} parent=1 // pred_fallthru
      _
    %2663 = vsyncpa [#allocation5], 1
    %2664 = vsyncpa [#allocation7], 1

</llo_original>
